<compile_context>
chip_gen: v7x
topology: tpu7x:2x2x1
jax: 0.10.0
libtpu: 0.0.40
codegen_flags: <defaults>
</compile_context>

<pallas_src>
import numpy as np
import jax
import jax.numpy as jnp
from jax.experimental import pallas as pl
from jax.experimental.pallas import tpu as pltpu

# ---- small, forward-consistent configuration -------------------------------
SPATIAL = 16          # H = W of RGB / RGBD images
HIDDEN = 32           # hidden_size (512 in original; scaled down)
NUM_CLASSES = 4
KTRANS = 32           # length of kTrans vector per example
BATCH = 2


def _branch_geometry(s):
    """Spatial size after each stage: conv, conv, pool, conv, conv, pool."""
    s1 = s - 2
    s2 = s1 - 2
    assert s2 % 2 == 0, "pooled spatial dim must be even"
    s3 = s2 // 2
    s4 = s3 - 2
    s5 = s4 - 2
    assert s5 % 2 == 0, "pooled spatial dim must be even"
    s6 = s5 // 2
    return s1, s2, s3, s4, s5, s6


_S1, _S2, _S3, _S4, _S5, _SF = _branch_geometry(SPATIAL)   # 14, 12, 6, 4, 2, 1
FEAT_PER_BRANCH = 16 * _SF * _SF
INPUT_SIZE = 2 * FEAT_PER_BRANCH + KTRANS                   # analogous to input_size=119079


# ---------------------------------------------------------------------------
# The single fused kernel (one pallas_call, no grid, everything VMEM-resident).
# ---------------------------------------------------------------------------
def _unet_fused_kernel(x_ref, kt_ref,
                       w1a_ref, w1b_ref, p1sh_ref, p1sw_ref,
                       w2a_ref, w2b_ref, p2sw_ref,
                       fc1_ref, fc2_ref, fc3_ref, fc4_ref,
                       o_ref):
    f32 = jnp.float32

    def conv3x3_relu(x, w_ref):
        # ONE fused MXU push per conv layer (whole batch, both branches):
        # lane-concat the three row-shifted views + a ones lane (bias row folded
        # into the block-diagonal band-matrix weight on the host).
        ho = x.shape[0] - 2
        xc = jnp.concatenate(
            [x[0:ho, :], x[1:1 + ho, :], x[2:2 + ho, :],
             jnp.ones((ho, 1), f32)], axis=-1)
        return jnp.maximum(
            jnp.dot(xc, w_ref[...], preferred_element_type=f32), 0.0)

    def fc(x, w_ref, relu=True):
        xc = jnp.concatenate([x, jnp.ones((x.shape[0], 1), f32)], axis=-1)
        y = jnp.dot(xc, w_ref[...], preferred_element_type=f32)
        return jnp.maximum(y, 0.0) if relu else y

    x = x_ref[...]                                   # [16, B*64]   (lanes = item|branch|w|c)
    x = conv3x3_relu(x, w1a_ref)                     # [14, B*224]
    x = conv3x3_relu(x, w1b_ref)                     # [12, B*192]

    # 2x2 max-pool #1: H via 0/1 row-selection matmuls, W via 0/1 lane-selection matmuls.
    x = jnp.maximum(jnp.dot(p1sh_ref[0], x, preferred_element_type=f32),
                    jnp.dot(p1sh_ref[1], x, preferred_element_type=f32))     # [6, B*192]
    x = jnp.maximum(jnp.dot(x, p1sw_ref[0], preferred_element_type=f32),
                    jnp.dot(x, p1sw_ref[1], preferred_element_type=f32))     # [6, B*96]

    x = conv3x3_relu(x, w2a_ref)                     # [4, B*128]
    x = conv3x3_relu(x, w2b_ref)                     # [2, B*64]

    # 2x2 max-pool #2: H-pool is just an elementwise max of the two rows (VPU);
    # W-pool stays as lane-selection matmuls.
    x = jnp.maximum(x[0:1, :], x[1:2, :])            # [1, B*64]
    feat = jnp.maximum(jnp.dot(x, p2sw_ref[0], preferred_element_type=f32),
                       jnp.dot(x, p2sw_ref[1], preferred_element_type=f32))  # [1, B*32]

    # FC head: one matmul per layer for the whole batch (block-diagonal per-item
    # weights; the torch (C,H,W) flatten + kTrans concat order is folded host-side).
    h = jnp.concatenate([feat, kt_ref[...], jnp.ones((1, 1), f32)], axis=-1)
    h = jnp.maximum(jnp.dot(h, fc1_ref[...], preferred_element_type=f32), 0.0)
    h = fc(h, fc2_ref)
    h = fc(h, fc3_ref)
    o_ref[...] = fc(h, fc4_ref, relu=False)          # [1, B*NUM_CLASSES] — single store


_VMEM = pl.BlockSpec(memory_space=pltpu.MemorySpace.VMEM)


def unet_forward(RGB, RGBD, kTrans, kp):
    """RGB: [B,3,H,W], RGBD: [B,1,H,W], kTrans: [B,KTRANS]; kp: prepared kernel params."""
    B, C_rgb, H, W = RGB.shape
    C_d = RGBD.shape[1]
    assert kp['fc1'].shape[1] == B * HIDDEN, "kernel params were prepared for a different batch"

    # NCHW -> per-item lane-dense [H, W*C] (channels fastest), then lane-stack
    # [RGB | RGBD] per item and the items side by side:  x_in: [H, B*(W*3 + W*1)].
    rgb = jnp.transpose(RGB, (0, 2, 3, 1)).reshape(B, H, W * C_rgb).astype(jnp.float32)
    rgbd = jnp.transpose(RGBD, (0, 2, 3, 1)).reshape(B, H, W * C_d).astype(jnp.float32)
    per_item = jnp.concatenate([rgb, rgbd], axis=-1)                    # [B, H, 64]
    x_in = jnp.transpose(per_item, (1, 0, 2)).reshape(H, B * (W * C_rgb + W * C_d))
    kt_row = kTrans.astype(jnp.float32).reshape(1, B * KTRANS)          # item-major lanes

    args = (x_in, kt_row,
            kp['w1a'], kp['w1b'], kp['p1_sh'], kp['p1_sw'],
            kp['w2a'], kp['w2b'], kp['p2_sw'],
            kp['fc1'], kp['fc2'], kp['fc3'], kp['fc4'])

    out = pl.pallas_call(
        _unet_fused_kernel,
        out_shape=jax.ShapeDtypeStruct((1, B * NUM_CLASSES), jnp.float32),
        in_specs=[_VMEM] * len(args),
        out_specs=_VMEM,
    )(*args)
    return out.reshape(B, NUM_CLASSES)


# ---------------------------------------------------------------------------
# Host-side (numpy) parameter preparation.
# ---------------------------------------------------------------------------
def _band_matrices(w_hwio, w_in):
    """[3,3,Cin,Cout] conv weight -> [3, w_in*Cin, (w_in-2)*Cout] band matrices so a
    valid 3x3 conv on the [H, W*C] layout is  y[h] = sum_di x[h+di] @ M[di]."""
    w = np.asarray(w_hwio, np.float32)
    cin, cout = w.shape[2], w.shape[3]
    w_out = w_in - 2
    m = np.zeros((3, w_in * cin, w_out * cout), np.float32)
    for di in range(3):
        for dj in range(3):
            for wo in range(w_out):
                wi = wo + dj
                m[di, wi * cin:(wi + 1) * cin, wo * cout:(wo + 1) * cout] = w[di, dj]
    return m


def _fused_conv_weight(blocks):
    """blocks: list of (w_hwio, bias, w_in) per (item,branch) lane block, in lane order.
    Returns the fused weight [3*L_in + 1, L_out]: per-di block-diagonal band matrices
    stacked along K, with the (tiled) bias as the last row (ones-lane trick)."""
    L_in = 0
    L_out = 0
    for w, _, win in blocks:
        cin, cout = np.asarray(w).shape[2], np.asarray(w).shape[3]
        L_in += win * cin
        L_out += (win - 2) * cout
    W = np.zeros((3 * L_in + 1, L_out), np.float32)
    io = 0
    oo = 0
    for w, b, win in blocks:
        cin, cout = np.asarray(w).shape[2], np.asarray(w).shape[3]
        wo_n = win - 2
        m = _band_matrices(w, win)
        for di in range(3):
            W[di * L_in + io: di * L_in + io + win * cin, oo:oo + wo_n * cout] = m[di]
        W[3 * L_in, oo:oo + wo_n * cout] = np.tile(np.asarray(b, np.float32).reshape(-1), wo_n)
        io += win * cin
        oo += wo_n * cout
    return W


def _hpool_selectors(h):
    """0/1 matrices SH[2, h//2, h] so row-pool is max(SH0 @ x, SH1 @ x)."""
    hp = h // 2
    sh = np.zeros((2, hp, h), np.float32)
    for i in range(hp):
        sh[0, i, 2 * i] = 1.0
        sh[1, i, 2 * i + 1] = 1.0
    return sh


def _wpool_selectors(blocks):
    """blocks: list of (w, c) per lane block.  0/1 matrices SW[2, L_in, L_out] so
    lane-pool (stride-2 over w, per block) is max(x @ SW0, x @ SW1)."""
    L_in = sum(w * c for w, c in blocks)
    L_out = sum((w // 2) * c for w, c in blocks)
    sw = np.zeros((2, L_in, L_out), np.float32)
    io = 0
    oo = 0
    for w, c in blocks:
        wp = w // 2
        for j in range(wp):
            for ch in range(c):
                sw[0, io + (2 * j) * c + ch, oo + j * c + ch] = 1.0
                sw[1, io + (2 * j + 1) * c + ch, oo + j * c + ch] = 1.0
        io += w * c
        oo += wp * c
    return sw


def _fc1_aug(fc1_w, fc1_b, B):
    """fc1 as one [2*F*B + KTRANS*B + 1, B*HIDDEN] block-diagonal weight matching the
    kernel's lane order [i0RGBfeat, i0RGBDfeat, i1RGBfeat, i1RGBDfeat, i0kT, i1kT, 1]."""
    w = np.asarray(fc1_w, np.float32)
    b = np.asarray(fc1_b, np.float32).reshape(-1)
    F = FEAT_PER_BRANCH
    K = 2 * F * B + KTRANS * B + 1
    W = np.zeros((K, B * HIDDEN), np.float32)
    for bi in range(B):
        col = slice(bi * HIDDEN, (bi + 1) * HIDDEN)
        W[bi * 2 * F: bi * 2 * F + F, col] = w[0:F, :]                     # RGB features
        W[bi * 2 * F + F: bi * 2 * F + 2 * F, col] = w[F:2 * F, :]         # RGBD features
        W[2 * F * B + bi * KTRANS: 2 * F * B + (bi + 1) * KTRANS, col] = w[2 * F:2 * F + KTRANS, :]
        W[K - 1, col] = b                                                  # bias row
    return W


def _fc_aug(w, b, B):
    """Dense [kin,kout] layer -> block-diagonal [B*kin + 1, B*kout] with bias row."""
    w = np.asarray(w, np.float32)
    b = np.asarray(b, np.float32).reshape(-1)
    kin, kout = w.shape
    W = np.zeros((B * kin + 1, B * kout), np.float32)
    for bi in range(B):
        W[bi * kin:(bi + 1) * kin, bi * kout:(bi + 1) * kout] = w
        W[-1, bi * kout:(bi + 1) * kout] = b
    return W


def prepare_kernel_params(p, batch):
    B = batch
    # Lane-block order everywhere: item-major, [RGB block, RGBD block] per item.
    blocks1a = [(p['c1a_w'], p['c1a_b'], SPATIAL), (p['d1a_w'], p['d1a_b'], SPATIAL)] * B
    blocks1b = [(p['c1b_w'], p['c1b_b'], _S1), (p['d1b_w'], p['d1b_b'], _S1)] * B
    blocks2a = [(p['c2a_w'], p['c2a_b'], _S3)] * (2 * B)   # dwn_conv2 shared by both branches
    blocks2b = [(p['c2b_w'], p['c2b_b'], _S4)] * (2 * B)

    kp = {
        'w1a': _fused_conv_weight(blocks1a),
        'w1b': _fused_conv_weight(blocks1b),
        'w2a': _fused_conv_weight(blocks2a),
        'w2b': _fused_conv_weight(blocks2b),
        'p1_sh': _hpool_selectors(_S2),
        'p1_sw': _wpool_selectors([(_S2, 8)] * (2 * B)),
        'p2_sw': _wpool_selectors([(_S5, 16)] * (2 * B)),
        'fc1': _fc1_aug(p['fc1_w'], p['fc1_b'], B),
        'fc2': _fc_aug(p['fc2_w'], p['fc2_b'], B),
        'fc3': _fc_aug(p['fc3_w'], p['fc3_b'], B),
        'fc4': _fc_aug(p['fc4_w'], p['fc4_b'], B),
    }
    return {k: jnp.asarray(v) for k, v in kp.items()}


# ---------------------------------------------------------------------------
# Parameter construction (deterministic, synthetic).
# ---------------------------------------------------------------------------
def init_params(key):
    shapes = {
        # dwn_conv1 : 3 -> 8 -> 8
        'c1a_w': (3, 3, 3, 8),   'c1a_b': (1, 8),
        'c1b_w': (3, 3, 8, 8),   'c1b_b': (1, 8),
        # dwn_convD1 : 1 -> 8 -> 8
        'd1a_w': (3, 3, 1, 8),   'd1a_b': (1, 8),
        'd1b_w': (3, 3, 8, 8),   'd1b_b': (1, 8),
        # dwn_conv2 : 8 -> 16 -> 16 (shared between both branches)
        'c2a_w': (3, 3, 8, 16),  'c2a_b': (1, 16),
        'c2b_w': (3, 3, 16, 16), 'c2b_b': (1, 16),
        # fully connected head
        'fc1_w': (INPUT_SIZE, HIDDEN),        'fc1_b': (1, HIDDEN),
        'fc2_w': (HIDDEN, HIDDEN // 2),       'fc2_b': (1, HIDDEN // 2),
        'fc3_w': (HIDDEN // 2, HIDDEN // 4),  'fc3_b': (1, HIDDEN // 4),
        'fc4_w': (HIDDEN // 4, NUM_CLASSES),  'fc4_b': (1, NUM_CLASSES),
    }
    names = sorted(shapes.keys())
    keys = jax.random.split(key, len(names))
    params = {}
    for k_, name in zip(keys, names):
        shp = shapes[name]
        fan_in = float(np.prod(shp[:-1]))
        scale = 1.0 / np.sqrt(max(fan_in, 1.0))
        params[name] = (scale * jax.random.normal(k_, shp)).astype(jnp.float32)
    return params


# ---------------------------------------------------------------------------
# Pure-JAX reference (correctness check).
# ---------------------------------------------------------------------------
def _conv_ref(x, w, b):
    y = jax.lax.conv_general_dilated(x, w, (1, 1), 'VALID',
                                     dimension_numbers=('NHWC', 'HWIO', 'NHWC'))
    return jnp.maximum(y + b.reshape(1, 1, 1, -1), 0.0)


def _pool_ref(x):
    return jax.lax.reduce_window(x, -jnp.inf, jax.lax.max,
                                 (1, 2, 2, 1), (1, 2, 2, 1), 'VALID')


def reference_forward(RGB, RGBD, kTrans, p):
    rgb = jnp.transpose(RGB, (0, 2, 3, 1)).astype(jnp.float32)
    rgbd = jnp.transpose(RGBD, (0, 2, 3, 1)).astype(jnp.float32)
    B = RGB.shape[0]

    def stage(x, wa, ba, wb, bb):
        return _pool_ref(_conv_ref(_conv_ref(x, wa, ba), wb, bb))

    x4 = stage(stage(rgb, p['c1a_w'], p['c1a_b'], p['c1b_w'], p['c1b_b']),
               p['c2a_w'], p['c2a_b'], p['c2b_w'], p['c2b_b'])
    xx4 = stage(stage(rgbd, p['d1a_w'], p['d1a_b'], p['d1b_w'], p['d1b_b']),
                p['c2a_w'], p['c2a_b'], p['c2b_w'], p['c2b_b'])
    f1 = jnp.transpose(x4, (0, 3, 1, 2)).reshape(B, -1)    # torch (C,H,W) flatten order
    f2 = jnp.transpose(xx4, (0, 3, 1, 2)).reshape(B, -1)
    h = jnp.concatenate([f1, f2, kTrans.astype(jnp.float32)], axis=1)
    h = jnp.maximum(h @ p['fc1_w'] + p['fc1_b'], 0.0)
    h = jnp.maximum(h @ p['fc2_w'] + p['fc2_b'], 0.0)
    h = jnp.maximum(h @ p['fc3_w'] + p['fc3_b'], 0.0)
    return h @ p['fc4_w'] + p['fc4_b']


if __name__ == "__main__":
    key = jax.random.PRNGKey(0)
    kparams, kin = jax.random.split(key)
    params = init_params(kparams)
    kernel_params = prepare_kernel_params(params, BATCH)

    k1, k2, k3 = jax.random.split(kin, 3)
    RGB = jax.random.normal(k1, (BATCH, 3, SPATIAL, SPATIAL), jnp.float32)
    RGBD = jax.random.normal(k2, (BATCH, 1, SPATIAL, SPATIAL), jnp.float32)
    kTrans = jax.random.normal(k3, (BATCH, KTRANS), jnp.float32)

    out = unet_forward(RGB, RGBD, kTrans, kernel_params)
    out = jax.block_until_ready(out)
    assert out.shape == (BATCH, NUM_CLASSES)

    ref = jax.block_until_ready(reference_forward(RGB, RGBD, kTrans, params))
    np.testing.assert_allclose(np.asarray(out), np.asarray(ref), rtol=2e-2, atol=2e-2)

    print("KERNEL_OK")
</pallas_src>

<mosaic_0001>
module attributes {stable_mosaic.version = 11 : i64} {
  func.func @_unet_fused_kernel(%arg0: memref<16x128xf32, #tpu.memory_space<vmem>>, %arg1: memref<1x64xf32, #tpu.memory_space<vmem>>, %arg2: memref<385x448xf32, #tpu.memory_space<vmem>>, %arg3: memref<1345x384xf32, #tpu.memory_space<vmem>>, %arg4: memref<2x6x12xf32, #tpu.memory_space<vmem>>, %arg5: memref<2x384x192xf32, #tpu.memory_space<vmem>>, %arg6: memref<577x256xf32, #tpu.memory_space<vmem>>, %arg7: memref<769x128xf32, #tpu.memory_space<vmem>>, %arg8: memref<2x128x64xf32, #tpu.memory_space<vmem>>, %arg9: memref<129x64xf32, #tpu.memory_space<vmem>>, %arg10: memref<65x32xf32, #tpu.memory_space<vmem>>, %arg11: memref<33x16xf32, #tpu.memory_space<vmem>>, %arg12: memref<17x8xf32, #tpu.memory_space<vmem>>, %arg13: memref<1x8xf32, #tpu.memory_space<vmem>>) attributes {dimension_semantics = [], scalar_prefetch = 0 : i64, scratch_operands = 0 : i64, tpu.core_type = #tpu.core_type<tc>} {
    %c0 = arith.constant 0 : index
    %c0_0 = arith.constant 0 : index
    %0 = vector.load %arg0[%c0, %c0_0] : memref<16x128xf32, #tpu.memory_space<vmem>>, vector<16x128xf32>
    %1 = vector.extract_strided_slice %0 {offsets = [0, 0], sizes = [14, 128], strides = [1, 1]} : vector<16x128xf32> to vector<14x128xf32>
    %2 = vector.extract_strided_slice %0 {offsets = [1, 0], sizes = [14, 128], strides = [1, 1]} : vector<16x128xf32> to vector<14x128xf32>
    %3 = vector.extract_strided_slice %0 {offsets = [2, 0], sizes = [14, 128], strides = [1, 1]} : vector<16x128xf32> to vector<14x128xf32>
    %cst = arith.constant 1.000000e+00 : f32
    %4 = vector.broadcast %cst : f32 to vector<14x1xf32>
    %5 = tpu.concatenate %1, %2, %3, %4 in 1 : vector<14x128xf32>, vector<14x128xf32>, vector<14x128xf32>, vector<14x1xf32> -> vector<14x385xf32>
    %c0_1 = arith.constant 0 : index
    %c0_2 = arith.constant 0 : index
    %6 = vector.load %arg2[%c0_1, %c0_2] : memref<385x448xf32, #tpu.memory_space<vmem>>, vector<385x448xf32>
    %cst_3 = arith.constant dense<0.000000e+00> : vector<14x448xf32>
    %7 = tpu.matmul %5, %6, %cst_3 {dimension_numbers = #tpu.dot_dimension_numbers<[1], [0], [0], [1], [0, 0, 1, 1], [], []>} : vector<14x385xf32>, vector<385x448xf32>, vector<14x448xf32> -> vector<14x448xf32>
    %cst_4 = arith.constant 0.000000e+00 : f32
    %8 = vector.broadcast %cst_4 : f32 to vector<14x448xf32>
    %9 = arith.maximumf %7, %8 : vector<14x448xf32>
    %10 = vector.extract_strided_slice %9 {offsets = [0, 0], sizes = [12, 448], strides = [1, 1]} : vector<14x448xf32> to vector<12x448xf32>
    %11 = vector.extract_strided_slice %9 {offsets = [1, 0], sizes = [12, 448], strides = [1, 1]} : vector<14x448xf32> to vector<12x448xf32>
    %12 = vector.extract_strided_slice %9 {offsets = [2, 0], sizes = [12, 448], strides = [1, 1]} : vector<14x448xf32> to vector<12x448xf32>
    %cst_5 = arith.constant 1.000000e+00 : f32
    %13 = vector.broadcast %cst_5 : f32 to vector<12x1xf32>
    %14 = tpu.concatenate %10, %11, %12, %13 in 1 : vector<12x448xf32>, vector<12x448xf32>, vector<12x448xf32>, vector<12x1xf32> -> vector<12x1345xf32>
    %c0_6 = arith.constant 0 : index
    %c0_7 = arith.constant 0 : index
    %15 = vector.load %arg3[%c0_6, %c0_7] : memref<1345x384xf32, #tpu.memory_space<vmem>>, vector<1345x384xf32>
    %cst_8 = arith.constant dense<0.000000e+00> : vector<12x384xf32>
    %16 = tpu.matmul %14, %15, %cst_8 {dimension_numbers = #tpu.dot_dimension_numbers<[1], [0], [0], [1], [0, 0, 1, 1], [], []>} : vector<12x1345xf32>, vector<1345x384xf32>, vector<12x384xf32> -> vector<12x384xf32>
    %cst_9 = arith.constant 0.000000e+00 : f32
    %17 = vector.broadcast %cst_9 : f32 to vector<12x384xf32>
    %18 = arith.maximumf %16, %17 : vector<12x384xf32>
    %c0_10 = arith.constant 0 : index
    %c0_11 = arith.constant 0 : index
    %c0_12 = arith.constant 0 : index
    %19 = vector.load %arg4[%c0_10, %c0_11, %c0_12] : memref<2x6x12xf32, #tpu.memory_space<vmem>>, vector<1x6x12xf32>
    %20 = vector.shape_cast %19 : vector<1x6x12xf32> to vector<6x12xf32>
    %cst_13 = arith.constant dense<0.000000e+00> : vector<6x384xf32>
    %21 = tpu.matmul %20, %18, %cst_13 {dimension_numbers = #tpu.dot_dimension_numbers<[1], [0], [0], [1], [0, 0, 1, 1], [], []>} : vector<6x12xf32>, vector<12x384xf32>, vector<6x384xf32> -> vector<6x384xf32>
    %c1 = arith.constant 1 : index
    %c0_14 = arith.constant 0 : index
    %c0_15 = arith.constant 0 : index
    %22 = vector.load %arg4[%c1, %c0_14, %c0_15] : memref<2x6x12xf32, #tpu.memory_space<vmem>>, vector<1x6x12xf32>
    %23 = vector.shape_cast %22 : vector<1x6x12xf32> to vector<6x12xf32>
    %cst_16 = arith.constant dense<0.000000e+00> : vector<6x384xf32>
    %24 = tpu.matmul %23, %18, %cst_16 {dimension_numbers = #tpu.dot_dimension_numbers<[1], [0], [0], [1], [0, 0, 1, 1], [], []>} : vector<6x12xf32>, vector<12x384xf32>, vector<6x384xf32> -> vector<6x384xf32>
    %25 = arith.maximumf %21, %24 : vector<6x384xf32>
    %c0_17 = arith.constant 0 : index
    %c0_18 = arith.constant 0 : index
    %c0_19 = arith.constant 0 : index
    %26 = vector.load %arg5[%c0_17, %c0_18, %c0_19] : memref<2x384x192xf32, #tpu.memory_space<vmem>>, vector<1x384x192xf32>
    %27 = vector.shape_cast %26 : vector<1x384x192xf32> to vector<384x192xf32>
    %cst_20 = arith.constant dense<0.000000e+00> : vector<6x192xf32>
    %28 = tpu.matmul %25, %27, %cst_20 {dimension_numbers = #tpu.dot_dimension_numbers<[1], [0], [0], [1], [0, 0, 1, 1], [], []>} : vector<6x384xf32>, vector<384x192xf32>, vector<6x192xf32> -> vector<6x192xf32>
    %c1_21 = arith.constant 1 : index
    %c0_22 = arith.constant 0 : index
    %c0_23 = arith.constant 0 : index
    %29 = vector.load %arg5[%c1_21, %c0_22, %c0_23] : memref<2x384x192xf32, #tpu.memory_space<vmem>>, vector<1x384x192xf32>
    %30 = vector.shape_cast %29 : vector<1x384x192xf32> to vector<384x192xf32>
    %cst_24 = arith.constant dense<0.000000e+00> : vector<6x192xf32>
    %31 = tpu.matmul %25, %30, %cst_24 {dimension_numbers = #tpu.dot_dimension_numbers<[1], [0], [0], [1], [0, 0, 1, 1], [], []>} : vector<6x384xf32>, vector<384x192xf32>, vector<6x192xf32> -> vector<6x192xf32>
    %32 = arith.maximumf %28, %31 : vector<6x192xf32>
    %33 = vector.extract_strided_slice %32 {offsets = [0, 0], sizes = [4, 192], strides = [1, 1]} : vector<6x192xf32> to vector<4x192xf32>
    %34 = vector.extract_strided_slice %32 {offsets = [1, 0], sizes = [4, 192], strides = [1, 1]} : vector<6x192xf32> to vector<4x192xf32>
    %35 = vector.extract_strided_slice %32 {offsets = [2, 0], sizes = [4, 192], strides = [1, 1]} : vector<6x192xf32> to vector<4x192xf32>
    %cst_25 = arith.constant 1.000000e+00 : f32
    %36 = vector.broadcast %cst_25 : f32 to vector<4x1xf32>
    %37 = tpu.concatenate %33, %34, %35, %36 in 1 : vector<4x192xf32>, vector<4x192xf32>, vector<4x192xf32>, vector<4x1xf32> -> vector<4x577xf32>
    %c0_26 = arith.constant 0 : index
    %c0_27 = arith.constant 0 : index
    %38 = vector.load %arg6[%c0_26, %c0_27] : memref<577x256xf32, #tpu.memory_space<vmem>>, vector<577x256xf32>
    %cst_28 = arith.constant dense<0.000000e+00> : vector<4x256xf32>
    %39 = tpu.matmul %37, %38, %cst_28 {dimension_numbers = #tpu.dot_dimension_numbers<[1], [0], [0], [1], [0, 0, 1, 1], [], []>} : vector<4x577xf32>, vector<577x256xf32>, vector<4x256xf32> -> vector<4x256xf32>
    %cst_29 = arith.constant 0.000000e+00 : f32
    %40 = vector.broadcast %cst_29 : f32 to vector<4x256xf32>
    %41 = arith.maximumf %39, %40 : vector<4x256xf32>
    %42 = vector.extract_strided_slice %41 {offsets = [0, 0], sizes = [2, 256], strides = [1, 1]} : vector<4x256xf32> to vector<2x256xf32>
    %43 = vector.extract_strided_slice %41 {offsets = [1, 0], sizes = [2, 256], strides = [1, 1]} : vector<4x256xf32> to vector<2x256xf32>
    %44 = vector.extract_strided_slice %41 {offsets = [2, 0], sizes = [2, 256], strides = [1, 1]} : vector<4x256xf32> to vector<2x256xf32>
    %cst_30 = arith.constant 1.000000e+00 : f32
    %45 = vector.broadcast %cst_30 : f32 to vector<2x1xf32>
    %46 = tpu.concatenate %42, %43, %44, %45 in 1 : vector<2x256xf32>, vector<2x256xf32>, vector<2x256xf32>, vector<2x1xf32> -> vector<2x769xf32>
    %c0_31 = arith.constant 0 : index
    %c0_32 = arith.constant 0 : index
    %47 = vector.load %arg7[%c0_31, %c0_32] : memref<769x128xf32, #tpu.memory_space<vmem>>, vector<769x128xf32>
    %cst_33 = arith.constant dense<0.000000e+00> : vector<2x128xf32>
    %48 = tpu.matmul %46, %47, %cst_33 {dimension_numbers = #tpu.dot_dimension_numbers<[1], [0], [0], [1], [0, 0, 1, 1], [], []>} : vector<2x769xf32>, vector<769x128xf32>, vector<2x128xf32> -> vector<2x128xf32>
    %cst_34 = arith.constant 0.000000e+00 : f32
    %49 = vector.broadcast %cst_34 : f32 to vector<2x128xf32>
    %50 = arith.maximumf %48, %49 : vector<2x128xf32>
    %51 = vector.extract_strided_slice %50 {offsets = [0, 0], sizes = [1, 128], strides = [1, 1]} : vector<2x128xf32> to vector<1x128xf32>
    %52 = vector.extract_strided_slice %50 {offsets = [1, 0], sizes = [1, 128], strides = [1, 1]} : vector<2x128xf32> to vector<1x128xf32>
    %53 = arith.maximumf %51, %52 : vector<1x128xf32>
    %c0_35 = arith.constant 0 : index
    %c0_36 = arith.constant 0 : index
    %c0_37 = arith.constant 0 : index
    %54 = vector.load %arg8[%c0_35, %c0_36, %c0_37] : memref<2x128x64xf32, #tpu.memory_space<vmem>>, vector<1x128x64xf32>
    %55 = vector.shape_cast %54 : vector<1x128x64xf32> to vector<128x64xf32>
    %cst_38 = arith.constant dense<0.000000e+00> : vector<1x64xf32>
    %56 = tpu.matmul %53, %55, %cst_38 {dimension_numbers = #tpu.dot_dimension_numbers<[1], [0], [0], [1], [0, 0, 1, 1], [], []>} : vector<1x128xf32>, vector<128x64xf32>, vector<1x64xf32> -> vector<1x64xf32>
    %c1_39 = arith.constant 1 : index
    %c0_40 = arith.constant 0 : index
    %c0_41 = arith.constant 0 : index
    %57 = vector.load %arg8[%c1_39, %c0_40, %c0_41] : memref<2x128x64xf32, #tpu.memory_space<vmem>>, vector<1x128x64xf32>
    %58 = vector.shape_cast %57 : vector<1x128x64xf32> to vector<128x64xf32>
    %cst_42 = arith.constant dense<0.000000e+00> : vector<1x64xf32>
    %59 = tpu.matmul %53, %58, %cst_42 {dimension_numbers = #tpu.dot_dimension_numbers<[1], [0], [0], [1], [0, 0, 1, 1], [], []>} : vector<1x128xf32>, vector<128x64xf32>, vector<1x64xf32> -> vector<1x64xf32>
    %60 = arith.maximumf %56, %59 : vector<1x64xf32>
    %c0_43 = arith.constant 0 : index
    %c0_44 = arith.constant 0 : index
    %61 = vector.load %arg1[%c0_43, %c0_44] : memref<1x64xf32, #tpu.memory_space<vmem>>, vector<1x64xf32>
    %cst_45 = arith.constant 1.000000e+00 : f32
    %62 = vector.broadcast %cst_45 : f32 to vector<1x1xf32>
    %63 = tpu.concatenate %60, %61, %62 in 1 : vector<1x64xf32>, vector<1x64xf32>, vector<1x1xf32> -> vector<1x129xf32>
    %c0_46 = arith.constant 0 : index
    %c0_47 = arith.constant 0 : index
    %64 = vector.load %arg9[%c0_46, %c0_47] : memref<129x64xf32, #tpu.memory_space<vmem>>, vector<129x64xf32>
    %cst_48 = arith.constant dense<0.000000e+00> : vector<1x64xf32>
    %65 = tpu.matmul %63, %64, %cst_48 {dimension_numbers = #tpu.dot_dimension_numbers<[1], [0], [0], [1], [0, 0, 1, 1], [], []>} : vector<1x129xf32>, vector<129x64xf32>, vector<1x64xf32> -> vector<1x64xf32>
    %cst_49 = arith.constant 0.000000e+00 : f32
    %66 = vector.broadcast %cst_49 : f32 to vector<1x64xf32>
    %67 = arith.maximumf %65, %66 : vector<1x64xf32>
    %cst_50 = arith.constant 1.000000e+00 : f32
    %68 = vector.broadcast %cst_50 : f32 to vector<1x1xf32>
    %69 = tpu.concatenate %67, %68 in 1 : vector<1x64xf32>, vector<1x1xf32> -> vector<1x65xf32>
    %c0_51 = arith.constant 0 : index
    %c0_52 = arith.constant 0 : index
    %70 = vector.load %arg10[%c0_51, %c0_52] : memref<65x32xf32, #tpu.memory_space<vmem>>, vector<65x32xf32>
    %cst_53 = arith.constant dense<0.000000e+00> : vector<1x32xf32>
    %71 = tpu.matmul %69, %70, %cst_53 {dimension_numbers = #tpu.dot_dimension_numbers<[1], [0], [0], [1], [0, 0, 1, 1], [], []>} : vector<1x65xf32>, vector<65x32xf32>, vector<1x32xf32> -> vector<1x32xf32>
    %cst_54 = arith.constant 0.000000e+00 : f32
    %72 = vector.broadcast %cst_54 : f32 to vector<1x32xf32>
    %73 = arith.maximumf %71, %72 : vector<1x32xf32>
    %cst_55 = arith.constant 1.000000e+00 : f32
    %74 = vector.broadcast %cst_55 : f32 to vector<1x1xf32>
    %75 = tpu.concatenate %73, %74 in 1 : vector<1x32xf32>, vector<1x1xf32> -> vector<1x33xf32>
    %c0_56 = arith.constant 0 : index
    %c0_57 = arith.constant 0 : index
    %76 = vector.load %arg11[%c0_56, %c0_57] : memref<33x16xf32, #tpu.memory_space<vmem>>, vector<33x16xf32>
    %cst_58 = arith.constant dense<0.000000e+00> : vector<1x16xf32>
    %77 = tpu.matmul %75, %76, %cst_58 {dimension_numbers = #tpu.dot_dimension_numbers<[1], [0], [0], [1], [0, 0, 1, 1], [], []>} : vector<1x33xf32>, vector<33x16xf32>, vector<1x16xf32> -> vector<1x16xf32>
    %cst_59 = arith.constant 0.000000e+00 : f32
    %78 = vector.broadcast %cst_59 : f32 to vector<1x16xf32>
    %79 = arith.maximumf %77, %78 : vector<1x16xf32>
    %cst_60 = arith.constant 1.000000e+00 : f32
    %80 = vector.broadcast %cst_60 : f32 to vector<1x1xf32>
    %81 = tpu.concatenate %79, %80 in 1 : vector<1x16xf32>, vector<1x1xf32> -> vector<1x17xf32>
    %c0_61 = arith.constant 0 : index
    %c0_62 = arith.constant 0 : index
    %82 = vector.load %arg12[%c0_61, %c0_62] : memref<17x8xf32, #tpu.memory_space<vmem>>, vector<17x8xf32>
    %cst_63 = arith.constant dense<0.000000e+00> : vector<1x8xf32>
    %83 = tpu.matmul %81, %82, %cst_63 {dimension_numbers = #tpu.dot_dimension_numbers<[1], [0], [0], [1], [0, 0, 1, 1], [], []>} : vector<1x17xf32>, vector<17x8xf32>, vector<1x8xf32> -> vector<1x8xf32>
    %c0_64 = arith.constant 0 : index
    %c0_65 = arith.constant 0 : index
    %84 = vector.load %arg13[%c0_64, %c0_65] : memref<1x8xf32, #tpu.memory_space<vmem>>, vector<1x8xf32>
    tpu.vector_store %arg13[%c0_64, %c0_65], %83 {strides = array<i32>} : memref<1x8xf32, #tpu.memory_space<vmem>>, vector<1x8xf32>,
    return
  }
}

</mosaic_0001>

<llo_original>
// kernel: tpu_custom_call.1
$region0: #{tpu_custom_call.1}
  #allocation0 [shape = 'u32[]', space=smem, size = 0x4, offset = 0x4, fixed_abs, tag = 'smem constant byte address 0x4 - core index']
  #allocation1 [shape = 'u32[144,128]{1,0:T(1,128)}', space=vmem, size = 0x12000, scoped, tag = 'internal scratch']
  %s0 = inlined_call_operand.hbm [shape: f32[16,128], index: 0, kind: input, shape index: {}]
  %s1 = inlined_call_operand.hbm [shape: f32[1,64], index: 1, kind: input, shape index: {}]
  %s2 = inlined_call_operand.vmem [shape: f32[385,448], index: 2, kind: input, shape index: {}]
  %s3 = inlined_call_operand.hbm [shape: f32[1345,384], index: 3, kind: input, shape index: {}]
  %s4 = inlined_call_operand.vmem [shape: f32[2,6,12], index: 4, kind: input, shape index: {}]
  %s5 = inlined_call_operand.vmem [shape: f32[2,384,192], index: 5, kind: input, shape index: {}]
  %s6 = inlined_call_operand.vmem [shape: f32[577,256], index: 6, kind: input, shape index: {}]
  %s7 = inlined_call_operand.vmem [shape: f32[769,128], index: 7, kind: input, shape index: {}]
  %s8 = inlined_call_operand.vmem [shape: f32[2,128,64], index: 8, kind: input, shape index: {}]
  %s9 = inlined_call_operand.vmem [shape: f32[129,64], index: 9, kind: input, shape index: {}]
  %s10 = inlined_call_operand.vmem [shape: f32[65,32], index: 10, kind: input, shape index: {}]
  %s11 = inlined_call_operand.vmem [shape: f32[33,16], index: 11, kind: input, shape index: {}]
  %s12 = inlined_call_operand.vmem [shape: f32[17,8], index: 12, kind: input, shape index: {}]
  %s13 = inlined_call_operand.hbm [shape: f32[1,8], index: 13, kind: output, shape index: {}]
  %s14 = sld [smem:[#allocation0]]
  $region74: #{tpu_custom_call.1} parent=0
    _
  %s16 = ssub.s32 1, %s14
  %s17 = scalar_select 0, %s16, %s14
  $region1: #{tpu_custom_call.1} parent=0
    #allocation2 [shape = 'u8[8192]{0}', space=vmem, size = 0x2000, scoped, tag = 'input window, operand 0, single buffered']
    #allocation3 [shape = 's32[1]{0}', space=sflag, size = 0x4, scoped, tag = 'scoped memory for tpu_custom_call.1']
    #allocation4 [shape = 's32[1]{0}', space=sflag, size = 0x4, scoped, tag = 'scoped memory for tpu_custom_call.1']
    #allocation5 [shape = 'u8[512]{0}', space=vmem, size = 0x400, scoped, tag = 'input window, operand 1, single buffered']
    #allocation6 [shape = 's32[1]{0}', space=sflag, size = 0x4, scoped, tag = 'scoped memory for tpu_custom_call.1']
    #allocation7 [shape = 'u8[2076672]{0}', space=vmem, size = 0x1fb000, scoped, tag = 'input window, operand 3, single buffered']
    #allocation8 [shape = 'u8[512]{0}', space=vmem, size = 0x400, scoped, tag = 'output window, operand 0, single buffered']
    %18 = vsyncpa [#allocation3], 0
    %19 = vsyncpa [#allocation6], 0
    %20 = vsyncpa [#allocation4], 0
    // Predicated region
    $region2: #{tpu_custom_call.1} parent=1 // pred_check
      _
    $region3: #{tpu_custom_call.1} parent=1 // pred_check_branch
      %22 = sbr.rel (0) target = $region5
    $region4: #{tpu_custom_call.1} parent=1 // pred_region
      %s24 = ssub.s32 256, 256
      %25 = vsyncadd [#allocation3], %s24
      %s26 = sshll.u32 [#allocation2], 4
      %s27 = int_to_ptr.vmem [resolvable:$true] %s26
      %32 = dma.hbm_to_vmem [thread:$0]  %s0, 256, %s27, [#allocation3], 128, 128, 8
    $region5: #{tpu_custom_call.1} parent=1 // pred_fallthru
      _
    // Predicated region
    $region6: #{tpu_custom_call.1} parent=1 // pred_check
      _
    $region7: #{tpu_custom_call.1} parent=1 // pred_check_branch
      %34 = sbr.rel (0) target = $region9
    $region8: #{tpu_custom_call.1} parent=1 // pred_region
      %s36 = ssub.s32 16, 16
      %37 = vsyncadd [#allocation6], %s36
      %s39 = sshll.u32 [#allocation5], 4
      %s40 = int_to_ptr.vmem [resolvable:$true] %s39
      %42 = dma.hbm_to_vmem [thread:$0]  %s1, 16, %s40, [#allocation6]
    $region9: #{tpu_custom_call.1} parent=1 // pred_fallthru
      _
    // Predicated region
    $region10: #{tpu_custom_call.1} parent=1 // pred_check
      _
    $region11: #{tpu_custom_call.1} parent=1 // pred_check_branch
      %44 = sbr.rel (0) target = $region13
    $region12: #{tpu_custom_call.1} parent=1 // pred_region
      _
    $region13: #{tpu_custom_call.1} parent=1 // pred_fallthru
      _
    // Predicated region
    $region14: #{tpu_custom_call.1} parent=1 // pred_check
      _
    $region15: #{tpu_custom_call.1} parent=1 // pred_check_branch
      %46 = sbr.rel (0) target = $region17
    $region16: #{tpu_custom_call.1} parent=1 // pred_region
      %s48 = ssub.s32 64896, 64896
      %49 = vsyncadd [#allocation6], %s48
      %s50 = sshll.u32 [#allocation7], 4
      %s51 = int_to_ptr.vmem [resolvable:$true] %s50
      %56 = dma.hbm_to_vmem [thread:$0]  %s3, 64896, %s51, [#allocation6], 384, 384, 24
    $region17: #{tpu_custom_call.1} parent=1 // pred_fallthru
      _
    // Predicated region
    $region18: #{tpu_custom_call.1} parent=1 // pred_check
      _
    $region19: #{tpu_custom_call.1} parent=1 // pred_check_branch
      %58 = sbr.rel (0) target = $region21
    $region20: #{tpu_custom_call.1} parent=1 // pred_region
      _
    $region21: #{tpu_custom_call.1} parent=1 // pred_fallthru
      _
    // Predicated region
    $region22: #{tpu_custom_call.1} parent=1 // pred_check
      _
    $region23: #{tpu_custom_call.1} parent=1 // pred_check_branch
      %60 = sbr.rel (0) target = $region25
    $region24: #{tpu_custom_call.1} parent=1 // pred_region
      _
    $region25: #{tpu_custom_call.1} parent=1 // pred_fallthru
      _
    // Predicated region
    $region26: #{tpu_custom_call.1} parent=1 // pred_check
      _
    $region27: #{tpu_custom_call.1} parent=1 // pred_check_branch
      %62 = sbr.rel (0) target = $region29
    $region28: #{tpu_custom_call.1} parent=1 // pred_region
      _
    $region29: #{tpu_custom_call.1} parent=1 // pred_fallthru
      _
    // Predicated region
    $region30: #{tpu_custom_call.1} parent=1 // pred_check
      _
    $region31: #{tpu_custom_call.1} parent=1 // pred_check_branch
      %64 = sbr.rel (0) target = $region33
    $region32: #{tpu_custom_call.1} parent=1 // pred_region
      _
    $region33: #{tpu_custom_call.1} parent=1 // pred_fallthru
      _
    // Predicated region
    $region34: #{tpu_custom_call.1} parent=1 // pred_check
      _
    $region35: #{tpu_custom_call.1} parent=1 // pred_check_branch
      %66 = sbr.rel (0) target = $region37
    $region36: #{tpu_custom_call.1} parent=1 // pred_region
      _
    $region37: #{tpu_custom_call.1} parent=1 // pred_fallthru
      _
    // Predicated region
    $region38: #{tpu_custom_call.1} parent=1 // pred_check
      _
    $region39: #{tpu_custom_call.1} parent=1 // pred_check_branch
      %68 = sbr.rel (0) target = $region41
    $region40: #{tpu_custom_call.1} parent=1 // pred_region
      _
    $region41: #{tpu_custom_call.1} parent=1 // pred_fallthru
      _
    // Predicated region
    $region42: #{tpu_custom_call.1} parent=1 // pred_check
      _
    $region43: #{tpu_custom_call.1} parent=1 // pred_check_branch
      %70 = sbr.rel (0) target = $region45
    $region44: #{tpu_custom_call.1} parent=1 // pred_region
      _
    $region45: #{tpu_custom_call.1} parent=1 // pred_fallthru
      _
    // Predicated region
    $region46: #{tpu_custom_call.1} parent=1 // pred_check
      _
    $region47: #{tpu_custom_call.1} parent=1 // pred_check_branch
      %72 = sbr.rel (0) target = $region49
    $region48: #{tpu_custom_call.1} parent=1 // pred_region
      _
    $region49: #{tpu_custom_call.1} parent=1 // pred_fallthru
      _
    // Predicated region
    $region50: #{tpu_custom_call.1} parent=1 // pred_check
      _
    $region51: #{tpu_custom_call.1} parent=1 // pred_check_branch
      %74 = sbr.rel (0) target = $region53
    $region52: #{tpu_custom_call.1} parent=1 // pred_region
      _
    $region53: #{tpu_custom_call.1} parent=1 // pred_fallthru
      _
    // Predicated region
    $region54: #{tpu_custom_call.1} parent=1 // pred_check
      _
    $region55: #{tpu_custom_call.1} parent=1 // pred_check_branch
      %76 = sbr.rel (0) target = $region57
    $region56: #{tpu_custom_call.1} parent=1 // pred_region
      %77 = dma.done [#allocation3], 256
    $region57: #{tpu_custom_call.1} parent=1 // pred_fallthru
      _
    // Predicated region
    $region58: #{tpu_custom_call.1} parent=1 // pred_check
      _
    $region59: #{tpu_custom_call.1} parent=1 // pred_check_branch
      %79 = sbr.rel (0) target = $region61
    $region60: #{tpu_custom_call.1} parent=1 // pred_region
      %80 = dma.done [#allocation6], 16
    $region61: #{tpu_custom_call.1} parent=1 // pred_fallthru
      _
    // Predicated region
    $region62: #{tpu_custom_call.1} parent=1 // pred_check
      _
    $region63: #{tpu_custom_call.1} parent=1 // pred_check_branch
      %82 = sbr.rel (0) target = $region65
    $region64: #{tpu_custom_call.1} parent=1 // pred_region
      %83 = dma.done [#allocation6], 64896
    $region65: #{tpu_custom_call.1} parent=1 // pred_fallthru
      _
    %v84 = vld [vmem:[#allocation2] sm:$0xff]
    %v85 = vld [vmem:[#allocation2 + $0x8] sm:$0xff]
    %vm88 = vcmask 1046528
    %v89 = vrot.slane %v84, 1
    %v90 = vrot.slane %v85, 1
    %v91 = vsel %vm88, %v89, %v90
    %vm94 = vcmask 1045504
    %v95 = vrot.slane %v84, 2
    %v96 = vrot.slane %v85, 2
    %v97 = vsel %vm94, %v95, %v96
    %v100 = vld [vmem:[%s2] sm:$0xff]
    %v101 = vld [vmem:[%s2 + $0x8] sm:$0xff]
    %v102 = vld [vmem:[%s2 + $0x10] sm:$0xff]
    %v103 = vld [vmem:[%s2 + $0x18] sm:$0xff]
    %v104 = vld [vmem:[%s2 + $0x20] sm:$0xff]
    %v105 = vld [vmem:[%s2 + $0x28] sm:$0xff]
    %v106 = vld [vmem:[%s2 + $0x30] sm:$0xff]
    %v107 = vld [vmem:[%s2 + $0x38] sm:$0xff]
    %v108 = vld [vmem:[%s2 + $0x40] sm:$0xff]
    %v109 = vld [vmem:[%s2 + $0x48] sm:$0xff]
    %v110 = vld [vmem:[%s2 + $0x50] sm:$0xff]
    %v111 = vld [vmem:[%s2 + $0x58] sm:$0xff]
    %v112 = vld [vmem:[%s2 + $0x60] sm:$0xff]
    %v113 = vld [vmem:[%s2 + $0x68] sm:$0xff]
    %v114 = vld [vmem:[%s2 + $0x70] sm:$0xff]
    %v115 = vld [vmem:[%s2 + $0x78] sm:$0xff]
    %v116 = vld [vmem:[%s2 + $0x80] sm:$0xff]
    %v117 = vld [vmem:[%s2 + $0x88] sm:$0xff]
    %v118 = vld [vmem:[%s2 + $0x90] sm:$0xff]
    %v119 = vld [vmem:[%s2 + $0x98] sm:$0xff]
    %v120 = vld [vmem:[%s2 + $0xa0] sm:$0xff]
    %v121 = vld [vmem:[%s2 + $0xa8] sm:$0xff]
    %v122 = vld [vmem:[%s2 + $0xb0] sm:$0xff]
    %v123 = vld [vmem:[%s2 + $0xb8] sm:$0xff]
    %v124 = vld [vmem:[%s2 + $0xc0] sm:$0xff]
    %v125 = vld [vmem:[%s2 + $0xc8] sm:$0xff]
    %v126 = vld [vmem:[%s2 + $0xd0] sm:$0xff]
    %v127 = vld [vmem:[%s2 + $0xd8] sm:$0xff]
    %v128 = vld [vmem:[%s2 + $0xe0] sm:$0xff]
    %v129 = vld [vmem:[%s2 + $0xe8] sm:$0xff]
    %v130 = vld [vmem:[%s2 + $0xf0] sm:$0xff]
    %v131 = vld [vmem:[%s2 + $0xf8] sm:$0xff]
    %v132 = vld [vmem:[%s2 + $0x100] sm:$0xff]
    %v133 = vld [vmem:[%s2 + $0x108] sm:$0xff]
    %v134 = vld [vmem:[%s2 + $0x110] sm:$0xff]
    %v135 = vld [vmem:[%s2 + $0x118] sm:$0xff]
    %v136 = vld [vmem:[%s2 + $0x120] sm:$0xff]
    %v137 = vld [vmem:[%s2 + $0x128] sm:$0xff]
    %v138 = vld [vmem:[%s2 + $0x130] sm:$0xff]
    %v139 = vld [vmem:[%s2 + $0x138] sm:$0xff]
    %v140 = vld [vmem:[%s2 + $0x140] sm:$0xff]
    %v141 = vld [vmem:[%s2 + $0x148] sm:$0xff]
    %v142 = vld [vmem:[%s2 + $0x150] sm:$0xff]
    %v143 = vld [vmem:[%s2 + $0x158] sm:$0xff]
    %v144 = vld [vmem:[%s2 + $0x160] sm:$0xff]
    %v145 = vld [vmem:[%s2 + $0x168] sm:$0xff]
    %v146 = vld [vmem:[%s2 + $0x170] sm:$0xff]
    %v147 = vld [vmem:[%s2 + $0x178] sm:$0xff]
    %v148 = vld [vmem:[%s2 + $0x180] sm:$0xff]
    %v149 = vld [vmem:[%s2 + $0x188] sm:$0xff]
    %v150 = vld [vmem:[%s2 + $0x190] sm:$0xff]
    %v151 = vld [vmem:[%s2 + $0x198] sm:$0xff]
    %v152 = vld [vmem:[%s2 + $0x1a0] sm:$0xff]
    %v153 = vld [vmem:[%s2 + $0x1a8] sm:$0xff]
    %v154 = vld [vmem:[%s2 + $0x1b0] sm:$0xff]
    %v155 = vld [vmem:[%s2 + $0x1b8] sm:$0xff]
    %v156 = vld [vmem:[%s2 + $0x1c0] sm:$0xff]
    %v157 = vld [vmem:[%s2 + $0x1c8] sm:$0xff]
    %v158 = vld [vmem:[%s2 + $0x1d0] sm:$0xff]
    %v159 = vld [vmem:[%s2 + $0x1d8] sm:$0xff]
    %v160 = vld [vmem:[%s2 + $0x1e0] sm:$0xff]
    %v161 = vld [vmem:[%s2 + $0x1e8] sm:$0xff]
    %v162 = vld [vmem:[%s2 + $0x1f0] sm:$0xff]
    %v163 = vld [vmem:[%s2 + $0x1f8] sm:$0xff]
    %v164 = vld [vmem:[%s2 + $0x200] sm:$0xff]
    %v165 = vld [vmem:[%s2 + $0x208] sm:$0xff]
    %v166 = vld [vmem:[%s2 + $0x210] sm:$0xff]
    %v167 = vld [vmem:[%s2 + $0x218] sm:$0xff]
    %v168 = vld [vmem:[%s2 + $0x220] sm:$0xff]
    %v169 = vld [vmem:[%s2 + $0x228] sm:$0xff]
    %v170 = vld [vmem:[%s2 + $0x230] sm:$0xff]
    %v171 = vld [vmem:[%s2 + $0x238] sm:$0xff]
    %v172 = vld [vmem:[%s2 + $0x240] sm:$0xff]
    %v173 = vld [vmem:[%s2 + $0x248] sm:$0xff]
    %v174 = vld [vmem:[%s2 + $0x250] sm:$0xff]
    %v175 = vld [vmem:[%s2 + $0x258] sm:$0xff]
    %v176 = vld [vmem:[%s2 + $0x260] sm:$0xff]
    %v177 = vld [vmem:[%s2 + $0x268] sm:$0xff]
    %v178 = vld [vmem:[%s2 + $0x270] sm:$0xff]
    %v179 = vld [vmem:[%s2 + $0x278] sm:$0xff]
    %v180 = vld [vmem:[%s2 + $0x280] sm:$0xff]
    %v181 = vld [vmem:[%s2 + $0x288] sm:$0xff]
    %v182 = vld [vmem:[%s2 + $0x290] sm:$0xff]
    %v183 = vld [vmem:[%s2 + $0x298] sm:$0xff]
    %v184 = vld [vmem:[%s2 + $0x2a0] sm:$0xff]
    %v185 = vld [vmem:[%s2 + $0x2a8] sm:$0xff]
    %v186 = vld [vmem:[%s2 + $0x2b0] sm:$0xff]
    %v187 = vld [vmem:[%s2 + $0x2b8] sm:$0xff]
    %v188 = vld [vmem:[%s2 + $0x2c0] sm:$0xff]
    %v189 = vld [vmem:[%s2 + $0x2c8] sm:$0xff]
    %v190 = vld [vmem:[%s2 + $0x2d0] sm:$0xff]
    %v191 = vld [vmem:[%s2 + $0x2d8] sm:$0xff]
    %v192 = vld [vmem:[%s2 + $0x2e0] sm:$0xff]
    %v193 = vld [vmem:[%s2 + $0x2e8] sm:$0xff]
    %v194 = vld [vmem:[%s2 + $0x2f0] sm:$0xff]
    %v195 = vld [vmem:[%s2 + $0x2f8] sm:$0xff]
    %v196 = vld [vmem:[%s2 + $0x300] sm:$0xff]
    %v197 = vld [vmem:[%s2 + $0x308] sm:$0xff]
    %v198 = vld [vmem:[%s2 + $0x310] sm:$0xff]
    %v199 = vld [vmem:[%s2 + $0x318] sm:$0xff]
    %v200 = vld [vmem:[%s2 + $0x320] sm:$0xff]
    %v201 = vld [vmem:[%s2 + $0x328] sm:$0xff]
    %v202 = vld [vmem:[%s2 + $0x330] sm:$0xff]
    %v203 = vld [vmem:[%s2 + $0x338] sm:$0xff]
    %v204 = vld [vmem:[%s2 + $0x340] sm:$0xff]
    %v205 = vld [vmem:[%s2 + $0x348] sm:$0xff]
    %v206 = vld [vmem:[%s2 + $0x350] sm:$0xff]
    %v207 = vld [vmem:[%s2 + $0x358] sm:$0xff]
    %v208 = vld [vmem:[%s2 + $0x360] sm:$0xff]
    %v209 = vld [vmem:[%s2 + $0x368] sm:$0xff]
    %v210 = vld [vmem:[%s2 + $0x370] sm:$0xff]
    %v211 = vld [vmem:[%s2 + $0x378] sm:$0xff]
    %v212 = vld [vmem:[%s2 + $0x380] sm:$0xff]
    %v213 = vld [vmem:[%s2 + $0x388] sm:$0xff]
    %v214 = vld [vmem:[%s2 + $0x390] sm:$0xff]
    %v215 = vld [vmem:[%s2 + $0x398] sm:$0xff]
    %v216 = vld [vmem:[%s2 + $0x3a0] sm:$0xff]
    %v217 = vld [vmem:[%s2 + $0x3a8] sm:$0xff]
    %v218 = vld [vmem:[%s2 + $0x3b0] sm:$0xff]
    %v219 = vld [vmem:[%s2 + $0x3b8] sm:$0xff]
    %v220 = vld [vmem:[%s2 + $0x3c0] sm:$0xff]
    %v221 = vld [vmem:[%s2 + $0x3c8] sm:$0xff]
    %v222 = vld [vmem:[%s2 + $0x3d0] sm:$0xff]
    %v223 = vld [vmem:[%s2 + $0x3d8] sm:$0xff]
    %v224 = vld [vmem:[%s2 + $0x3e0] sm:$0xff]
    %v225 = vld [vmem:[%s2 + $0x3e8] sm:$0xff]
    %v226 = vld [vmem:[%s2 + $0x3f0] sm:$0xff]
    %v227 = vld [vmem:[%s2 + $0x3f8] sm:$0xff]
    %v228 = vld [vmem:[%s2 + $0x400] sm:$0xff]
    %v229 = vld [vmem:[%s2 + $0x408] sm:$0xff]
    %v230 = vld [vmem:[%s2 + $0x410] sm:$0xff]
    %v231 = vld [vmem:[%s2 + $0x418] sm:$0xff]
    %v232 = vld [vmem:[%s2 + $0x420] sm:$0xff]
    %v233 = vld [vmem:[%s2 + $0x428] sm:$0xff]
    %v234 = vld [vmem:[%s2 + $0x430] sm:$0xff]
    %v235 = vld [vmem:[%s2 + $0x438] sm:$0xff]
    %v236 = vld [vmem:[%s2 + $0x440] sm:$0xff]
    %v237 = vld [vmem:[%s2 + $0x448] sm:$0xff]
    %v238 = vld [vmem:[%s2 + $0x450] sm:$0xff]
    %v239 = vld [vmem:[%s2 + $0x458] sm:$0xff]
    %v240 = vld [vmem:[%s2 + $0x460] sm:$0xff]
    %v241 = vld [vmem:[%s2 + $0x468] sm:$0xff]
    %v242 = vld [vmem:[%s2 + $0x470] sm:$0xff]
    %v243 = vld [vmem:[%s2 + $0x478] sm:$0xff]
    %v244 = vld [vmem:[%s2 + $0x480] sm:$0xff]
    %v245 = vld [vmem:[%s2 + $0x488] sm:$0xff]
    %v246 = vld [vmem:[%s2 + $0x490] sm:$0xff]
    %v247 = vld [vmem:[%s2 + $0x498] sm:$0xff]
    %v248 = vld [vmem:[%s2 + $0x4a0] sm:$0xff]
    %v249 = vld [vmem:[%s2 + $0x4a8] sm:$0xff]
    %v250 = vld [vmem:[%s2 + $0x4b0] sm:$0xff]
    %v251 = vld [vmem:[%s2 + $0x4b8] sm:$0xff]
    %v252 = vld [vmem:[%s2 + $0x4c0] sm:$0xff]
    %v253 = vld [vmem:[%s2 + $0x4c8] sm:$0xff]
    %v254 = vld [vmem:[%s2 + $0x4d0] sm:$0xff]
    %v255 = vld [vmem:[%s2 + $0x4d8] sm:$0xff]
    %v256 = vld [vmem:[%s2 + $0x4e0] sm:$0xff]
    %v257 = vld [vmem:[%s2 + $0x4e8] sm:$0xff]
    %v258 = vld [vmem:[%s2 + $0x4f0] sm:$0xff]
    %v259 = vld [vmem:[%s2 + $0x4f8] sm:$0xff]
    %v260 = vld [vmem:[%s2 + $0x500] sm:$0xff]
    %v261 = vld [vmem:[%s2 + $0x508] sm:$0xff]
    %v262 = vld [vmem:[%s2 + $0x510] sm:$0xff]
    %v263 = vld [vmem:[%s2 + $0x518] sm:$0xff]
    %v264 = vld [vmem:[%s2 + $0x520] sm:$0xff]
    %v265 = vld [vmem:[%s2 + $0x528] sm:$0xff]
    %v266 = vld [vmem:[%s2 + $0x530] sm:$0xff]
    %v267 = vld [vmem:[%s2 + $0x538] sm:$0xff]
    %v268 = vld [vmem:[%s2 + $0x540] sm:$0xff]
    %v269 = vld [vmem:[%s2 + $0x548] sm:$0xff]
    %v270 = vld [vmem:[%s2 + $0x550] sm:$0xff]
    %v271 = vld [vmem:[%s2 + $0x558] sm:$0xff]
    %v272 = vld [vmem:[%s2 + $0x560] sm:$0xff]
    %v273 = vld [vmem:[%s2 + $0x568] sm:$0xff]
    %v274 = vld [vmem:[%s2 + $0x570] sm:$0xff]
    %v275 = vld [vmem:[%s2 + $0x578] sm:$0xff]
    %v276 = vld [vmem:[%s2 + $0x580] sm:$0xff]
    %v277 = vld [vmem:[%s2 + $0x588] sm:$0xff]
    %v278 = vld [vmem:[%s2 + $0x590] sm:$0xff]
    %v279 = vld [vmem:[%s2 + $0x598] sm:$0xff]
    %v280 = vld [vmem:[%s2 + $0x5a0] sm:$0xff]
    %v281 = vld [vmem:[%s2 + $0x5a8] sm:$0xff]
    %v282 = vld [vmem:[%s2 + $0x5b0] sm:$0xff]
    %v283 = vld [vmem:[%s2 + $0x5b8] sm:$0xff]
    %v284 = vld [vmem:[%s2 + $0x5c0] sm:$0xff]
    %v285 = vld [vmem:[%s2 + $0x5c8] sm:$0xff]
    %v286 = vld [vmem:[%s2 + $0x5d0] sm:$0xff]
    %v287 = vld [vmem:[%s2 + $0x5d8] sm:$0xff]
    %v288 = vld [vmem:[%s2 + $0x5e0] sm:$0xff]
    %v289 = vld [vmem:[%s2 + $0x5e8] sm:$0xff]
    %v290 = vld [vmem:[%s2 + $0x5f0] sm:$0xff]
    %v291 = vld [vmem:[%s2 + $0x5f8] sm:$0xff]
    %v292 = vld [vmem:[%s2 + $0x600] sm:$0x1]
    %v293 = vld [vmem:[%s2 + $0x608] sm:$0x1]
    %v294 = vld [vmem:[%s2 + $0x610] sm:$0x1]
    %v295 = vld [vmem:[%s2 + $0x618] sm:$0x1]
    %vm296 = vcmask 7168
    %v298 = vsel %vm296, 1.0, 0
    %vm300 = vcmask 1040384
    %v302 = vsel %vm300, %v292, 0
    %v305 = vsel %vm300, %v293, 0
    %v308 = vsel %vm300, %v294, 0
    %v311 = vsel %vm300, %v295, 0
    %313 = vmatprep.subr.mxu0 %v101
    %314 = vmatpush1.msra.mxu0 %v100
    %315 = vmatprep.subr.mxu0 %v105
    %316 = vmatpush1.msra.mxu0 %v104
    %317 = vmatprep.subr.mxu0 %v109
    %318 = vmatpush1.msra.mxu0 %v108
    %319 = vmatprep.subr.mxu0 %v113
    %320 = vmatpush1.msra.mxu0 %v112
    %321 = vmatprep.subr.mxu0 %v117
    %322 = vmatpush1.msra.mxu0 %v116
    %323 = vmatprep.subr.mxu0 %v121
    %324 = vmatpush1.msra.mxu0 %v120
    %325 = vmatprep.subr.mxu0 %v125
    %326 = vmatpush1.msra.mxu0 %v124
    %327 = vmatprep.subr.mxu0 %v129
    %328 = vmatpush1.msra.mxu0 %v128
    %329 = vmatprep.subr.mxu0 %v133
    %330 = vmatpush1.msra.mxu0 %v132
    %331 = vmatprep.subr.mxu0 %v137
    %332 = vmatpush1.msra.mxu0 %v136
    %333 = vmatprep.subr.mxu0 %v141
    %334 = vmatpush1.msra.mxu0 %v140
    %335 = vmatprep.subr.mxu0 %v145
    %336 = vmatpush1.msra.mxu0 %v144
    %337 = vmatprep.subr.mxu0 %v149
    %338 = vmatpush1.msra.mxu0 %v148
    %339 = vmatprep.subr.mxu0 %v153
    %340 = vmatpush1.msra.mxu0 %v152
    %341 = vmatprep.subr.mxu0 %v157
    %342 = vmatpush1.msra.mxu0 %v156
    %343 = vmatprep.subr.mxu0 %v161
    %344 = vmatpush1.msra.mxu0 %v160
    %345 = vmatprep.subr.mxu0 %v165
    %346 = vmatpush1.msra.mxu0 %v164
    %347 = vmatprep.subr.mxu0 %v169
    %348 = vmatpush1.msra.mxu0 %v168
    %349 = vmatprep.subr.mxu0 %v173
    %350 = vmatpush1.msra.mxu0 %v172
    %351 = vmatprep.subr.mxu0 %v177
    %352 = vmatpush1.msra.mxu0 %v176
    %353 = vmatprep.subr.mxu0 %v181
    %354 = vmatpush1.msra.mxu0 %v180
    %355 = vmatprep.subr.mxu0 %v185
    %356 = vmatpush1.msra.mxu0 %v184
    %357 = vmatprep.subr.mxu0 %v189
    %358 = vmatpush1.msra.mxu0 %v188
    %359 = vmatprep.subr.mxu0 %v193
    %360 = vmatpush1.msra.mxu0 %v192
    %361 = vmatprep.subr.mxu0 %v197
    %362 = vmatpush1.msra.mxu0 %v196
    %363 = vmatprep.subr.mxu0 %v201
    %364 = vmatpush1.msra.mxu0 %v200
    %365 = vmatprep.subr.mxu0 %v205
    %366 = vmatpush1.msra.mxu0 %v204
    %367 = vmatprep.subr.mxu0 %v209
    %368 = vmatpush1.msra.mxu0 %v208
    %369 = vmatprep.subr.mxu0 %v213
    %370 = vmatpush1.msra.mxu0 %v212
    %371 = vmatprep.subr.mxu0 %v217
    %372 = vmatpush1.msra.mxu0 %v216
    %373 = vmatprep.subr.mxu0 %v221
    %374 = vmatpush1.msra.mxu0 %v220
    %375 = vmatprep.subr.mxu0 %v225
    %376 = vmatpush1.msra.mxu0 %v224
    %377 = vmatprep.mubr.f32.mxu0 %v91
    %378 = vmatmul.mubr.f32.gmra.mrb[0].mxu0 %v84
    %v379 = vpop.f32.mrb[0].mxu0
    %v380 = vadd.f32 0.0, %v379
    %v381 = vpop.f32.mrb[0].mxu0
    %v382 = vadd.f32 0.0, %v381
    %383 = vmatprep.mubr.f32.mxu0 %v90
    %384 = vmatmul.mubr.f32.gmra.mrb[0].mxu0 %v85
    %v385 = vpop.f32.mrb[0].mxu0
    %v386 = vadd.f32 0.0, %v385
    %v387 = vpop.f32.mrb[0].mxu0
    %v388 = vadd.f32 0.0, %v387
    %389 = vdwg.mxu0
    %390 = vmatprep.subr.mxu0 %v229
    %391 = vmatpush1.msra.mxu0 %v228
    %392 = vmatprep.subr.mxu0 %v233
    %393 = vmatpush1.msra.mxu0 %v232
    %394 = vmatprep.subr.mxu0 %v237
    %395 = vmatpush1.msra.mxu0 %v236
    %396 = vmatprep.subr.mxu0 %v241
    %397 = vmatpush1.msra.mxu0 %v240
    %398 = vmatprep.subr.mxu0 %v245
    %399 = vmatpush1.msra.mxu0 %v244
    %400 = vmatprep.subr.mxu0 %v249
    %401 = vmatpush1.msra.mxu0 %v248
    %402 = vmatprep.subr.mxu0 %v253
    %403 = vmatpush1.msra.mxu0 %v252
    %404 = vmatprep.subr.mxu0 %v257
    %405 = vmatpush1.msra.mxu0 %v256
    %406 = vmatprep.subr.mxu0 %v261
    %407 = vmatpush1.msra.mxu0 %v260
    %408 = vmatprep.subr.mxu0 %v265
    %409 = vmatpush1.msra.mxu0 %v264
    %410 = vmatprep.subr.mxu0 %v269
    %411 = vmatpush1.msra.mxu0 %v268
    %412 = vmatprep.subr.mxu0 %v273
    %413 = vmatpush1.msra.mxu0 %v272
    %414 = vmatprep.subr.mxu0 %v277
    %415 = vmatpush1.msra.mxu0 %v276
    %416 = vmatprep.subr.mxu0 %v281
    %417 = vmatpush1.msra.mxu0 %v280
    %418 = vmatprep.subr.mxu0 %v285
    %419 = vmatpush1.msra.mxu0 %v284
    %420 = vmatprep.subr.mxu0 %v289
    %421 = vmatpush1.msra.mxu0 %v288
    %422 = vmatprep.subr.mxu0 %v305
    %423 = vmatpush1.msra.mxu0 %v302
    %424 = vmatprep.subr.mxu0 0.0
    %425 = vmatpush1.msra.mxu0 0.0
    %426 = vmatprep.subr.mxu0 0.0
    %427 = vmatpush1.msra.mxu0 0.0
    %428 = vmatprep.subr.mxu0 0.0
    %429 = vmatpush1.msra.mxu0 0.0
    %430 = vmatprep.subr.mxu0 0.0
    %431 = vmatpush1.msra.mxu0 0.0
    %432 = vmatprep.subr.mxu0 0.0
    %433 = vmatpush1.msra.mxu0 0.0
    %434 = vmatprep.subr.mxu0 0.0
    %435 = vmatpush1.msra.mxu0 0.0
    %436 = vmatprep.subr.mxu0 0.0
    %437 = vmatpush1.msra.mxu0 0.0
    %438 = vmatprep.subr.mxu0 0.0
    %439 = vmatpush1.msra.mxu0 0.0
    %440 = vmatprep.subr.mxu0 0.0
    %441 = vmatpush1.msra.mxu0 0.0
    %442 = vmatprep.subr.mxu0 0.0
    %443 = vmatpush1.msra.mxu0 0.0
    %444 = vmatprep.subr.mxu0 0.0
    %445 = vmatpush1.msra.mxu0 0.0
    %446 = vmatprep.subr.mxu0 0.0
    %447 = vmatpush1.msra.mxu0 0.0
    %448 = vmatprep.subr.mxu0 0.0
    %449 = vmatpush1.msra.mxu0 0.0
    %450 = vmatprep.subr.mxu0 0.0
    %451 = vmatpush1.msra.mxu0 0.0
    %452 = vmatprep.subr.mxu0 0.0
    %453 = vmatpush1.msra.mxu0 0.0
    %454 = vmatprep.mubr.f32.mxu0 %v298
    %455 = vmatmul.mubr.f32.gmra.mrb[0].mxu0 %v97
    %v456 = vpop.f32.mrb[0].mxu0
    %v457 = vadd.f32 %v380, %v456
    %v458 = vpop.f32.mrb[0].mxu0
    %v459 = vadd.f32 %v382, %v458
    %460 = vmatprep.mubr.f32.mxu0 %v298
    %461 = vmatmul.mubr.f32.gmra.mrb[0].mxu0 %v96
    %v462 = vpop.f32.mrb[0].mxu0
    %v463 = vadd.f32 %v386, %v462
    %v464 = vpop.f32.mrb[0].mxu0
    %v465 = vadd.f32 %v388, %v464
    %466 = vdwg.mxu0
    %467 = vmatprep.subr.mxu0 %v103
    %468 = vmatpush1.msra.mxu0 %v102
    %469 = vmatprep.subr.mxu0 %v107
    %470 = vmatpush1.msra.mxu0 %v106
    %471 = vmatprep.subr.mxu0 %v111
    %472 = vmatpush1.msra.mxu0 %v110
    %473 = vmatprep.subr.mxu0 %v115
    %474 = vmatpush1.msra.mxu0 %v114
    %475 = vmatprep.subr.mxu0 %v119
    %476 = vmatpush1.msra.mxu0 %v118
    %477 = vmatprep.subr.mxu0 %v123
    %478 = vmatpush1.msra.mxu0 %v122
    %479 = vmatprep.subr.mxu0 %v127
    %480 = vmatpush1.msra.mxu0 %v126
    %481 = vmatprep.subr.mxu0 %v131
    %482 = vmatpush1.msra.mxu0 %v130
    %483 = vmatprep.subr.mxu0 %v135
    %484 = vmatpush1.msra.mxu0 %v134
    %485 = vmatprep.subr.mxu0 %v139
    %486 = vmatpush1.msra.mxu0 %v138
    %487 = vmatprep.subr.mxu0 %v143
    %488 = vmatpush1.msra.mxu0 %v142
    %489 = vmatprep.subr.mxu0 %v147
    %490 = vmatpush1.msra.mxu0 %v146
    %491 = vmatprep.subr.mxu0 %v151
    %492 = vmatpush1.msra.mxu0 %v150
    %493 = vmatprep.subr.mxu0 %v155
    %494 = vmatpush1.msra.mxu0 %v154
    %495 = vmatprep.subr.mxu0 %v159
    %496 = vmatpush1.msra.mxu0 %v158
    %497 = vmatprep.subr.mxu0 %v163
    %498 = vmatpush1.msra.mxu0 %v162
    %499 = vmatprep.subr.mxu0 %v167
    %500 = vmatpush1.msra.mxu0 %v166
    %501 = vmatprep.subr.mxu0 %v171
    %502 = vmatpush1.msra.mxu0 %v170
    %503 = vmatprep.subr.mxu0 %v175
    %504 = vmatpush1.msra.mxu0 %v174
    %505 = vmatprep.subr.mxu0 %v179
    %506 = vmatpush1.msra.mxu0 %v178
    %507 = vmatprep.subr.mxu0 %v183
    %508 = vmatpush1.msra.mxu0 %v182
    %509 = vmatprep.subr.mxu0 %v187
    %510 = vmatpush1.msra.mxu0 %v186
    %511 = vmatprep.subr.mxu0 %v191
    %512 = vmatpush1.msra.mxu0 %v190
    %513 = vmatprep.subr.mxu0 %v195
    %514 = vmatpush1.msra.mxu0 %v194
    %515 = vmatprep.subr.mxu0 %v199
    %516 = vmatpush1.msra.mxu0 %v198
    %517 = vmatprep.subr.mxu0 %v203
    %518 = vmatpush1.msra.mxu0 %v202
    %519 = vmatprep.subr.mxu0 %v207
    %520 = vmatpush1.msra.mxu0 %v206
    %521 = vmatprep.subr.mxu0 %v211
    %522 = vmatpush1.msra.mxu0 %v210
    %523 = vmatprep.subr.mxu0 %v215
    %524 = vmatpush1.msra.mxu0 %v214
    %525 = vmatprep.subr.mxu0 %v219
    %526 = vmatpush1.msra.mxu0 %v218
    %527 = vmatprep.subr.mxu0 %v223
    %528 = vmatpush1.msra.mxu0 %v222
    %529 = vmatprep.subr.mxu0 %v227
    %530 = vmatpush1.msra.mxu0 %v226
    %531 = vmatprep.mubr.f32.mxu0 %v91
    %532 = vmatmul.mubr.f32.gmra.mrb[0].mxu0 %v84
    %v533 = vpop.f32.mrb[0].mxu0
    %v534 = vadd.f32 0.0, %v533
    %v535 = vpop.f32.mrb[0].mxu0
    %v536 = vadd.f32 0.0, %v535
    %537 = vmatprep.mubr.f32.mxu0 %v90
    %538 = vmatmul.mubr.f32.gmra.mrb[0].mxu0 %v85
    %v539 = vpop.f32.mrb[0].mxu0
    %v540 = vadd.f32 0.0, %v539
    %v541 = vpop.f32.mrb[0].mxu0
    %v542 = vadd.f32 0.0, %v541
    %543 = vdwg.mxu0
    %544 = vmatprep.subr.mxu0 %v231
    %545 = vmatpush1.msra.mxu0 %v230
    %546 = vmatprep.subr.mxu0 %v235
    %547 = vmatpush1.msra.mxu0 %v234
    %548 = vmatprep.subr.mxu0 %v239
    %549 = vmatpush1.msra.mxu0 %v238
    %550 = vmatprep.subr.mxu0 %v243
    %551 = vmatpush1.msra.mxu0 %v242
    %552 = vmatprep.subr.mxu0 %v247
    %553 = vmatpush1.msra.mxu0 %v246
    %554 = vmatprep.subr.mxu0 %v251
    %555 = vmatpush1.msra.mxu0 %v250
    %556 = vmatprep.subr.mxu0 %v255
    %557 = vmatpush1.msra.mxu0 %v254
    %558 = vmatprep.subr.mxu0 %v259
    %559 = vmatpush1.msra.mxu0 %v258
    %560 = vmatprep.subr.mxu0 %v263
    %561 = vmatpush1.msra.mxu0 %v262
    %562 = vmatprep.subr.mxu0 %v267
    %563 = vmatpush1.msra.mxu0 %v266
    %564 = vmatprep.subr.mxu0 %v271
    %565 = vmatpush1.msra.mxu0 %v270
    %566 = vmatprep.subr.mxu0 %v275
    %567 = vmatpush1.msra.mxu0 %v274
    %568 = vmatprep.subr.mxu0 %v279
    %569 = vmatpush1.msra.mxu0 %v278
    %570 = vmatprep.subr.mxu0 %v283
    %571 = vmatpush1.msra.mxu0 %v282
    %572 = vmatprep.subr.mxu0 %v287
    %573 = vmatpush1.msra.mxu0 %v286
    %574 = vmatprep.subr.mxu0 %v291
    %575 = vmatpush1.msra.mxu0 %v290
    %576 = vmatprep.subr.mxu0 %v311
    %577 = vmatpush1.msra.mxu0 %v308
    %578 = vmatprep.subr.mxu0 0.0
    %579 = vmatpush1.msra.mxu0 0.0
    %580 = vmatprep.subr.mxu0 0.0
    %581 = vmatpush1.msra.mxu0 0.0
    %582 = vmatprep.subr.mxu0 0.0
    %583 = vmatpush1.msra.mxu0 0.0
    %584 = vmatprep.subr.mxu0 0.0
    %585 = vmatpush1.msra.mxu0 0.0
    %586 = vmatprep.subr.mxu0 0.0
    %587 = vmatpush1.msra.mxu0 0.0
    %588 = vmatprep.subr.mxu0 0.0
    %589 = vmatpush1.msra.mxu0 0.0
    %590 = vmatprep.subr.mxu0 0.0
    %591 = vmatpush1.msra.mxu0 0.0
    %592 = vmatprep.subr.mxu0 0.0
    %593 = vmatpush1.msra.mxu0 0.0
    %594 = vmatprep.subr.mxu0 0.0
    %595 = vmatpush1.msra.mxu0 0.0
    %596 = vmatprep.subr.mxu0 0.0
    %597 = vmatpush1.msra.mxu0 0.0
    %598 = vmatprep.subr.mxu0 0.0
    %599 = vmatpush1.msra.mxu0 0.0
    %600 = vmatprep.subr.mxu0 0.0
    %601 = vmatpush1.msra.mxu0 0.0
    %602 = vmatprep.subr.mxu0 0.0
    %603 = vmatpush1.msra.mxu0 0.0
    %604 = vmatprep.subr.mxu0 0.0
    %605 = vmatpush1.msra.mxu0 0.0
    %606 = vmatprep.subr.mxu0 0.0
    %607 = vmatpush1.msra.mxu0 0.0
    %608 = vmatprep.mubr.f32.mxu0 %v298
    %609 = vmatmul.mubr.f32.gmra.mrb[0].mxu0 %v97
    %v610 = vpop.f32.mrb[0].mxu0
    %v611 = vadd.f32 %v534, %v610
    %v612 = vpop.f32.mrb[0].mxu0
    %v613 = vadd.f32 %v536, %v612
    %614 = vmatprep.mubr.f32.mxu0 %v298
    %615 = vmatmul.mubr.f32.gmra.mrb[0].mxu0 %v96
    %v616 = vpop.f32.mrb[0].mxu0
    %v617 = vadd.f32 %v540, %v616
    %v618 = vpop.f32.mrb[0].mxu0
    %v619 = vadd.f32 %v542, %v618
    %620 = vdwg.mxu0
    %v621 = vmax.f32 %v457, 0.0
    %v622 = vmax.f32 %v459, 0.0
    %v623 = vmax.f32 %v611, 0.0
    %v624 = vmax.f32 %v613, 0.0
    %v625 = vmax.f32 %v463, 0.0
    %v626 = vmax.f32 %v465, 0.0
    %v627 = vmax.f32 %v617, 0.0
    %v628 = vmax.f32 %v619, 0.0
    %v637 = vrot.slane %v621, 1
    %v638 = vrot.slane %v625, 1
    %v639 = vsel %vm88, %v637, %v638
    %v640 = vrot.slane %v622, 1
    %v641 = vrot.slane %v626, 1
    %v642 = vsel %vm88, %v640, %v641
    %v643 = vrot.slane %v623, 1
    %v644 = vrot.slane %v627, 1
    %v645 = vsel %vm88, %v643, %v644
    %v646 = vrot.slane %v624, 1
    %v647 = vrot.slane %v628, 1
    %v648 = vsel %vm88, %v646, %v647
    %649 = vrot.lane.b32.xlu0 %v639, 64
    %v650 = vpop.permute.xlu0 %649
    %651 = vrot.lane.b32.xlu0 %v642, 64
    %v652 = vpop.permute.xlu0 %651
    %653 = vrot.lane.b32.xlu0 %v645, 64
    %v654 = vpop.permute.xlu0 %653
    %655 = vrot.lane.b32.xlu0 %v648, 64
    %v656 = vpop.permute.xlu0 %655
    %657 = vrot.lane.b32.xlu0 %v638, 64
    %v658 = vpop.permute.xlu0 %657
    %659 = vrot.lane.b32.xlu0 %v641, 64
    %v660 = vpop.permute.xlu0 %659
    %661 = vrot.lane.b32.xlu0 %v644, 64
    %v662 = vpop.permute.xlu0 %661
    %663 = vrot.lane.b32.xlu0 %v647, 64
    %v664 = vpop.permute.xlu0 %663
    %vm665 = vcmask 523264
    %v666 = vsel %vm665, %v650, %v652
    %v667 = vsel %vm665, %v652, %v654
    %v668 = vsel %vm665, %v654, %v656
    %v669 = vsel %vm665, %v658, %v660
    %v670 = vsel %vm665, %v660, %v662
    %v671 = vsel %vm665, %v662, %v664
    %v680 = vrot.slane %v621, 2
    %v681 = vrot.slane %v625, 2
    %v682 = vsel %vm94, %v680, %v681
    %v683 = vrot.slane %v622, 2
    %v684 = vrot.slane %v626, 2
    %v685 = vsel %vm94, %v683, %v684
    %v686 = vrot.slane %v623, 2
    %v687 = vrot.slane %v627, 2
    %v688 = vsel %vm94, %v686, %v687
    %v689 = vrot.slane %v624, 2
    %v690 = vrot.slane %v628, 2
    %v691 = vsel %vm94, %v689, %v690
    %v700 = vsel %vm665, %v624, %v650
    %v701 = vsel %vm665, %v628, %v658
    %v702 = vsel %vm665, %v691, 1.0
    %v703 = vsel %vm665, %v690, 1.0
    %v704 = vld [vmem:[#allocation7] sm:$0xff]
    %v705 = vld [vmem:[#allocation7 + $0x8] sm:$0xff]
    %v706 = vld [vmem:[#allocation7 + $0x10] sm:$0xff]
    %v707 = vld [vmem:[#allocation7 + $0x18] sm:$0xff]
    %v708 = vld [vmem:[#allocation7 + $0x20] sm:$0xff]
    %v709 = vld [vmem:[#allocation7 + $0x28] sm:$0xff]
    %v710 = vld [vmem:[#allocation7 + $0x30] sm:$0xff]
    %v711 = vld [vmem:[#allocation7 + $0x38] sm:$0xff]
    %v712 = vld [vmem:[#allocation7 + $0x40] sm:$0xff]
    %v713 = vld [vmem:[#allocation7 + $0x48] sm:$0xff]
    %v714 = vld [vmem:[#allocation7 + $0x50] sm:$0xff]
    %v715 = vld [vmem:[#allocation7 + $0x58] sm:$0xff]
    %v716 = vld [vmem:[#allocation7 + $0x60] sm:$0xff]
    %v717 = vld [vmem:[#allocation7 + $0x68] sm:$0xff]
    %v718 = vld [vmem:[#allocation7 + $0x70] sm:$0xff]
    %v719 = vld [vmem:[#allocation7 + $0x78] sm:$0xff]
    %v720 = vld [vmem:[#allocation7 + $0x80] sm:$0xff]
    %v721 = vld [vmem:[#allocation7 + $0x88] sm:$0xff]
    %v722 = vld [vmem:[#allocation7 + $0x90] sm:$0xff]
    %v723 = vld [vmem:[#allocation7 + $0x98] sm:$0xff]
    %v724 = vld [vmem:[#allocation7 + $0xa0] sm:$0xff]
    %v725 = vld [vmem:[#allocation7 + $0xa8] sm:$0xff]
    %v726 = vld [vmem:[#allocation7 + $0xb0] sm:$0xff]
    %v727 = vld [vmem:[#allocation7 + $0xb8] sm:$0xff]
    %v728 = vld [vmem:[#allocation7 + $0xc0] sm:$0xff]
    %v729 = vld [vmem:[#allocation7 + $0xc8] sm:$0xff]
    %v730 = vld [vmem:[#allocation7 + $0xd0] sm:$0xff]
    %v731 = vld [vmem:[#allocation7 + $0xd8] sm:$0xff]
    %v732 = vld [vmem:[#allocation7 + $0xe0] sm:$0xff]
    %v733 = vld [vmem:[#allocation7 + $0xe8] sm:$0xff]
    %v734 = vld [vmem:[#allocation7 + $0xf0] sm:$0xff]
    %v735 = vld [vmem:[#allocation7 + $0xf8] sm:$0xff]
    %v736 = vld [vmem:[#allocation7 + $0x100] sm:$0xff]
    %v737 = vld [vmem:[#allocation7 + $0x108] sm:$0xff]
    %v738 = vld [vmem:[#allocation7 + $0x110] sm:$0xff]
    %v739 = vld [vmem:[#allocation7 + $0x118] sm:$0xff]
    %v740 = vld [vmem:[#allocation7 + $0x120] sm:$0xff]
    %v741 = vld [vmem:[#allocation7 + $0x128] sm:$0xff]
    %v742 = vld [vmem:[#allocation7 + $0x130] sm:$0xff]
    %v743 = vld [vmem:[#allocation7 + $0x138] sm:$0xff]
    %v744 = vld [vmem:[#allocation7 + $0x140] sm:$0xff]
    %v745 = vld [vmem:[#allocation7 + $0x148] sm:$0xff]
    %v746 = vld [vmem:[#allocation7 + $0x150] sm:$0xff]
    %v747 = vld [vmem:[#allocation7 + $0x158] sm:$0xff]
    %v748 = vld [vmem:[#allocation7 + $0x160] sm:$0xff]
    %v749 = vld [vmem:[#allocation7 + $0x168] sm:$0xff]
    %v750 = vld [vmem:[#allocation7 + $0x170] sm:$0xff]
    %v751 = vld [vmem:[#allocation7 + $0x178] sm:$0xff]
    %v752 = vld [vmem:[#allocation7 + $0x180] sm:$0xff]
    %v753 = vld [vmem:[#allocation7 + $0x188] sm:$0xff]
    %v754 = vld [vmem:[#allocation7 + $0x190] sm:$0xff]
    %v755 = vld [vmem:[#allocation7 + $0x198] sm:$0xff]
    %v756 = vld [vmem:[#allocation7 + $0x1a0] sm:$0xff]
    %v757 = vld [vmem:[#allocation7 + $0x1a8] sm:$0xff]
    %v758 = vld [vmem:[#allocation7 + $0x1b0] sm:$0xff]
    %v759 = vld [vmem:[#allocation7 + $0x1b8] sm:$0xff]
    %v760 = vld [vmem:[#allocation7 + $0x1c0] sm:$0xff]
    %v761 = vld [vmem:[#allocation7 + $0x1c8] sm:$0xff]
    %v762 = vld [vmem:[#allocation7 + $0x1d0] sm:$0xff]
    %v763 = vld [vmem:[#allocation7 + $0x1d8] sm:$0xff]
    %v764 = vld [vmem:[#allocation7 + $0x1e0] sm:$0xff]
    %v765 = vld [vmem:[#allocation7 + $0x1e8] sm:$0xff]
    %v766 = vld [vmem:[#allocation7 + $0x1f0] sm:$0xff]
    %v767 = vld [vmem:[#allocation7 + $0x1f8] sm:$0xff]
    %v768 = vld [vmem:[#allocation7 + $0x200] sm:$0xff]
    %v769 = vld [vmem:[#allocation7 + $0x208] sm:$0xff]
    %v770 = vld [vmem:[#allocation7 + $0x210] sm:$0xff]
    %v771 = vld [vmem:[#allocation7 + $0x218] sm:$0xff]
    %v772 = vld [vmem:[#allocation7 + $0x220] sm:$0xff]
    %v773 = vld [vmem:[#allocation7 + $0x228] sm:$0xff]
    %v774 = vld [vmem:[#allocation7 + $0x230] sm:$0xff]
    %v775 = vld [vmem:[#allocation7 + $0x238] sm:$0xff]
    %v776 = vld [vmem:[#allocation7 + $0x240] sm:$0xff]
    %v777 = vld [vmem:[#allocation7 + $0x248] sm:$0xff]
    %v778 = vld [vmem:[#allocation7 + $0x250] sm:$0xff]
    %v779 = vld [vmem:[#allocation7 + $0x258] sm:$0xff]
    %v780 = vld [vmem:[#allocation7 + $0x260] sm:$0xff]
    %v781 = vld [vmem:[#allocation7 + $0x268] sm:$0xff]
    %v782 = vld [vmem:[#allocation7 + $0x270] sm:$0xff]
    %v783 = vld [vmem:[#allocation7 + $0x278] sm:$0xff]
    %v784 = vld [vmem:[#allocation7 + $0x280] sm:$0xff]
    %v785 = vld [vmem:[#allocation7 + $0x288] sm:$0xff]
    %v786 = vld [vmem:[#allocation7 + $0x290] sm:$0xff]
    %v787 = vld [vmem:[#allocation7 + $0x298] sm:$0xff]
    %v788 = vld [vmem:[#allocation7 + $0x2a0] sm:$0xff]
    %v789 = vld [vmem:[#allocation7 + $0x2a8] sm:$0xff]
    %v790 = vld [vmem:[#allocation7 + $0x2b0] sm:$0xff]
    %v791 = vld [vmem:[#allocation7 + $0x2b8] sm:$0xff]
    %v792 = vld [vmem:[#allocation7 + $0x2c0] sm:$0xff]
    %v793 = vld [vmem:[#allocation7 + $0x2c8] sm:$0xff]
    %v794 = vld [vmem:[#allocation7 + $0x2d0] sm:$0xff]
    %v795 = vld [vmem:[#allocation7 + $0x2d8] sm:$0xff]
    %v796 = vld [vmem:[#allocation7 + $0x2e0] sm:$0xff]
    %v797 = vld [vmem:[#allocation7 + $0x2e8] sm:$0xff]
    %v798 = vld [vmem:[#allocation7 + $0x2f0] sm:$0xff]
    %v799 = vld [vmem:[#allocation7 + $0x2f8] sm:$0xff]
    %v800 = vld [vmem:[#allocation7 + $0x300] sm:$0xff]
    %v801 = vld [vmem:[#allocation7 + $0x308] sm:$0xff]
    %v802 = vld [vmem:[#allocation7 + $0x310] sm:$0xff]
    %v803 = vld [vmem:[#allocation7 + $0x318] sm:$0xff]
    %v804 = vld [vmem:[#allocation7 + $0x320] sm:$0xff]
    %v805 = vld [vmem:[#allocation7 + $0x328] sm:$0xff]
    %v806 = vld [vmem:[#allocation7 + $0x330] sm:$0xff]
    %v807 = vld [vmem:[#allocation7 + $0x338] sm:$0xff]
    %v808 = vld [vmem:[#allocation7 + $0x340] sm:$0xff]
    %v809 = vld [vmem:[#allocation7 + $0x348] sm:$0xff]
    %v810 = vld [vmem:[#allocation7 + $0x350] sm:$0xff]
    %v811 = vld [vmem:[#allocation7 + $0x358] sm:$0xff]
    %v812 = vld [vmem:[#allocation7 + $0x360] sm:$0xff]
    %v813 = vld [vmem:[#allocation7 + $0x368] sm:$0xff]
    %v814 = vld [vmem:[#allocation7 + $0x370] sm:$0xff]
    %v815 = vld [vmem:[#allocation7 + $0x378] sm:$0xff]
    %v816 = vld [vmem:[#allocation7 + $0x380] sm:$0xff]
    %v817 = vld [vmem:[#allocation7 + $0x388] sm:$0xff]
    %v818 = vld [vmem:[#allocation7 + $0x390] sm:$0xff]
    %v819 = vld [vmem:[#allocation7 + $0x398] sm:$0xff]
    %v820 = vld [vmem:[#allocation7 + $0x3a0] sm:$0xff]
    %v821 = vld [vmem:[#allocation7 + $0x3a8] sm:$0xff]
    %v822 = vld [vmem:[#allocation7 + $0x3b0] sm:$0xff]
    %v823 = vld [vmem:[#allocation7 + $0x3b8] sm:$0xff]
    %v824 = vld [vmem:[#allocation7 + $0x3c0] sm:$0xff]
    %v825 = vld [vmem:[#allocation7 + $0x3c8] sm:$0xff]
    %v826 = vld [vmem:[#allocation7 + $0x3d0] sm:$0xff]
    %v827 = vld [vmem:[#allocation7 + $0x3d8] sm:$0xff]
    %v828 = vld [vmem:[#allocation7 + $0x3e0] sm:$0xff]
    %v829 = vld [vmem:[#allocation7 + $0x3e8] sm:$0xff]
    %v830 = vld [vmem:[#allocation7 + $0x3f0] sm:$0xff]
    %v831 = vld [vmem:[#allocation7 + $0x3f8] sm:$0xff]
    %v832 = vld [vmem:[#allocation7 + $0x400] sm:$0xff]
    %v833 = vld [vmem:[#allocation7 + $0x408] sm:$0xff]
    %v834 = vld [vmem:[#allocation7 + $0x410] sm:$0xff]
    %v835 = vld [vmem:[#allocation7 + $0x418] sm:$0xff]
    %v836 = vld [vmem:[#allocation7 + $0x420] sm:$0xff]
    %v837 = vld [vmem:[#allocation7 + $0x428] sm:$0xff]
    %v838 = vld [vmem:[#allocation7 + $0x430] sm:$0xff]
    %v839 = vld [vmem:[#allocation7 + $0x438] sm:$0xff]
    %v840 = vld [vmem:[#allocation7 + $0x440] sm:$0xff]
    %v841 = vld [vmem:[#allocation7 + $0x448] sm:$0xff]
    %v842 = vld [vmem:[#allocation7 + $0x450] sm:$0xff]
    %v843 = vld [vmem:[#allocation7 + $0x458] sm:$0xff]
    %v844 = vld [vmem:[#allocation7 + $0x460] sm:$0xff]
    %v845 = vld [vmem:[#allocation7 + $0x468] sm:$0xff]
    %v846 = vld [vmem:[#allocation7 + $0x470] sm:$0xff]
    %v847 = vld [vmem:[#allocation7 + $0x478] sm:$0xff]
    %v848 = vld [vmem:[#allocation7 + $0x480] sm:$0xff]
    %v849 = vld [vmem:[#allocation7 + $0x488] sm:$0xff]
    %v850 = vld [vmem:[#allocation7 + $0x490] sm:$0xff]
    %v851 = vld [vmem:[#allocation7 + $0x498] sm:$0xff]
    %v852 = vld [vmem:[#allocation7 + $0x4a0] sm:$0xff]
    %v853 = vld [vmem:[#allocation7 + $0x4a8] sm:$0xff]
    %v854 = vld [vmem:[#allocation7 + $0x4b0] sm:$0xff]
    %v855 = vld [vmem:[#allocation7 + $0x4b8] sm:$0xff]
    %v856 = vld [vmem:[#allocation7 + $0x4c0] sm:$0xff]
    %v857 = vld [vmem:[#allocation7 + $0x4c8] sm:$0xff]
    %v858 = vld [vmem:[#allocation7 + $0x4d0] sm:$0xff]
    %v859 = vld [vmem:[#allocation7 + $0x4d8] sm:$0xff]
    %v860 = vld [vmem:[#allocation7 + $0x4e0] sm:$0xff]
    %v861 = vld [vmem:[#allocation7 + $0x4e8] sm:$0xff]
    %v862 = vld [vmem:[#allocation7 + $0x4f0] sm:$0xff]
    %v863 = vld [vmem:[#allocation7 + $0x4f8] sm:$0xff]
    %v864 = vld [vmem:[#allocation7 + $0x500] sm:$0xff]
    %v865 = vld [vmem:[#allocation7 + $0x508] sm:$0xff]
    %v866 = vld [vmem:[#allocation7 + $0x510] sm:$0xff]
    %v867 = vld [vmem:[#allocation7 + $0x518] sm:$0xff]
    %v868 = vld [vmem:[#allocation7 + $0x520] sm:$0xff]
    %v869 = vld [vmem:[#allocation7 + $0x528] sm:$0xff]
    %v870 = vld [vmem:[#allocation7 + $0x530] sm:$0xff]
    %v871 = vld [vmem:[#allocation7 + $0x538] sm:$0xff]
    %v872 = vld [vmem:[#allocation7 + $0x540] sm:$0xff]
    %v873 = vld [vmem:[#allocation7 + $0x548] sm:$0xff]
    %v874 = vld [vmem:[#allocation7 + $0x550] sm:$0xff]
    %v875 = vld [vmem:[#allocation7 + $0x558] sm:$0xff]
    %v876 = vld [vmem:[#allocation7 + $0x560] sm:$0xff]
    %v877 = vld [vmem:[#allocation7 + $0x568] sm:$0xff]
    %v878 = vld [vmem:[#allocation7 + $0x570] sm:$0xff]
    %v879 = vld [vmem:[#allocation7 + $0x578] sm:$0xff]
    %v880 = vld [vmem:[#allocation7 + $0x580] sm:$0xff]
    %v881 = vld [vmem:[#allocation7 + $0x588] sm:$0xff]
    %v882 = vld [vmem:[#allocation7 + $0x590] sm:$0xff]
    %v883 = vld [vmem:[#allocation7 + $0x598] sm:$0xff]
    %v884 = vld [vmem:[#allocation7 + $0x5a0] sm:$0xff]
    %v885 = vld [vmem:[#allocation7 + $0x5a8] sm:$0xff]
    %v886 = vld [vmem:[#allocation7 + $0x5b0] sm:$0xff]
    %v887 = vld [vmem:[#allocation7 + $0x5b8] sm:$0xff]
    %v888 = vld [vmem:[#allocation7 + $0x5c0] sm:$0xff]
    %v889 = vld [vmem:[#allocation7 + $0x5c8] sm:$0xff]
    %v890 = vld [vmem:[#allocation7 + $0x5d0] sm:$0xff]
    %v891 = vld [vmem:[#allocation7 + $0x5d8] sm:$0xff]
    %v892 = vld [vmem:[#allocation7 + $0x5e0] sm:$0xff]
    %v893 = vld [vmem:[#allocation7 + $0x5e8] sm:$0xff]
    %v894 = vld [vmem:[#allocation7 + $0x5f0] sm:$0xff]
    %v895 = vld [vmem:[#allocation7 + $0x5f8] sm:$0xff]
    %v896 = vld [vmem:[#allocation7 + $0x600] sm:$0xff]
    %v897 = vld [vmem:[#allocation7 + $0x608] sm:$0xff]
    %v898 = vld [vmem:[#allocation7 + $0x610] sm:$0xff]
    %v899 = vld [vmem:[#allocation7 + $0x618] sm:$0xff]
    %v900 = vld [vmem:[#allocation7 + $0x620] sm:$0xff]
    %v901 = vld [vmem:[#allocation7 + $0x628] sm:$0xff]
    %v902 = vld [vmem:[#allocation7 + $0x630] sm:$0xff]
    %v903 = vld [vmem:[#allocation7 + $0x638] sm:$0xff]
    %v904 = vld [vmem:[#allocation7 + $0x640] sm:$0xff]
    %v905 = vld [vmem:[#allocation7 + $0x648] sm:$0xff]
    %v906 = vld [vmem:[#allocation7 + $0x650] sm:$0xff]
    %v907 = vld [vmem:[#allocation7 + $0x658] sm:$0xff]
    %v908 = vld [vmem:[#allocation7 + $0x660] sm:$0xff]
    %v909 = vld [vmem:[#allocation7 + $0x668] sm:$0xff]
    %v910 = vld [vmem:[#allocation7 + $0x670] sm:$0xff]
    %v911 = vld [vmem:[#allocation7 + $0x678] sm:$0xff]
    %v912 = vld [vmem:[#allocation7 + $0x680] sm:$0xff]
    %v913 = vld [vmem:[#allocation7 + $0x688] sm:$0xff]
    %v914 = vld [vmem:[#allocation7 + $0x690] sm:$0xff]
    %v915 = vld [vmem:[#allocation7 + $0x698] sm:$0xff]
    %v916 = vld [vmem:[#allocation7 + $0x6a0] sm:$0xff]
    %v917 = vld [vmem:[#allocation7 + $0x6a8] sm:$0xff]
    %v918 = vld [vmem:[#allocation7 + $0x6b0] sm:$0xff]
    %v919 = vld [vmem:[#allocation7 + $0x6b8] sm:$0xff]
    %v920 = vld [vmem:[#allocation7 + $0x6c0] sm:$0xff]
    %v921 = vld [vmem:[#allocation7 + $0x6c8] sm:$0xff]
    %v922 = vld [vmem:[#allocation7 + $0x6d0] sm:$0xff]
    %v923 = vld [vmem:[#allocation7 + $0x6d8] sm:$0xff]
    %v924 = vld [vmem:[#allocation7 + $0x6e0] sm:$0xff]
    %v925 = vld [vmem:[#allocation7 + $0x6e8] sm:$0xff]
    %v926 = vld [vmem:[#allocation7 + $0x6f0] sm:$0xff]
    %v927 = vld [vmem:[#allocation7 + $0x6f8] sm:$0xff]
    %v928 = vld [vmem:[#allocation7 + $0x700] sm:$0xff]
    %v929 = vld [vmem:[#allocation7 + $0x708] sm:$0xff]
    %v930 = vld [vmem:[#allocation7 + $0x710] sm:$0xff]
    %v931 = vld [vmem:[#allocation7 + $0x718] sm:$0xff]
    %v932 = vld [vmem:[#allocation7 + $0x720] sm:$0xff]
    %v933 = vld [vmem:[#allocation7 + $0x728] sm:$0xff]
    %v934 = vld [vmem:[#allocation7 + $0x730] sm:$0xff]
    %v935 = vld [vmem:[#allocation7 + $0x738] sm:$0xff]
    %v936 = vld [vmem:[#allocation7 + $0x740] sm:$0xff]
    %v937 = vld [vmem:[#allocation7 + $0x748] sm:$0xff]
    %v938 = vld [vmem:[#allocation7 + $0x750] sm:$0xff]
    %v939 = vld [vmem:[#allocation7 + $0x758] sm:$0xff]
    %v940 = vld [vmem:[#allocation7 + $0x760] sm:$0xff]
    %v941 = vld [vmem:[#allocation7 + $0x768] sm:$0xff]
    %v942 = vld [vmem:[#allocation7 + $0x770] sm:$0xff]
    %v943 = vld [vmem:[#allocation7 + $0x778] sm:$0xff]
    %v944 = vld [vmem:[#allocation7 + $0x780] sm:$0xff]
    %v945 = vld [vmem:[#allocation7 + $0x788] sm:$0xff]
    %v946 = vld [vmem:[#allocation7 + $0x790] sm:$0xff]
    %v947 = vld [vmem:[#allocation7 + $0x798] sm:$0xff]
    %v948 = vld [vmem:[#allocation7 + $0x7a0] sm:$0xff]
    %v949 = vld [vmem:[#allocation7 + $0x7a8] sm:$0xff]
    %v950 = vld [vmem:[#allocation7 + $0x7b0] sm:$0xff]
    %v951 = vld [vmem:[#allocation7 + $0x7b8] sm:$0xff]
    %v952 = vld [vmem:[#allocation7 + $0x7c0] sm:$0xff]
    %v953 = vld [vmem:[#allocation7 + $0x7c8] sm:$0xff]
    %v954 = vld [vmem:[#allocation7 + $0x7d0] sm:$0xff]
    %v955 = vld [vmem:[#allocation7 + $0x7d8] sm:$0xff]
    %v956 = vld [vmem:[#allocation7 + $0x7e0] sm:$0xff]
    %v957 = vld [vmem:[#allocation7 + $0x7e8] sm:$0xff]
    %v958 = vld [vmem:[#allocation7 + $0x7f0] sm:$0xff]
    %v959 = vld [vmem:[#allocation7 + $0x7f8] sm:$0xff]
    %v960 = vld [vmem:[#allocation7 + $0x800] sm:$0xff]
    %v961 = vld [vmem:[#allocation7 + $0x808] sm:$0xff]
    %v962 = vld [vmem:[#allocation7 + $0x810] sm:$0xff]
    %v963 = vld [vmem:[#allocation7 + $0x818] sm:$0xff]
    %v964 = vld [vmem:[#allocation7 + $0x820] sm:$0xff]
    %v965 = vld [vmem:[#allocation7 + $0x828] sm:$0xff]
    %v966 = vld [vmem:[#allocation7 + $0x830] sm:$0xff]
    %v967 = vld [vmem:[#allocation7 + $0x838] sm:$0xff]
    %v968 = vld [vmem:[#allocation7 + $0x840] sm:$0xff]
    %v969 = vld [vmem:[#allocation7 + $0x848] sm:$0xff]
    %v970 = vld [vmem:[#allocation7 + $0x850] sm:$0xff]
    %v971 = vld [vmem:[#allocation7 + $0x858] sm:$0xff]
    %v972 = vld [vmem:[#allocation7 + $0x860] sm:$0xff]
    %v973 = vld [vmem:[#allocation7 + $0x868] sm:$0xff]
    %v974 = vld [vmem:[#allocation7 + $0x870] sm:$0xff]
    %v975 = vld [vmem:[#allocation7 + $0x878] sm:$0xff]
    %v976 = vld [vmem:[#allocation7 + $0x880] sm:$0xff]
    %v977 = vld [vmem:[#allocation7 + $0x888] sm:$0xff]
    %v978 = vld [vmem:[#allocation7 + $0x890] sm:$0xff]
    %v979 = vld [vmem:[#allocation7 + $0x898] sm:$0xff]
    %v980 = vld [vmem:[#allocation7 + $0x8a0] sm:$0xff]
    %v981 = vld [vmem:[#allocation7 + $0x8a8] sm:$0xff]
    %v982 = vld [vmem:[#allocation7 + $0x8b0] sm:$0xff]
    %v983 = vld [vmem:[#allocation7 + $0x8b8] sm:$0xff]
    %v984 = vld [vmem:[#allocation7 + $0x8c0] sm:$0xff]
    %v985 = vld [vmem:[#allocation7 + $0x8c8] sm:$0xff]
    %v986 = vld [vmem:[#allocation7 + $0x8d0] sm:$0xff]
    %v987 = vld [vmem:[#allocation7 + $0x8d8] sm:$0xff]
    %v988 = vld [vmem:[#allocation7 + $0x8e0] sm:$0xff]
    %v989 = vld [vmem:[#allocation7 + $0x8e8] sm:$0xff]
    %v990 = vld [vmem:[#allocation7 + $0x8f0] sm:$0xff]
    %v991 = vld [vmem:[#allocation7 + $0x8f8] sm:$0xff]
    %v992 = vld [vmem:[#allocation7 + $0x900] sm:$0xff]
    %v993 = vld [vmem:[#allocation7 + $0x908] sm:$0xff]
    %v994 = vld [vmem:[#allocation7 + $0x910] sm:$0xff]
    %v995 = vld [vmem:[#allocation7 + $0x918] sm:$0xff]
    %v996 = vld [vmem:[#allocation7 + $0x920] sm:$0xff]
    %v997 = vld [vmem:[#allocation7 + $0x928] sm:$0xff]
    %v998 = vld [vmem:[#allocation7 + $0x930] sm:$0xff]
    %v999 = vld [vmem:[#allocation7 + $0x938] sm:$0xff]
    %v1000 = vld [vmem:[#allocation7 + $0x940] sm:$0xff]
    %v1001 = vld [vmem:[#allocation7 + $0x948] sm:$0xff]
    %v1002 = vld [vmem:[#allocation7 + $0x950] sm:$0xff]
    %v1003 = vld [vmem:[#allocation7 + $0x958] sm:$0xff]
    %v1004 = vld [vmem:[#allocation7 + $0x960] sm:$0xff]
    %v1005 = vld [vmem:[#allocation7 + $0x968] sm:$0xff]
    %v1006 = vld [vmem:[#allocation7 + $0x970] sm:$0xff]
    %v1007 = vld [vmem:[#allocation7 + $0x978] sm:$0xff]
    %v1008 = vld [vmem:[#allocation7 + $0x980] sm:$0xff]
    %v1009 = vld [vmem:[#allocation7 + $0x988] sm:$0xff]
    %v1010 = vld [vmem:[#allocation7 + $0x990] sm:$0xff]
    %v1011 = vld [vmem:[#allocation7 + $0x998] sm:$0xff]
    %v1012 = vld [vmem:[#allocation7 + $0x9a0] sm:$0xff]
    %v1013 = vld [vmem:[#allocation7 + $0x9a8] sm:$0xff]
    %v1014 = vld [vmem:[#allocation7 + $0x9b0] sm:$0xff]
    %v1015 = vld [vmem:[#allocation7 + $0x9b8] sm:$0xff]
    %v1016 = vld [vmem:[#allocation7 + $0x9c0] sm:$0xff]
    %v1017 = vld [vmem:[#allocation7 + $0x9c8] sm:$0xff]
    %v1018 = vld [vmem:[#allocation7 + $0x9d0] sm:$0xff]
    %v1019 = vld [vmem:[#allocation7 + $0x9d8] sm:$0xff]
    %v1020 = vld [vmem:[#allocation7 + $0x9e0] sm:$0xff]
    %v1021 = vld [vmem:[#allocation7 + $0x9e8] sm:$0xff]
    %v1022 = vld [vmem:[#allocation7 + $0x9f0] sm:$0xff]
    %v1023 = vld [vmem:[#allocation7 + $0x9f8] sm:$0xff]
    %v1024 = vld [vmem:[#allocation7 + $0xa00] sm:$0xff]
    %v1025 = vld [vmem:[#allocation7 + $0xa08] sm:$0xff]
    %v1026 = vld [vmem:[#allocation7 + $0xa10] sm:$0xff]
    %v1027 = vld [vmem:[#allocation7 + $0xa18] sm:$0xff]
    %v1028 = vld [vmem:[#allocation7 + $0xa20] sm:$0xff]
    %v1029 = vld [vmem:[#allocation7 + $0xa28] sm:$0xff]
    %v1030 = vld [vmem:[#allocation7 + $0xa30] sm:$0xff]
    %v1031 = vld [vmem:[#allocation7 + $0xa38] sm:$0xff]
    %v1032 = vld [vmem:[#allocation7 + $0xa40] sm:$0xff]
    %v1033 = vld [vmem:[#allocation7 + $0xa48] sm:$0xff]
    %v1034 = vld [vmem:[#allocation7 + $0xa50] sm:$0xff]
    %v1035 = vld [vmem:[#allocation7 + $0xa58] sm:$0xff]
    %v1036 = vld [vmem:[#allocation7 + $0xa60] sm:$0xff]
    %v1037 = vld [vmem:[#allocation7 + $0xa68] sm:$0xff]
    %v1038 = vld [vmem:[#allocation7 + $0xa70] sm:$0xff]
    %v1039 = vld [vmem:[#allocation7 + $0xa78] sm:$0xff]
    %v1040 = vld [vmem:[#allocation7 + $0xa80] sm:$0xff]
    %v1041 = vld [vmem:[#allocation7 + $0xa88] sm:$0xff]
    %v1042 = vld [vmem:[#allocation7 + $0xa90] sm:$0xff]
    %v1043 = vld [vmem:[#allocation7 + $0xa98] sm:$0xff]
    %v1044 = vld [vmem:[#allocation7 + $0xaa0] sm:$0xff]
    %v1045 = vld [vmem:[#allocation7 + $0xaa8] sm:$0xff]
    %v1046 = vld [vmem:[#allocation7 + $0xab0] sm:$0xff]
    %v1047 = vld [vmem:[#allocation7 + $0xab8] sm:$0xff]
    %v1048 = vld [vmem:[#allocation7 + $0xac0] sm:$0xff]
    %v1049 = vld [vmem:[#allocation7 + $0xac8] sm:$0xff]
    %v1050 = vld [vmem:[#allocation7 + $0xad0] sm:$0xff]
    %v1051 = vld [vmem:[#allocation7 + $0xad8] sm:$0xff]
    %v1052 = vld [vmem:[#allocation7 + $0xae0] sm:$0xff]
    %v1053 = vld [vmem:[#allocation7 + $0xae8] sm:$0xff]
    %v1054 = vld [vmem:[#allocation7 + $0xaf0] sm:$0xff]
    %v1055 = vld [vmem:[#allocation7 + $0xaf8] sm:$0xff]
    %v1056 = vld [vmem:[#allocation7 + $0xb00] sm:$0xff]
    %v1057 = vld [vmem:[#allocation7 + $0xb08] sm:$0xff]
    %v1058 = vld [vmem:[#allocation7 + $0xb10] sm:$0xff]
    %v1059 = vld [vmem:[#allocation7 + $0xb18] sm:$0xff]
    %v1060 = vld [vmem:[#allocation7 + $0xb20] sm:$0xff]
    %v1061 = vld [vmem:[#allocation7 + $0xb28] sm:$0xff]
    %v1062 = vld [vmem:[#allocation7 + $0xb30] sm:$0xff]
    %v1063 = vld [vmem:[#allocation7 + $0xb38] sm:$0xff]
    %v1064 = vld [vmem:[#allocation7 + $0xb40] sm:$0xff]
    %v1065 = vld [vmem:[#allocation7 + $0xb48] sm:$0xff]
    %v1066 = vld [vmem:[#allocation7 + $0xb50] sm:$0xff]
    %v1067 = vld [vmem:[#allocation7 + $0xb58] sm:$0xff]
    %v1068 = vld [vmem:[#allocation7 + $0xb60] sm:$0xff]
    %v1069 = vld [vmem:[#allocation7 + $0xb68] sm:$0xff]
    %v1070 = vld [vmem:[#allocation7 + $0xb70] sm:$0xff]
    %v1071 = vld [vmem:[#allocation7 + $0xb78] sm:$0xff]
    %v1072 = vld [vmem:[#allocation7 + $0xb80] sm:$0xff]
    %v1073 = vld [vmem:[#allocation7 + $0xb88] sm:$0xff]
    %v1074 = vld [vmem:[#allocation7 + $0xb90] sm:$0xff]
    %v1075 = vld [vmem:[#allocation7 + $0xb98] sm:$0xff]
    %v1076 = vld [vmem:[#allocation7 + $0xba0] sm:$0xff]
    %v1077 = vld [vmem:[#allocation7 + $0xba8] sm:$0xff]
    %v1078 = vld [vmem:[#allocation7 + $0xbb0] sm:$0xff]
    %v1079 = vld [vmem:[#allocation7 + $0xbb8] sm:$0xff]
    %v1080 = vld [vmem:[#allocation7 + $0xbc0] sm:$0xff]
    %v1081 = vld [vmem:[#allocation7 + $0xbc8] sm:$0xff]
    %v1082 = vld [vmem:[#allocation7 + $0xbd0] sm:$0xff]
    %v1083 = vld [vmem:[#allocation7 + $0xbd8] sm:$0xff]
    %v1084 = vld [vmem:[#allocation7 + $0xbe0] sm:$0xff]
    %v1085 = vld [vmem:[#allocation7 + $0xbe8] sm:$0xff]
    %v1086 = vld [vmem:[#allocation7 + $0xbf0] sm:$0xff]
    %v1087 = vld [vmem:[#allocation7 + $0xbf8] sm:$0xff]
    %v1088 = vld [vmem:[#allocation7 + $0xc00] sm:$0xff]
    %v1089 = vld [vmem:[#allocation7 + $0xc08] sm:$0xff]
    %v1090 = vld [vmem:[#allocation7 + $0xc10] sm:$0xff]
    %v1091 = vld [vmem:[#allocation7 + $0xc18] sm:$0xff]
    %v1092 = vld [vmem:[#allocation7 + $0xc20] sm:$0xff]
    %v1093 = vld [vmem:[#allocation7 + $0xc28] sm:$0xff]
    %v1094 = vld [vmem:[#allocation7 + $0xc30] sm:$0xff]
    %v1095 = vld [vmem:[#allocation7 + $0xc38] sm:$0xff]
    %v1096 = vld [vmem:[#allocation7 + $0xc40] sm:$0xff]
    %v1097 = vld [vmem:[#allocation7 + $0xc48] sm:$0xff]
    %v1098 = vld [vmem:[#allocation7 + $0xc50] sm:$0xff]
    %v1099 = vld [vmem:[#allocation7 + $0xc58] sm:$0xff]
    %v1100 = vld [vmem:[#allocation7 + $0xc60] sm:$0xff]
    %v1101 = vld [vmem:[#allocation7 + $0xc68] sm:$0xff]
    %v1102 = vld [vmem:[#allocation7 + $0xc70] sm:$0xff]
    %v1103 = vld [vmem:[#allocation7 + $0xc78] sm:$0xff]
    %v1104 = vld [vmem:[#allocation7 + $0xc80] sm:$0xff]
    %v1105 = vld [vmem:[#allocation7 + $0xc88] sm:$0xff]
    %v1106 = vld [vmem:[#allocation7 + $0xc90] sm:$0xff]
    %v1107 = vld [vmem:[#allocation7 + $0xc98] sm:$0xff]
    %v1108 = vld [vmem:[#allocation7 + $0xca0] sm:$0xff]
    %v1109 = vld [vmem:[#allocation7 + $0xca8] sm:$0xff]
    %v1110 = vld [vmem:[#allocation7 + $0xcb0] sm:$0xff]
    %v1111 = vld [vmem:[#allocation7 + $0xcb8] sm:$0xff]
    %v1112 = vld [vmem:[#allocation7 + $0xcc0] sm:$0xff]
    %v1113 = vld [vmem:[#allocation7 + $0xcc8] sm:$0xff]
    %v1114 = vld [vmem:[#allocation7 + $0xcd0] sm:$0xff]
    %v1115 = vld [vmem:[#allocation7 + $0xcd8] sm:$0xff]
    %v1116 = vld [vmem:[#allocation7 + $0xce0] sm:$0xff]
    %v1117 = vld [vmem:[#allocation7 + $0xce8] sm:$0xff]
    %v1118 = vld [vmem:[#allocation7 + $0xcf0] sm:$0xff]
    %v1119 = vld [vmem:[#allocation7 + $0xcf8] sm:$0xff]
    %v1120 = vld [vmem:[#allocation7 + $0xd00] sm:$0xff]
    %v1121 = vld [vmem:[#allocation7 + $0xd08] sm:$0xff]
    %v1122 = vld [vmem:[#allocation7 + $0xd10] sm:$0xff]
    %v1123 = vld [vmem:[#allocation7 + $0xd18] sm:$0xff]
    %v1124 = vld [vmem:[#allocation7 + $0xd20] sm:$0xff]
    %v1125 = vld [vmem:[#allocation7 + $0xd28] sm:$0xff]
    %v1126 = vld [vmem:[#allocation7 + $0xd30] sm:$0xff]
    %v1127 = vld [vmem:[#allocation7 + $0xd38] sm:$0xff]
    %v1128 = vld [vmem:[#allocation7 + $0xd40] sm:$0xff]
    %v1129 = vld [vmem:[#allocation7 + $0xd48] sm:$0xff]
    %v1130 = vld [vmem:[#allocation7 + $0xd50] sm:$0xff]
    %v1131 = vld [vmem:[#allocation7 + $0xd58] sm:$0xff]
    %v1132 = vld [vmem:[#allocation7 + $0xd60] sm:$0xff]
    %v1133 = vld [vmem:[#allocation7 + $0xd68] sm:$0xff]
    %v1134 = vld [vmem:[#allocation7 + $0xd70] sm:$0xff]
    %v1135 = vld [vmem:[#allocation7 + $0xd78] sm:$0xff]
    %v1136 = vld [vmem:[#allocation7 + $0xd80] sm:$0xff]
    %v1137 = vld [vmem:[#allocation7 + $0xd88] sm:$0xff]
    %v1138 = vld [vmem:[#allocation7 + $0xd90] sm:$0xff]
    %v1139 = vld [vmem:[#allocation7 + $0xd98] sm:$0xff]
    %v1140 = vld [vmem:[#allocation7 + $0xda0] sm:$0xff]
    %v1141 = vld [vmem:[#allocation7 + $0xda8] sm:$0xff]
    %v1142 = vld [vmem:[#allocation7 + $0xdb0] sm:$0xff]
    %v1143 = vld [vmem:[#allocation7 + $0xdb8] sm:$0xff]
    %v1144 = vld [vmem:[#allocation7 + $0xdc0] sm:$0xff]
    %v1145 = vld [vmem:[#allocation7 + $0xdc8] sm:$0xff]
    %v1146 = vld [vmem:[#allocation7 + $0xdd0] sm:$0xff]
    %v1147 = vld [vmem:[#allocation7 + $0xdd8] sm:$0xff]
    %v1148 = vld [vmem:[#allocation7 + $0xde0] sm:$0xff]
    %v1149 = vld [vmem:[#allocation7 + $0xde8] sm:$0xff]
    %v1150 = vld [vmem:[#allocation7 + $0xdf0] sm:$0xff]
    %v1151 = vld [vmem:[#allocation7 + $0xdf8] sm:$0xff]
    %v1152 = vld [vmem:[#allocation7 + $0xe00] sm:$0xff]
    %v1153 = vld [vmem:[#allocation7 + $0xe08] sm:$0xff]
    %v1154 = vld [vmem:[#allocation7 + $0xe10] sm:$0xff]
    %v1155 = vld [vmem:[#allocation7 + $0xe18] sm:$0xff]
    %v1156 = vld [vmem:[#allocation7 + $0xe20] sm:$0xff]
    %v1157 = vld [vmem:[#allocation7 + $0xe28] sm:$0xff]
    %v1158 = vld [vmem:[#allocation7 + $0xe30] sm:$0xff]
    %v1159 = vld [vmem:[#allocation7 + $0xe38] sm:$0xff]
    %v1160 = vld [vmem:[#allocation7 + $0xe40] sm:$0xff]
    %v1161 = vld [vmem:[#allocation7 + $0xe48] sm:$0xff]
    %v1162 = vld [vmem:[#allocation7 + $0xe50] sm:$0xff]
    %v1163 = vld [vmem:[#allocation7 + $0xe58] sm:$0xff]
    %v1164 = vld [vmem:[#allocation7 + $0xe60] sm:$0xff]
    %v1165 = vld [vmem:[#allocation7 + $0xe68] sm:$0xff]
    %v1166 = vld [vmem:[#allocation7 + $0xe70] sm:$0xff]
    %v1167 = vld [vmem:[#allocation7 + $0xe78] sm:$0xff]
    %v1168 = vld [vmem:[#allocation7 + $0xe80] sm:$0xff]
    %v1169 = vld [vmem:[#allocation7 + $0xe88] sm:$0xff]
    %v1170 = vld [vmem:[#allocation7 + $0xe90] sm:$0xff]
    %v1171 = vld [vmem:[#allocation7 + $0xe98] sm:$0xff]
    %v1172 = vld [vmem:[#allocation7 + $0xea0] sm:$0xff]
    %v1173 = vld [vmem:[#allocation7 + $0xea8] sm:$0xff]
    %v1174 = vld [vmem:[#allocation7 + $0xeb0] sm:$0xff]
    %v1175 = vld [vmem:[#allocation7 + $0xeb8] sm:$0xff]
    %v1176 = vld [vmem:[#allocation7 + $0xec0] sm:$0xff]
    %v1177 = vld [vmem:[#allocation7 + $0xec8] sm:$0xff]
    %v1178 = vld [vmem:[#allocation7 + $0xed0] sm:$0xff]
    %v1179 = vld [vmem:[#allocation7 + $0xed8] sm:$0xff]
    %v1180 = vld [vmem:[#allocation7 + $0xee0] sm:$0xff]
    %v1181 = vld [vmem:[#allocation7 + $0xee8] sm:$0xff]
    %v1182 = vld [vmem:[#allocation7 + $0xef0] sm:$0xff]
    %v1183 = vld [vmem:[#allocation7 + $0xef8] sm:$0xff]
    %v1184 = vld [vmem:[#allocation7 + $0xf00] sm:$0xff]
    %v1185 = vld [vmem:[#allocation7 + $0xf08] sm:$0xff]
    %v1186 = vld [vmem:[#allocation7 + $0xf10] sm:$0xff]
    %v1187 = vld [vmem:[#allocation7 + $0xf18] sm:$0xff]
    %v1188 = vld [vmem:[#allocation7 + $0xf20] sm:$0xff]
    %v1189 = vld [vmem:[#allocation7 + $0xf28] sm:$0xff]
    %v1190 = vld [vmem:[#allocation7 + $0xf30] sm:$0xff]
    %v1191 = vld [vmem:[#allocation7 + $0xf38] sm:$0xff]
    %v1192 = vld [vmem:[#allocation7 + $0xf40] sm:$0xff]
    %v1193 = vld [vmem:[#allocation7 + $0xf48] sm:$0xff]
    %v1194 = vld [vmem:[#allocation7 + $0xf50] sm:$0xff]
    %v1195 = vld [vmem:[#allocation7 + $0xf58] sm:$0xff]
    %v1196 = vld [vmem:[#allocation7 + $0xf60] sm:$0xff]
    %v1197 = vld [vmem:[#allocation7 + $0xf68] sm:$0xff]
    %v1198 = vld [vmem:[#allocation7 + $0xf70] sm:$0xff]
    %v1199 = vld [vmem:[#allocation7 + $0xf78] sm:$0xff]
    %v1200 = vld [vmem:[#allocation7 + $0xf80] sm:$0xff]
    %v1201 = vld [vmem:[#allocation7 + $0xf88] sm:$0xff]
    %v1202 = vld [vmem:[#allocation7 + $0xf90] sm:$0xff]
    %v1203 = vld [vmem:[#allocation7 + $0xf98] sm:$0xff]
    %v1204 = vld [vmem:[#allocation7 + $0xfa0] sm:$0xff]
    %v1205 = vld [vmem:[#allocation7 + $0xfa8] sm:$0xff]
    %v1206 = vld [vmem:[#allocation7 + $0xfb0] sm:$0xff]
    %v1207 = vld [vmem:[#allocation7 + $0xfb8] sm:$0xff]
    %v1208 = vld [vmem:[#allocation7 + $0xfc0] sm:$0x1]
    %v1209 = vld [vmem:[#allocation7 + $0xfc8] sm:$0x1]
    %v1210 = vld [vmem:[#allocation7 + $0xfd0] sm:$0x1]
    %vm1211 = vcmask 531456
    %v1213 = vsel %vm1211, %v702, 0
    %v1216 = vsel %vm1211, %v703, 0
    %v1219 = vsel %vm300, %v1208, 0
    %v1222 = vsel %vm300, %v1209, 0
    %v1225 = vsel %vm300, %v1210, 0
    %1227 = vmatprep.subr.mxu0 %v705
    %1228 = vmatpush1.msra.mxu0 %v704
    %1229 = vmatprep.subr.mxu0 %v708
    %1230 = vmatpush1.msra.mxu0 %v707
    %1231 = vmatprep.subr.mxu0 %v711
    %1232 = vmatpush1.msra.mxu0 %v710
    %1233 = vmatprep.subr.mxu0 %v714
    %1234 = vmatpush1.msra.mxu0 %v713
    %1235 = vmatprep.subr.mxu0 %v717
    %1236 = vmatpush1.msra.mxu0 %v716
    %1237 = vmatprep.subr.mxu0 %v720
    %1238 = vmatpush1.msra.mxu0 %v719
    %1239 = vmatprep.subr.mxu0 %v723
    %1240 = vmatpush1.msra.mxu0 %v722
    %1241 = vmatprep.subr.mxu0 %v726
    %1242 = vmatpush1.msra.mxu0 %v725
    %1243 = vmatprep.subr.mxu0 %v729
    %1244 = vmatpush1.msra.mxu0 %v728
    %1245 = vmatprep.subr.mxu0 %v732
    %1246 = vmatpush1.msra.mxu0 %v731
    %1247 = vmatprep.subr.mxu0 %v735
    %1248 = vmatpush1.msra.mxu0 %v734
    %1249 = vmatprep.subr.mxu0 %v738
    %1250 = vmatpush1.msra.mxu0 %v737
    %1251 = vmatprep.subr.mxu0 %v741
    %1252 = vmatpush1.msra.mxu0 %v740
    %1253 = vmatprep.subr.mxu0 %v744
    %1254 = vmatpush1.msra.mxu0 %v743
    %1255 = vmatprep.subr.mxu0 %v747
    %1256 = vmatpush1.msra.mxu0 %v746
    %1257 = vmatprep.subr.mxu0 %v750
    %1258 = vmatpush1.msra.mxu0 %v749
    %1259 = vmatprep.subr.mxu0 %v753
    %1260 = vmatpush1.msra.mxu0 %v752
    %1261 = vmatprep.subr.mxu0 %v756
    %1262 = vmatpush1.msra.mxu0 %v755
    %1263 = vmatprep.subr.mxu0 %v759
    %1264 = vmatpush1.msra.mxu0 %v758
    %1265 = vmatprep.subr.mxu0 %v762
    %1266 = vmatpush1.msra.mxu0 %v761
    %1267 = vmatprep.subr.mxu0 %v765
    %1268 = vmatpush1.msra.mxu0 %v764
    %1269 = vmatprep.subr.mxu0 %v768
    %1270 = vmatpush1.msra.mxu0 %v767
    %1271 = vmatprep.subr.mxu0 %v771
    %1272 = vmatpush1.msra.mxu0 %v770
    %1273 = vmatprep.subr.mxu0 %v774
    %1274 = vmatpush1.msra.mxu0 %v773
    %1275 = vmatprep.subr.mxu0 %v777
    %1276 = vmatpush1.msra.mxu0 %v776
    %1277 = vmatprep.subr.mxu0 %v780
    %1278 = vmatpush1.msra.mxu0 %v779
    %1279 = vmatprep.subr.mxu0 %v783
    %1280 = vmatpush1.msra.mxu0 %v782
    %1281 = vmatprep.subr.mxu0 %v786
    %1282 = vmatpush1.msra.mxu0 %v785
    %1283 = vmatprep.subr.mxu0 %v789
    %1284 = vmatpush1.msra.mxu0 %v788
    %1285 = vmatprep.subr.mxu0 %v792
    %1286 = vmatpush1.msra.mxu0 %v791
    %1287 = vmatprep.subr.mxu0 %v795
    %1288 = vmatpush1.msra.mxu0 %v794
    %1289 = vmatprep.subr.mxu0 %v798
    %1290 = vmatpush1.msra.mxu0 %v797
    %1291 = vmatprep.mubr.f32.mxu0 %v622
    %1292 = vmatmul.mubr.f32.gmra.mrb[0].mxu0 %v621
    %v1293 = vpop.f32.mrb[0].mxu0
    %v1294 = vadd.f32 0.0, %v1293
    %v1295 = vpop.f32.mrb[0].mxu0
    %v1296 = vadd.f32 0.0, %v1295
    %1297 = vmatprep.mubr.f32.mxu0 %v626
    %1298 = vmatmul.mubr.f32.gmra.mrb[0].mxu0 %v625
    %v1299 = vpop.f32.mrb[0].mxu0
    %v1300 = vadd.f32 0.0, %v1299
    %v1301 = vpop.f32.mrb[0].mxu0
    %v1302 = vadd.f32 0.0, %v1301
    %1303 = vdwg.mxu0
    %1304 = vmatprep.subr.mxu0 %v801
    %1305 = vmatpush1.msra.mxu0 %v800
    %1306 = vmatprep.subr.mxu0 %v804
    %1307 = vmatpush1.msra.mxu0 %v803
    %1308 = vmatprep.subr.mxu0 %v807
    %1309 = vmatpush1.msra.mxu0 %v806
    %1310 = vmatprep.subr.mxu0 %v810
    %1311 = vmatpush1.msra.mxu0 %v809
    %1312 = vmatprep.subr.mxu0 %v813
    %1313 = vmatpush1.msra.mxu0 %v812
    %1314 = vmatprep.subr.mxu0 %v816
    %1315 = vmatpush1.msra.mxu0 %v815
    %1316 = vmatprep.subr.mxu0 %v819
    %1317 = vmatpush1.msra.mxu0 %v818
    %1318 = vmatprep.subr.mxu0 %v822
    %1319 = vmatpush1.msra.mxu0 %v821
    %1320 = vmatprep.subr.mxu0 %v825
    %1321 = vmatpush1.msra.mxu0 %v824
    %1322 = vmatprep.subr.mxu0 %v828
    %1323 = vmatpush1.msra.mxu0 %v827
    %1324 = vmatprep.subr.mxu0 %v831
    %1325 = vmatpush1.msra.mxu0 %v830
    %1326 = vmatprep.subr.mxu0 %v834
    %1327 = vmatpush1.msra.mxu0 %v833
    %1328 = vmatprep.subr.mxu0 %v837
    %1329 = vmatpush1.msra.mxu0 %v836
    %1330 = vmatprep.subr.mxu0 %v840
    %1331 = vmatpush1.msra.mxu0 %v839
    %1332 = vmatprep.subr.mxu0 %v843
    %1333 = vmatpush1.msra.mxu0 %v842
    %1334 = vmatprep.subr.mxu0 %v846
    %1335 = vmatpush1.msra.mxu0 %v845
    %1336 = vmatprep.subr.mxu0 %v849
    %1337 = vmatpush1.msra.mxu0 %v848
    %1338 = vmatprep.subr.mxu0 %v852
    %1339 = vmatpush1.msra.mxu0 %v851
    %1340 = vmatprep.subr.mxu0 %v855
    %1341 = vmatpush1.msra.mxu0 %v854
    %1342 = vmatprep.subr.mxu0 %v858
    %1343 = vmatpush1.msra.mxu0 %v857
    %1344 = vmatprep.subr.mxu0 %v861
    %1345 = vmatpush1.msra.mxu0 %v860
    %1346 = vmatprep.subr.mxu0 %v864
    %1347 = vmatpush1.msra.mxu0 %v863
    %1348 = vmatprep.subr.mxu0 %v867
    %1349 = vmatpush1.msra.mxu0 %v866
    %1350 = vmatprep.subr.mxu0 %v870
    %1351 = vmatpush1.msra.mxu0 %v869
    %1352 = vmatprep.subr.mxu0 %v873
    %1353 = vmatpush1.msra.mxu0 %v872
    %1354 = vmatprep.subr.mxu0 %v876
    %1355 = vmatpush1.msra.mxu0 %v875
    %1356 = vmatprep.subr.mxu0 %v879
    %1357 = vmatpush1.msra.mxu0 %v878
    %1358 = vmatprep.subr.mxu0 %v882
    %1359 = vmatpush1.msra.mxu0 %v881
    %1360 = vmatprep.subr.mxu0 %v885
    %1361 = vmatpush1.msra.mxu0 %v884
    %1362 = vmatprep.subr.mxu0 %v888
    %1363 = vmatpush1.msra.mxu0 %v887
    %1364 = vmatprep.subr.mxu0 %v891
    %1365 = vmatpush1.msra.mxu0 %v890
    %1366 = vmatprep.subr.mxu0 %v894
    %1367 = vmatpush1.msra.mxu0 %v893
    %1368 = vmatprep.mubr.f32.mxu0 %v700
    %1369 = vmatmul.mubr.f32.gmra.mrb[0].mxu0 %v623
    %v1370 = vpop.f32.mrb[0].mxu0
    %v1371 = vadd.f32 %v1294, %v1370
    %v1372 = vpop.f32.mrb[0].mxu0
    %v1373 = vadd.f32 %v1296, %v1372
    %1374 = vmatprep.mubr.f32.mxu0 %v701
    %1375 = vmatmul.mubr.f32.gmra.mrb[0].mxu0 %v627
    %v1376 = vpop.f32.mrb[0].mxu0
    %v1377 = vadd.f32 %v1300, %v1376
    %v1378 = vpop.f32.mrb[0].mxu0
    %v1379 = vadd.f32 %v1302, %v1378
    %1380 = vdwg.mxu0
    %1381 = vmatprep.subr.mxu0 %v897
    %1382 = vmatpush1.msra.mxu0 %v896
    %1383 = vmatprep.subr.mxu0 %v900
    %1384 = vmatpush1.msra.mxu0 %v899
    %1385 = vmatprep.subr.mxu0 %v903
    %1386 = vmatpush1.msra.mxu0 %v902
    %1387 = vmatprep.subr.mxu0 %v906
    %1388 = vmatpush1.msra.mxu0 %v905
    %1389 = vmatprep.subr.mxu0 %v909
    %1390 = vmatpush1.msra.mxu0 %v908
    %1391 = vmatprep.subr.mxu0 %v912
    %1392 = vmatpush1.msra.mxu0 %v911
    %1393 = vmatprep.subr.mxu0 %v915
    %1394 = vmatpush1.msra.mxu0 %v914
    %1395 = vmatprep.subr.mxu0 %v918
    %1396 = vmatpush1.msra.mxu0 %v917
    %1397 = vmatprep.subr.mxu0 %v921
    %1398 = vmatpush1.msra.mxu0 %v920
    %1399 = vmatprep.subr.mxu0 %v924
    %1400 = vmatpush1.msra.mxu0 %v923
    %1401 = vmatprep.subr.mxu0 %v927
    %1402 = vmatpush1.msra.mxu0 %v926
    %1403 = vmatprep.subr.mxu0 %v930
    %1404 = vmatpush1.msra.mxu0 %v929
    %1405 = vmatprep.subr.mxu0 %v933
    %1406 = vmatpush1.msra.mxu0 %v932
    %1407 = vmatprep.subr.mxu0 %v936
    %1408 = vmatpush1.msra.mxu0 %v935
    %1409 = vmatprep.subr.mxu0 %v939
    %1410 = vmatpush1.msra.mxu0 %v938
    %1411 = vmatprep.subr.mxu0 %v942
    %1412 = vmatpush1.msra.mxu0 %v941
    %1413 = vmatprep.subr.mxu0 %v945
    %1414 = vmatpush1.msra.mxu0 %v944
    %1415 = vmatprep.subr.mxu0 %v948
    %1416 = vmatpush1.msra.mxu0 %v947
    %1417 = vmatprep.subr.mxu0 %v951
    %1418 = vmatpush1.msra.mxu0 %v950
    %1419 = vmatprep.subr.mxu0 %v954
    %1420 = vmatpush1.msra.mxu0 %v953
    %1421 = vmatprep.subr.mxu0 %v957
    %1422 = vmatpush1.msra.mxu0 %v956
    %1423 = vmatprep.subr.mxu0 %v960
    %1424 = vmatpush1.msra.mxu0 %v959
    %1425 = vmatprep.subr.mxu0 %v963
    %1426 = vmatpush1.msra.mxu0 %v962
    %1427 = vmatprep.subr.mxu0 %v966
    %1428 = vmatpush1.msra.mxu0 %v965
    %1429 = vmatprep.subr.mxu0 %v969
    %1430 = vmatpush1.msra.mxu0 %v968
    %1431 = vmatprep.subr.mxu0 %v972
    %1432 = vmatpush1.msra.mxu0 %v971
    %1433 = vmatprep.subr.mxu0 %v975
    %1434 = vmatpush1.msra.mxu0 %v974
    %1435 = vmatprep.subr.mxu0 %v978
    %1436 = vmatpush1.msra.mxu0 %v977
    %1437 = vmatprep.subr.mxu0 %v981
    %1438 = vmatpush1.msra.mxu0 %v980
    %1439 = vmatprep.subr.mxu0 %v984
    %1440 = vmatpush1.msra.mxu0 %v983
    %1441 = vmatprep.subr.mxu0 %v987
    %1442 = vmatpush1.msra.mxu0 %v986
    %1443 = vmatprep.subr.mxu0 %v990
    %1444 = vmatpush1.msra.mxu0 %v989
    %1445 = vmatprep.mubr.f32.mxu0 %v667
    %1446 = vmatmul.mubr.f32.gmra.mrb[0].mxu0 %v666
    %v1447 = vpop.f32.mrb[0].mxu0
    %v1448 = vadd.f32 %v1371, %v1447
    %v1449 = vpop.f32.mrb[0].mxu0
    %v1450 = vadd.f32 %v1373, %v1449
    %1451 = vmatprep.mubr.f32.mxu0 %v670
    %1452 = vmatmul.mubr.f32.gmra.mrb[0].mxu0 %v669
    %v1453 = vpop.f32.mrb[0].mxu0
    %v1454 = vadd.f32 %v1377, %v1453
    %v1455 = vpop.f32.mrb[0].mxu0
    %v1456 = vadd.f32 %v1379, %v1455
    %1457 = vdwg.mxu0
    %1458 = vmatprep.subr.mxu0 %v993
    %1459 = vmatpush1.msra.mxu0 %v992
    %1460 = vmatprep.subr.mxu0 %v996
    %1461 = vmatpush1.msra.mxu0 %v995
    %1462 = vmatprep.subr.mxu0 %v999
    %1463 = vmatpush1.msra.mxu0 %v998
    %1464 = vmatprep.subr.mxu0 %v1002
    %1465 = vmatpush1.msra.mxu0 %v1001
    %1466 = vmatprep.subr.mxu0 %v1005
    %1467 = vmatpush1.msra.mxu0 %v1004
    %1468 = vmatprep.subr.mxu0 %v1008
    %1469 = vmatpush1.msra.mxu0 %v1007
    %1470 = vmatprep.subr.mxu0 %v1011
    %1471 = vmatpush1.msra.mxu0 %v1010
    %1472 = vmatprep.subr.mxu0 %v1014
    %1473 = vmatpush1.msra.mxu0 %v1013
    %1474 = vmatprep.subr.mxu0 %v1017
    %1475 = vmatpush1.msra.mxu0 %v1016
    %1476 = vmatprep.subr.mxu0 %v1020
    %1477 = vmatpush1.msra.mxu0 %v1019
    %1478 = vmatprep.subr.mxu0 %v1023
    %1479 = vmatpush1.msra.mxu0 %v1022
    %1480 = vmatprep.subr.mxu0 %v1026
    %1481 = vmatpush1.msra.mxu0 %v1025
    %1482 = vmatprep.subr.mxu0 %v1029
    %1483 = vmatpush1.msra.mxu0 %v1028
    %1484 = vmatprep.subr.mxu0 %v1032
    %1485 = vmatpush1.msra.mxu0 %v1031
    %1486 = vmatprep.subr.mxu0 %v1035
    %1487 = vmatpush1.msra.mxu0 %v1034
    %1488 = vmatprep.subr.mxu0 %v1038
    %1489 = vmatpush1.msra.mxu0 %v1037
    %1490 = vmatprep.subr.mxu0 %v1041
    %1491 = vmatpush1.msra.mxu0 %v1040
    %1492 = vmatprep.subr.mxu0 %v1044
    %1493 = vmatpush1.msra.mxu0 %v1043
    %1494 = vmatprep.subr.mxu0 %v1047
    %1495 = vmatpush1.msra.mxu0 %v1046
    %1496 = vmatprep.subr.mxu0 %v1050
    %1497 = vmatpush1.msra.mxu0 %v1049
    %1498 = vmatprep.subr.mxu0 %v1053
    %1499 = vmatpush1.msra.mxu0 %v1052
    %1500 = vmatprep.subr.mxu0 %v1056
    %1501 = vmatpush1.msra.mxu0 %v1055
    %1502 = vmatprep.subr.mxu0 %v1059
    %1503 = vmatpush1.msra.mxu0 %v1058
    %1504 = vmatprep.subr.mxu0 %v1062
    %1505 = vmatpush1.msra.mxu0 %v1061
    %1506 = vmatprep.subr.mxu0 %v1065
    %1507 = vmatpush1.msra.mxu0 %v1064
    %1508 = vmatprep.subr.mxu0 %v1068
    %1509 = vmatpush1.msra.mxu0 %v1067
    %1510 = vmatprep.subr.mxu0 %v1071
    %1511 = vmatpush1.msra.mxu0 %v1070
    %1512 = vmatprep.subr.mxu0 %v1074
    %1513 = vmatpush1.msra.mxu0 %v1073
    %1514 = vmatprep.subr.mxu0 %v1077
    %1515 = vmatpush1.msra.mxu0 %v1076
    %1516 = vmatprep.subr.mxu0 %v1080
    %1517 = vmatpush1.msra.mxu0 %v1079
    %1518 = vmatprep.subr.mxu0 %v1083
    %1519 = vmatpush1.msra.mxu0 %v1082
    %1520 = vmatprep.subr.mxu0 %v1086
    %1521 = vmatpush1.msra.mxu0 %v1085
    %1522 = vmatprep.mubr.f32.mxu0 %v682
    %1523 = vmatmul.mubr.f32.gmra.mrb[0].mxu0 %v668
    %v1524 = vpop.f32.mrb[0].mxu0
    %v1525 = vadd.f32 %v1448, %v1524
    %v1526 = vpop.f32.mrb[0].mxu0
    %v1527 = vadd.f32 %v1450, %v1526
    %1528 = vmatprep.mubr.f32.mxu0 %v681
    %1529 = vmatmul.mubr.f32.gmra.mrb[0].mxu0 %v671
    %v1530 = vpop.f32.mrb[0].mxu0
    %v1531 = vadd.f32 %v1454, %v1530
    %v1532 = vpop.f32.mrb[0].mxu0
    %v1533 = vadd.f32 %v1456, %v1532
    %1534 = vdwg.mxu0
    %1535 = vmatprep.subr.mxu0 %v1089
    %1536 = vmatpush1.msra.mxu0 %v1088
    %1537 = vmatprep.subr.mxu0 %v1092
    %1538 = vmatpush1.msra.mxu0 %v1091
    %1539 = vmatprep.subr.mxu0 %v1095
    %1540 = vmatpush1.msra.mxu0 %v1094
    %1541 = vmatprep.subr.mxu0 %v1098
    %1542 = vmatpush1.msra.mxu0 %v1097
    %1543 = vmatprep.subr.mxu0 %v1101
    %1544 = vmatpush1.msra.mxu0 %v1100
    %1545 = vmatprep.subr.mxu0 %v1104
    %1546 = vmatpush1.msra.mxu0 %v1103
    %1547 = vmatprep.subr.mxu0 %v1107
    %1548 = vmatpush1.msra.mxu0 %v1106
    %1549 = vmatprep.subr.mxu0 %v1110
    %1550 = vmatpush1.msra.mxu0 %v1109
    %1551 = vmatprep.subr.mxu0 %v1113
    %1552 = vmatpush1.msra.mxu0 %v1112
    %1553 = vmatprep.subr.mxu0 %v1116
    %1554 = vmatpush1.msra.mxu0 %v1115
    %1555 = vmatprep.subr.mxu0 %v1119
    %1556 = vmatpush1.msra.mxu0 %v1118
    %1557 = vmatprep.subr.mxu0 %v1122
    %1558 = vmatpush1.msra.mxu0 %v1121
    %1559 = vmatprep.subr.mxu0 %v1125
    %1560 = vmatpush1.msra.mxu0 %v1124
    %1561 = vmatprep.subr.mxu0 %v1128
    %1562 = vmatpush1.msra.mxu0 %v1127
    %1563 = vmatprep.subr.mxu0 %v1131
    %1564 = vmatpush1.msra.mxu0 %v1130
    %1565 = vmatprep.subr.mxu0 %v1134
    %1566 = vmatpush1.msra.mxu0 %v1133
    %1567 = vmatprep.subr.mxu0 %v1137
    %1568 = vmatpush1.msra.mxu0 %v1136
    %1569 = vmatprep.subr.mxu0 %v1140
    %1570 = vmatpush1.msra.mxu0 %v1139
    %1571 = vmatprep.subr.mxu0 %v1143
    %1572 = vmatpush1.msra.mxu0 %v1142
    %1573 = vmatprep.subr.mxu0 %v1146
    %1574 = vmatpush1.msra.mxu0 %v1145
    %1575 = vmatprep.subr.mxu0 %v1149
    %1576 = vmatpush1.msra.mxu0 %v1148
    %1577 = vmatprep.subr.mxu0 %v1152
    %1578 = vmatpush1.msra.mxu0 %v1151
    %1579 = vmatprep.subr.mxu0 %v1155
    %1580 = vmatpush1.msra.mxu0 %v1154
    %1581 = vmatprep.subr.mxu0 %v1158
    %1582 = vmatpush1.msra.mxu0 %v1157
    %1583 = vmatprep.subr.mxu0 %v1161
    %1584 = vmatpush1.msra.mxu0 %v1160
    %1585 = vmatprep.subr.mxu0 %v1164
    %1586 = vmatpush1.msra.mxu0 %v1163
    %1587 = vmatprep.subr.mxu0 %v1167
    %1588 = vmatpush1.msra.mxu0 %v1166
    %1589 = vmatprep.subr.mxu0 %v1170
    %1590 = vmatpush1.msra.mxu0 %v1169
    %1591 = vmatprep.subr.mxu0 %v1173
    %1592 = vmatpush1.msra.mxu0 %v1172
    %1593 = vmatprep.subr.mxu0 %v1176
    %1594 = vmatpush1.msra.mxu0 %v1175
    %1595 = vmatprep.subr.mxu0 %v1179
    %1596 = vmatpush1.msra.mxu0 %v1178
    %1597 = vmatprep.subr.mxu0 %v1182
    %1598 = vmatpush1.msra.mxu0 %v1181
    %1599 = vmatprep.mubr.f32.mxu0 %v688
    %1600 = vmatmul.mubr.f32.gmra.mrb[0].mxu0 %v685
    %v1601 = vpop.f32.mrb[0].mxu0
    %v1602 = vadd.f32 %v1525, %v1601
    %v1603 = vpop.f32.mrb[0].mxu0
    %v1604 = vadd.f32 %v1527, %v1603
    %1605 = vmatprep.mubr.f32.mxu0 %v687
    %1606 = vmatmul.mubr.f32.gmra.mrb[0].mxu0 %v684
    %v1607 = vpop.f32.mrb[0].mxu0
    %v1608 = vadd.f32 %v1531, %v1607
    %v1609 = vpop.f32.mrb[0].mxu0
    %v1610 = vadd.f32 %v1533, %v1609
    %1611 = vdwg.mxu0
    %1612 = vmatprep.subr.mxu0 %v1185
    %1613 = vmatpush1.msra.mxu0 %v1184
    %1614 = vmatprep.subr.mxu0 %v1188
    %1615 = vmatpush1.msra.mxu0 %v1187
    %1616 = vmatprep.subr.mxu0 %v1191
    %1617 = vmatpush1.msra.mxu0 %v1190
    %1618 = vmatprep.subr.mxu0 %v1194
    %1619 = vmatpush1.msra.mxu0 %v1193
    %1620 = vmatprep.subr.mxu0 %v1197
    %1621 = vmatpush1.msra.mxu0 %v1196
    %1622 = vmatprep.subr.mxu0 %v1200
    %1623 = vmatpush1.msra.mxu0 %v1199
    %1624 = vmatprep.subr.mxu0 %v1203
    %1625 = vmatpush1.msra.mxu0 %v1202
    %1626 = vmatprep.subr.mxu0 %v1206
    %1627 = vmatpush1.msra.mxu0 %v1205
    %1628 = vmatprep.subr.mxu0 %v1222
    %1629 = vmatpush1.msra.mxu0 %v1219
    %1630 = vmatprep.subr.mxu0 0.0
    %1631 = vmatpush1.msra.mxu0 0.0
    %1632 = vmatprep.subr.mxu0 0.0
    %1633 = vmatpush1.msra.mxu0 0.0
    %1634 = vmatprep.subr.mxu0 0.0
    %1635 = vmatpush1.msra.mxu0 0.0
    %1636 = vmatprep.subr.mxu0 0.0
    %1637 = vmatpush1.msra.mxu0 0.0
    %1638 = vmatprep.subr.mxu0 0.0
    %1639 = vmatpush1.msra.mxu0 0.0
    %1640 = vmatprep.subr.mxu0 0.0
    %1641 = vmatpush1.msra.mxu0 0.0
    %1642 = vmatprep.subr.mxu0 0.0
    %1643 = vmatpush1.msra.mxu0 0.0
    %1644 = vmatprep.subr.mxu0 0.0
    %1645 = vmatpush1.msra.mxu0 0.0
    %1646 = vmatprep.subr.mxu0 0.0
    %1647 = vmatpush1.msra.mxu0 0.0
    %1648 = vmatprep.subr.mxu0 0.0
    %1649 = vmatpush1.msra.mxu0 0.0
    %1650 = vmatprep.subr.mxu0 0.0
    %1651 = vmatpush1.msra.mxu0 0.0
    %1652 = vmatprep.subr.mxu0 0.0
    %1653 = vmatpush1.msra.mxu0 0.0
    %1654 = vmatprep.subr.mxu0 0.0
    %1655 = vmatpush1.msra.mxu0 0.0
    %1656 = vmatprep.subr.mxu0 0.0
    %1657 = vmatpush1.msra.mxu0 0.0
    %1658 = vmatprep.subr.mxu0 0.0
    %1659 = vmatpush1.msra.mxu0 0.0
    %1660 = vmatprep.subr.mxu0 0.0
    %1661 = vmatpush1.msra.mxu0 0.0
    %1662 = vmatprep.subr.mxu0 0.0
    %1663 = vmatpush1.msra.mxu0 0.0
    %1664 = vmatprep.subr.mxu0 0.0
    %1665 = vmatpush1.msra.mxu0 0.0
    %1666 = vmatprep.subr.mxu0 0.0
    %1667 = vmatpush1.msra.mxu0 0.0
    %1668 = vmatprep.subr.mxu0 0.0
    %1669 = vmatpush1.msra.mxu0 0.0
    %1670 = vmatprep.subr.mxu0 0.0
    %1671 = vmatpush1.msra.mxu0 0.0
    %1672 = vmatprep.subr.mxu0 0.0
    %1673 = vmatpush1.msra.mxu0 0.0
    %1674 = vmatprep.subr.mxu0 0.0
    %1675 = vmatpush1.msra.mxu0 0.0
    %1676 = vmatprep.mubr.f32.mxu0 0.0
    %1677 = vmatmul.mubr.f32.gmra.mrb[0].mxu0 %v1213
    %v1678 = vpop.f32.mrb[0].mxu0
    %v1679 = vadd.f32 %v1602, %v1678
    %v1680 = vpop.f32.mrb[0].mxu0
    %v1681 = vadd.f32 %v1604, %v1680
    %1682 = vmatprep.mubr.f32.mxu0 0.0
    %1683 = vmatmul.mubr.f32.gmra.mrb[0].mxu0 %v1216
    %v1684 = vpop.f32.mrb[0].mxu0
    %v1685 = vadd.f32 %v1608, %v1684
    %v1686 = vpop.f32.mrb[0].mxu0
    %v1687 = vadd.f32 %v1610, %v1686
    %1688 = vdwg.mxu0
    %1689 = vmatprep.subr.mxu0 0.0
    %1690 = vmatpush1.msra.mxu0 %v706
    %1691 = vmatprep.subr.mxu0 0.0
    %1692 = vmatpush1.msra.mxu0 %v709
    %1693 = vmatprep.subr.mxu0 0.0
    %1694 = vmatpush1.msra.mxu0 %v712
    %1695 = vmatprep.subr.mxu0 0.0
    %1696 = vmatpush1.msra.mxu0 %v715
    %1697 = vmatprep.subr.mxu0 0.0
    %1698 = vmatpush1.msra.mxu0 %v718
    %1699 = vmatprep.subr.mxu0 0.0
    %1700 = vmatpush1.msra.mxu0 %v721
    %1701 = vmatprep.subr.mxu0 0.0
    %1702 = vmatpush1.msra.mxu0 %v724
    %1703 = vmatprep.subr.mxu0 0.0
    %1704 = vmatpush1.msra.mxu0 %v727
    %1705 = vmatprep.subr.mxu0 0.0
    %1706 = vmatpush1.msra.mxu0 %v730
    %1707 = vmatprep.subr.mxu0 0.0
    %1708 = vmatpush1.msra.mxu0 %v733
    %1709 = vmatprep.subr.mxu0 0.0
    %1710 = vmatpush1.msra.mxu0 %v736
    %1711 = vmatprep.subr.mxu0 0.0
    %1712 = vmatpush1.msra.mxu0 %v739
    %1713 = vmatprep.subr.mxu0 0.0
    %1714 = vmatpush1.msra.mxu0 %v742
    %1715 = vmatprep.subr.mxu0 0.0
    %1716 = vmatpush1.msra.mxu0 %v745
    %1717 = vmatprep.subr.mxu0 0.0
    %1718 = vmatpush1.msra.mxu0 %v748
    %1719 = vmatprep.subr.mxu0 0.0
    %1720 = vmatpush1.msra.mxu0 %v751
    %1721 = vmatprep.subr.mxu0 0.0
    %1722 = vmatpush1.msra.mxu0 %v754
    %1723 = vmatprep.subr.mxu0 0.0
    %1724 = vmatpush1.msra.mxu0 %v757
    %1725 = vmatprep.subr.mxu0 0.0
    %1726 = vmatpush1.msra.mxu0 %v760
    %1727 = vmatprep.subr.mxu0 0.0
    %1728 = vmatpush1.msra.mxu0 %v763
    %1729 = vmatprep.subr.mxu0 0.0
    %1730 = vmatpush1.msra.mxu0 %v766
    %1731 = vmatprep.subr.mxu0 0.0
    %1732 = vmatpush1.msra.mxu0 %v769
    %1733 = vmatprep.subr.mxu0 0.0
    %1734 = vmatpush1.msra.mxu0 %v772
    %1735 = vmatprep.subr.mxu0 0.0
    %1736 = vmatpush1.msra.mxu0 %v775
    %1737 = vmatprep.subr.mxu0 0.0
    %1738 = vmatpush1.msra.mxu0 %v778
    %1739 = vmatprep.subr.mxu0 0.0
    %1740 = vmatpush1.msra.mxu0 %v781
    %1741 = vmatprep.subr.mxu0 0.0
    %1742 = vmatpush1.msra.mxu0 %v784
    %1743 = vmatprep.subr.mxu0 0.0
    %1744 = vmatpush1.msra.mxu0 %v787
    %1745 = vmatprep.subr.mxu0 0.0
    %1746 = vmatpush1.msra.mxu0 %v790
    %1747 = vmatprep.subr.mxu0 0.0
    %1748 = vmatpush1.msra.mxu0 %v793
    %1749 = vmatprep.subr.mxu0 0.0
    %1750 = vmatpush1.msra.mxu0 %v796
    %1751 = vmatprep.subr.mxu0 0.0
    %1752 = vmatpush1.msra.mxu0 %v799
    %1753 = vmatprep.mubr.f32.mxu0 %v622
    %1754 = vmatmul.mubr.f32.gmra.mrb[0].mxu0 %v621
    %v1755 = vpop.f32.mrb[0].mxu0
    %v1756 = vadd.f32 0.0, %v1755
    %v1757 = vpop.f32.mrb[0].mxu0
    %1758 = vmatprep.mubr.f32.mxu0 %v626
    %1759 = vmatmul.mubr.f32.gmra.mrb[0].mxu0 %v625
    %v1760 = vpop.f32.mrb[0].mxu0
    %v1761 = vadd.f32 0.0, %v1760
    %v1762 = vpop.f32.mrb[0].mxu0
    %1763 = vdwg.mxu0
    %1764 = vmatprep.subr.mxu0 0.0
    %1765 = vmatpush1.msra.mxu0 %v802
    %1766 = vmatprep.subr.mxu0 0.0
    %1767 = vmatpush1.msra.mxu0 %v805
    %1768 = vmatprep.subr.mxu0 0.0
    %1769 = vmatpush1.msra.mxu0 %v808
    %1770 = vmatprep.subr.mxu0 0.0
    %1771 = vmatpush1.msra.mxu0 %v811
    %1772 = vmatprep.subr.mxu0 0.0
    %1773 = vmatpush1.msra.mxu0 %v814
    %1774 = vmatprep.subr.mxu0 0.0
    %1775 = vmatpush1.msra.mxu0 %v817
    %1776 = vmatprep.subr.mxu0 0.0
    %1777 = vmatpush1.msra.mxu0 %v820
    %1778 = vmatprep.subr.mxu0 0.0
    %1779 = vmatpush1.msra.mxu0 %v823
    %1780 = vmatprep.subr.mxu0 0.0
    %1781 = vmatpush1.msra.mxu0 %v826
    %1782 = vmatprep.subr.mxu0 0.0
    %1783 = vmatpush1.msra.mxu0 %v829
    %1784 = vmatprep.subr.mxu0 0.0
    %1785 = vmatpush1.msra.mxu0 %v832
    %1786 = vmatprep.subr.mxu0 0.0
    %1787 = vmatpush1.msra.mxu0 %v835
    %1788 = vmatprep.subr.mxu0 0.0
    %1789 = vmatpush1.msra.mxu0 %v838
    %1790 = vmatprep.subr.mxu0 0.0
    %1791 = vmatpush1.msra.mxu0 %v841
    %1792 = vmatprep.subr.mxu0 0.0
    %1793 = vmatpush1.msra.mxu0 %v844
    %1794 = vmatprep.subr.mxu0 0.0
    %1795 = vmatpush1.msra.mxu0 %v847
    %1796 = vmatprep.subr.mxu0 0.0
    %1797 = vmatpush1.msra.mxu0 %v850
    %1798 = vmatprep.subr.mxu0 0.0
    %1799 = vmatpush1.msra.mxu0 %v853
    %1800 = vmatprep.subr.mxu0 0.0
    %1801 = vmatpush1.msra.mxu0 %v856
    %1802 = vmatprep.subr.mxu0 0.0
    %1803 = vmatpush1.msra.mxu0 %v859
    %1804 = vmatprep.subr.mxu0 0.0
    %1805 = vmatpush1.msra.mxu0 %v862
    %1806 = vmatprep.subr.mxu0 0.0
    %1807 = vmatpush1.msra.mxu0 %v865
    %1808 = vmatprep.subr.mxu0 0.0
    %1809 = vmatpush1.msra.mxu0 %v868
    %1810 = vmatprep.subr.mxu0 0.0
    %1811 = vmatpush1.msra.mxu0 %v871
    %1812 = vmatprep.subr.mxu0 0.0
    %1813 = vmatpush1.msra.mxu0 %v874
    %1814 = vmatprep.subr.mxu0 0.0
    %1815 = vmatpush1.msra.mxu0 %v877
    %1816 = vmatprep.subr.mxu0 0.0
    %1817 = vmatpush1.msra.mxu0 %v880
    %1818 = vmatprep.subr.mxu0 0.0
    %1819 = vmatpush1.msra.mxu0 %v883
    %1820 = vmatprep.subr.mxu0 0.0
    %1821 = vmatpush1.msra.mxu0 %v886
    %1822 = vmatprep.subr.mxu0 0.0
    %1823 = vmatpush1.msra.mxu0 %v889
    %1824 = vmatprep.subr.mxu0 0.0
    %1825 = vmatpush1.msra.mxu0 %v892
    %1826 = vmatprep.subr.mxu0 0.0
    %1827 = vmatpush1.msra.mxu0 %v895
    %1828 = vmatprep.mubr.f32.mxu0 %v700
    %1829 = vmatmul.mubr.f32.gmra.mrb[0].mxu0 %v623
    %v1830 = vpop.f32.mrb[0].mxu0
    %v1831 = vadd.f32 %v1756, %v1830
    %v1832 = vpop.f32.mrb[0].mxu0
    %1833 = vmatprep.mubr.f32.mxu0 %v701
    %1834 = vmatmul.mubr.f32.gmra.mrb[0].mxu0 %v627
    %v1835 = vpop.f32.mrb[0].mxu0
    %v1836 = vadd.f32 %v1761, %v1835
    %v1837 = vpop.f32.mrb[0].mxu0
    %1838 = vdwg.mxu0
    %1839 = vmatprep.subr.mxu0 0.0
    %1840 = vmatpush1.msra.mxu0 %v898
    %1841 = vmatprep.subr.mxu0 0.0
    %1842 = vmatpush1.msra.mxu0 %v901
    %1843 = vmatprep.subr.mxu0 0.0
    %1844 = vmatpush1.msra.mxu0 %v904
    %1845 = vmatprep.subr.mxu0 0.0
    %1846 = vmatpush1.msra.mxu0 %v907
    %1847 = vmatprep.subr.mxu0 0.0
    %1848 = vmatpush1.msra.mxu0 %v910
    %1849 = vmatprep.subr.mxu0 0.0
    %1850 = vmatpush1.msra.mxu0 %v913
    %1851 = vmatprep.subr.mxu0 0.0
    %1852 = vmatpush1.msra.mxu0 %v916
    %1853 = vmatprep.subr.mxu0 0.0
    %1854 = vmatpush1.msra.mxu0 %v919
    %1855 = vmatprep.subr.mxu0 0.0
    %1856 = vmatpush1.msra.mxu0 %v922
    %1857 = vmatprep.subr.mxu0 0.0
    %1858 = vmatpush1.msra.mxu0 %v925
    %1859 = vmatprep.subr.mxu0 0.0
    %1860 = vmatpush1.msra.mxu0 %v928
    %1861 = vmatprep.subr.mxu0 0.0
    %1862 = vmatpush1.msra.mxu0 %v931
    %1863 = vmatprep.subr.mxu0 0.0
    %1864 = vmatpush1.msra.mxu0 %v934
    %1865 = vmatprep.subr.mxu0 0.0
    %1866 = vmatpush1.msra.mxu0 %v937
    %1867 = vmatprep.subr.mxu0 0.0
    %1868 = vmatpush1.msra.mxu0 %v940
    %1869 = vmatprep.subr.mxu0 0.0
    %1870 = vmatpush1.msra.mxu0 %v943
    %1871 = vmatprep.subr.mxu0 0.0
    %1872 = vmatpush1.msra.mxu0 %v946
    %1873 = vmatprep.subr.mxu0 0.0
    %1874 = vmatpush1.msra.mxu0 %v949
    %1875 = vmatprep.subr.mxu0 0.0
    %1876 = vmatpush1.msra.mxu0 %v952
    %1877 = vmatprep.subr.mxu0 0.0
    %1878 = vmatpush1.msra.mxu0 %v955
    %1879 = vmatprep.subr.mxu0 0.0
    %1880 = vmatpush1.msra.mxu0 %v958
    %1881 = vmatprep.subr.mxu0 0.0
    %1882 = vmatpush1.msra.mxu0 %v961
    %1883 = vmatprep.subr.mxu0 0.0
    %1884 = vmatpush1.msra.mxu0 %v964
    %1885 = vmatprep.subr.mxu0 0.0
    %1886 = vmatpush1.msra.mxu0 %v967
    %1887 = vmatprep.subr.mxu0 0.0
    %1888 = vmatpush1.msra.mxu0 %v970
    %1889 = vmatprep.subr.mxu0 0.0
    %1890 = vmatpush1.msra.mxu0 %v973
    %1891 = vmatprep.subr.mxu0 0.0
    %1892 = vmatpush1.msra.mxu0 %v976
    %1893 = vmatprep.subr.mxu0 0.0
    %1894 = vmatpush1.msra.mxu0 %v979
    %1895 = vmatprep.subr.mxu0 0.0
    %1896 = vmatpush1.msra.mxu0 %v982
    %1897 = vmatprep.subr.mxu0 0.0
    %1898 = vmatpush1.msra.mxu0 %v985
    %1899 = vmatprep.subr.mxu0 0.0
    %1900 = vmatpush1.msra.mxu0 %v988
    %1901 = vmatprep.subr.mxu0 0.0
    %1902 = vmatpush1.msra.mxu0 %v991
    %1903 = vmatprep.mubr.f32.mxu0 %v667
    %1904 = vmatmul.mubr.f32.gmra.mrb[0].mxu0 %v666
    %v1905 = vpop.f32.mrb[0].mxu0
    %v1906 = vadd.f32 %v1831, %v1905
    %v1907 = vpop.f32.mrb[0].mxu0
    %1908 = vmatprep.mubr.f32.mxu0 %v670
    %1909 = vmatmul.mubr.f32.gmra.mrb[0].mxu0 %v669
    %v1910 = vpop.f32.mrb[0].mxu0
    %v1911 = vadd.f32 %v1836, %v1910
    %v1912 = vpop.f32.mrb[0].mxu0
    %1913 = vdwg.mxu0
    %1914 = vmatprep.subr.mxu0 0.0
    %1915 = vmatpush1.msra.mxu0 %v994
    %1916 = vmatprep.subr.mxu0 0.0
    %1917 = vmatpush1.msra.mxu0 %v997
    %1918 = vmatprep.subr.mxu0 0.0
    %1919 = vmatpush1.msra.mxu0 %v1000
    %1920 = vmatprep.subr.mxu0 0.0
    %1921 = vmatpush1.msra.mxu0 %v1003
    %1922 = vmatprep.subr.mxu0 0.0
    %1923 = vmatpush1.msra.mxu0 %v1006
    %1924 = vmatprep.subr.mxu0 0.0
    %1925 = vmatpush1.msra.mxu0 %v1009
    %1926 = vmatprep.subr.mxu0 0.0
    %1927 = vmatpush1.msra.mxu0 %v1012
    %1928 = vmatprep.subr.mxu0 0.0
    %1929 = vmatpush1.msra.mxu0 %v1015
    %1930 = vmatprep.subr.mxu0 0.0
    %1931 = vmatpush1.msra.mxu0 %v1018
    %1932 = vmatprep.subr.mxu0 0.0
    %1933 = vmatpush1.msra.mxu0 %v1021
    %1934 = vmatprep.subr.mxu0 0.0
    %1935 = vmatpush1.msra.mxu0 %v1024
    %1936 = vmatprep.subr.mxu0 0.0
    %1937 = vmatpush1.msra.mxu0 %v1027
    %1938 = vmatprep.subr.mxu0 0.0
    %1939 = vmatpush1.msra.mxu0 %v1030
    %1940 = vmatprep.subr.mxu0 0.0
    %1941 = vmatpush1.msra.mxu0 %v1033
    %1942 = vmatprep.subr.mxu0 0.0
    %1943 = vmatpush1.msra.mxu0 %v1036
    %1944 = vmatprep.subr.mxu0 0.0
    %1945 = vmatpush1.msra.mxu0 %v1039
    %1946 = vmatprep.subr.mxu0 0.0
    %1947 = vmatpush1.msra.mxu0 %v1042
    %1948 = vmatprep.subr.mxu0 0.0
    %1949 = vmatpush1.msra.mxu0 %v1045
    %1950 = vmatprep.subr.mxu0 0.0
    %1951 = vmatpush1.msra.mxu0 %v1048
    %1952 = vmatprep.subr.mxu0 0.0
    %1953 = vmatpush1.msra.mxu0 %v1051
    %1954 = vmatprep.subr.mxu0 0.0
    %1955 = vmatpush1.msra.mxu0 %v1054
    %1956 = vmatprep.subr.mxu0 0.0
    %1957 = vmatpush1.msra.mxu0 %v1057
    %1958 = vmatprep.subr.mxu0 0.0
    %1959 = vmatpush1.msra.mxu0 %v1060
    %1960 = vmatprep.subr.mxu0 0.0
    %1961 = vmatpush1.msra.mxu0 %v1063
    %1962 = vmatprep.subr.mxu0 0.0
    %1963 = vmatpush1.msra.mxu0 %v1066
    %1964 = vmatprep.subr.mxu0 0.0
    %1965 = vmatpush1.msra.mxu0 %v1069
    %1966 = vmatprep.subr.mxu0 0.0
    %1967 = vmatpush1.msra.mxu0 %v1072
    %1968 = vmatprep.subr.mxu0 0.0
    %1969 = vmatpush1.msra.mxu0 %v1075
    %1970 = vmatprep.subr.mxu0 0.0
    %1971 = vmatpush1.msra.mxu0 %v1078
    %1972 = vmatprep.subr.mxu0 0.0
    %1973 = vmatpush1.msra.mxu0 %v1081
    %1974 = vmatprep.subr.mxu0 0.0
    %1975 = vmatpush1.msra.mxu0 %v1084
    %1976 = vmatprep.subr.mxu0 0.0
    %1977 = vmatpush1.msra.mxu0 %v1087
    %1978 = vmatprep.mubr.f32.mxu0 %v682
    %1979 = vmatmul.mubr.f32.gmra.mrb[0].mxu0 %v668
    %v1980 = vpop.f32.mrb[0].mxu0
    %v1981 = vadd.f32 %v1906, %v1980
    %v1982 = vpop.f32.mrb[0].mxu0
    %1983 = vmatprep.mubr.f32.mxu0 %v681
    %1984 = vmatmul.mubr.f32.gmra.mrb[0].mxu0 %v671
    %v1985 = vpop.f32.mrb[0].mxu0
    %v1986 = vadd.f32 %v1911, %v1985
    %v1987 = vpop.f32.mrb[0].mxu0
    %1988 = vdwg.mxu0
    %1989 = vmatprep.subr.mxu0 0.0
    %1990 = vmatpush1.msra.mxu0 %v1090
    %1991 = vmatprep.subr.mxu0 0.0
    %1992 = vmatpush1.msra.mxu0 %v1093
    %1993 = vmatprep.subr.mxu0 0.0
    %1994 = vmatpush1.msra.mxu0 %v1096
    %1995 = vmatprep.subr.mxu0 0.0
    %1996 = vmatpush1.msra.mxu0 %v1099
    %1997 = vmatprep.subr.mxu0 0.0
    %1998 = vmatpush1.msra.mxu0 %v1102
    %1999 = vmatprep.subr.mxu0 0.0
    %2000 = vmatpush1.msra.mxu0 %v1105
    %2001 = vmatprep.subr.mxu0 0.0
    %2002 = vmatpush1.msra.mxu0 %v1108
    %2003 = vmatprep.subr.mxu0 0.0
    %2004 = vmatpush1.msra.mxu0 %v1111
    %2005 = vmatprep.subr.mxu0 0.0
    %2006 = vmatpush1.msra.mxu0 %v1114
    %2007 = vmatprep.subr.mxu0 0.0
    %2008 = vmatpush1.msra.mxu0 %v1117
    %2009 = vmatprep.subr.mxu0 0.0
    %2010 = vmatpush1.msra.mxu0 %v1120
    %2011 = vmatprep.subr.mxu0 0.0
    %2012 = vmatpush1.msra.mxu0 %v1123
    %2013 = vmatprep.subr.mxu0 0.0
    %2014 = vmatpush1.msra.mxu0 %v1126
    %2015 = vmatprep.subr.mxu0 0.0
    %2016 = vmatpush1.msra.mxu0 %v1129
    %2017 = vmatprep.subr.mxu0 0.0
    %2018 = vmatpush1.msra.mxu0 %v1132
    %2019 = vmatprep.subr.mxu0 0.0
    %2020 = vmatpush1.msra.mxu0 %v1135
    %2021 = vmatprep.subr.mxu0 0.0
    %2022 = vmatpush1.msra.mxu0 %v1138
    %2023 = vmatprep.subr.mxu0 0.0
    %2024 = vmatpush1.msra.mxu0 %v1141
    %2025 = vmatprep.subr.mxu0 0.0
    %2026 = vmatpush1.msra.mxu0 %v1144
    %2027 = vmatprep.subr.mxu0 0.0
    %2028 = vmatpush1.msra.mxu0 %v1147
    %2029 = vmatprep.subr.mxu0 0.0
    %2030 = vmatpush1.msra.mxu0 %v1150
    %2031 = vmatprep.subr.mxu0 0.0
    %2032 = vmatpush1.msra.mxu0 %v1153
    %2033 = vmatprep.subr.mxu0 0.0
    %2034 = vmatpush1.msra.mxu0 %v1156
    %2035 = vmatprep.subr.mxu0 0.0
    %2036 = vmatpush1.msra.mxu0 %v1159
    %2037 = vmatprep.subr.mxu0 0.0
    %2038 = vmatpush1.msra.mxu0 %v1162
    %2039 = vmatprep.subr.mxu0 0.0
    %2040 = vmatpush1.msra.mxu0 %v1165
    %2041 = vmatprep.subr.mxu0 0.0
    %2042 = vmatpush1.msra.mxu0 %v1168
    %2043 = vmatprep.subr.mxu0 0.0
    %2044 = vmatpush1.msra.mxu0 %v1171
    %2045 = vmatprep.subr.mxu0 0.0
    %2046 = vmatpush1.msra.mxu0 %v1174
    %2047 = vmatprep.subr.mxu0 0.0
    %2048 = vmatpush1.msra.mxu0 %v1177
    %2049 = vmatprep.subr.mxu0 0.0
    %2050 = vmatpush1.msra.mxu0 %v1180
    %2051 = vmatprep.subr.mxu0 0.0
    %2052 = vmatpush1.msra.mxu0 %v1183
    %2053 = vmatprep.mubr.f32.mxu0 %v688
    %2054 = vmatmul.mubr.f32.gmra.mrb[0].mxu0 %v685
    %v2055 = vpop.f32.mrb[0].mxu0
    %v2056 = vadd.f32 %v1981, %v2055
    %v2057 = vpop.f32.mrb[0].mxu0
    %2058 = vmatprep.mubr.f32.mxu0 %v687
    %2059 = vmatmul.mubr.f32.gmra.mrb[0].mxu0 %v684
    %v2060 = vpop.f32.mrb[0].mxu0
    %v2061 = vadd.f32 %v1986, %v2060
    %v2062 = vpop.f32.mrb[0].mxu0
    %2063 = vdwg.mxu0
    %2064 = vmatprep.subr.mxu0 0.0
    %2065 = vmatpush1.msra.mxu0 %v1186
    %2066 = vmatprep.subr.mxu0 0.0
    %2067 = vmatpush1.msra.mxu0 %v1189
    %2068 = vmatprep.subr.mxu0 0.0
    %2069 = vmatpush1.msra.mxu0 %v1192
    %2070 = vmatprep.subr.mxu0 0.0
    %2071 = vmatpush1.msra.mxu0 %v1195
    %2072 = vmatprep.subr.mxu0 0.0
    %2073 = vmatpush1.msra.mxu0 %v1198
    %2074 = vmatprep.subr.mxu0 0.0
    %2075 = vmatpush1.msra.mxu0 %v1201
    %2076 = vmatprep.subr.mxu0 0.0
    %2077 = vmatpush1.msra.mxu0 %v1204
    %2078 = vmatprep.subr.mxu0 0.0
    %2079 = vmatpush1.msra.mxu0 %v1207
    %2080 = vmatprep.subr.mxu0 0.0
    %2081 = vmatpush1.msra.mxu0 %v1225
    %2082 = vmatprep.subr.mxu0 0.0
    %2083 = vmatpush1.msra.mxu0 0.0
    %2084 = vmatprep.subr.mxu0 0.0
    %2085 = vmatpush1.msra.mxu0 0.0
    %2086 = vmatprep.subr.mxu0 0.0
    %2087 = vmatpush1.msra.mxu0 0.0
    %2088 = vmatprep.subr.mxu0 0.0
    %2089 = vmatpush1.msra.mxu0 0.0
    %2090 = vmatprep.subr.mxu0 0.0
    %2091 = vmatpush1.msra.mxu0 0.0
    %2092 = vmatprep.subr.mxu0 0.0
    %2093 = vmatpush1.msra.mxu0 0.0
    %2094 = vmatprep.subr.mxu0 0.0
    %2095 = vmatpush1.msra.mxu0 0.0
    %2096 = vmatprep.subr.mxu0 0.0
    %2097 = vmatpush1.msra.mxu0 0.0
    %2098 = vmatprep.subr.mxu0 0.0
    %2099 = vmatpush1.msra.mxu0 0.0
    %2100 = vmatprep.subr.mxu0 0.0
    %2101 = vmatpush1.msra.mxu0 0.0
    %2102 = vmatprep.subr.mxu0 0.0
    %2103 = vmatpush1.msra.mxu0 0.0
    %2104 = vmatprep.subr.mxu0 0.0
    %2105 = vmatpush1.msra.mxu0 0.0
    %2106 = vmatprep.subr.mxu0 0.0
    %2107 = vmatpush1.msra.mxu0 0.0
    %2108 = vmatprep.subr.mxu0 0.0
    %2109 = vmatpush1.msra.mxu0 0.0
    %2110 = vmatprep.subr.mxu0 0.0
    %2111 = vmatpush1.msra.mxu0 0.0
    %2112 = vmatprep.subr.mxu0 0.0
    %2113 = vmatpush1.msra.mxu0 0.0
    %2114 = vmatprep.subr.mxu0 0.0
    %2115 = vmatpush1.msra.mxu0 0.0
    %2116 = vmatprep.subr.mxu0 0.0
    %2117 = vmatpush1.msra.mxu0 0.0
    %2118 = vmatprep.subr.mxu0 0.0
    %2119 = vmatpush1.msra.mxu0 0.0
    %2120 = vmatprep.subr.mxu0 0.0
    %2121 = vmatpush1.msra.mxu0 0.0
    %2122 = vmatprep.subr.mxu0 0.0
    %2123 = vmatpush1.msra.mxu0 0.0
    %2124 = vmatprep.subr.mxu0 0.0
    %2125 = vmatpush1.msra.mxu0 0.0
    %2126 = vmatprep.subr.mxu0 0.0
    %2127 = vmatpush1.msra.mxu0 0.0
    %2128 = vmatprep.mubr.f32.mxu0 0.0
    %2129 = vmatmul.mubr.f32.gmra.mrb[0].mxu0 %v1213
    %v2130 = vpop.f32.mrb[0].mxu0
    %v2131 = vadd.f32 %v2056, %v2130
    %v2132 = vpop.f32.mrb[0].mxu0
    %2133 = vmatprep.mubr.f32.mxu0 0.0
    %2134 = vmatmul.mubr.f32.gmra.mrb[0].mxu0 %v1216
    %v2135 = vpop.f32.mrb[0].mxu0
    %v2136 = vadd.f32 %v2061, %v2135
    %v2137 = vpop.f32.mrb[0].mxu0
    %2138 = vdwg.mxu0
    %v2139 = vmax.f32 %v1679, 0.0
    %v2140 = vmax.f32 %v1681, 0.0
    %v2141 = vmax.f32 %v2131, 0.0
    %v2142 = vmax.f32 %v1685, 0.0
    %v2143 = vmax.f32 %v1687, 0.0
    %v2144 = vmax.f32 %v2136, 0.0
    %v2145 = vld [vmem:[%s4] sm:$0x3f]
    %vm2146 = vcmask 97280
    %v2148 = vsel %vm2146, %v2145, 0
    %vm2150 = vcmask 1043456
    %v2152 = vsel %vm2150, %v2142, 0
    %v2155 = vsel %vm2150, %v2143, 0
    %v2158 = vsel %vm2150, %v2144, 0
    %2160 = vmatprep.subr.mxu0 %v2140
    %2161 = vmatpush1.msra.mxu0 %v2139
    %2162 = vmatprep.subr.mxu0 %v2155
    %2163 = vmatpush1.msra.mxu0 %v2152
    %2164 = vmatprep.subr.mxu0 0.0
    %2165 = vmatpush1.msra.mxu0 0.0
    %2166 = vmatprep.subr.mxu0 0.0
    %2167 = vmatpush1.msra.mxu0 0.0
    %2168 = vmatprep.subr.mxu0 0.0
    %2169 = vmatpush1.msra.mxu0 0.0
    %2170 = vmatprep.subr.mxu0 0.0
    %2171 = vmatpush1.msra.mxu0 0.0
    %2172 = vmatprep.subr.mxu0 0.0
    %2173 = vmatpush1.msra.mxu0 0.0
    %2174 = vmatprep.subr.mxu0 0.0
    %2175 = vmatpush1.msra.mxu0 0.0
    %2176 = vmatprep.subr.mxu0 0.0
    %2177 = vmatpush1.msra.mxu0 0.0
    %2178 = vmatprep.subr.mxu0 0.0
    %2179 = vmatpush1.msra.mxu0 0.0
    %2180 = vmatprep.subr.mxu0 0.0
    %2181 = vmatpush1.msra.mxu0 0.0
    %2182 = vmatprep.subr.mxu0 0.0
    %2183 = vmatpush1.msra.mxu0 0.0
    %2184 = vmatprep.subr.mxu0 0.0
    %2185 = vmatpush1.msra.mxu0 0.0
    %2186 = vmatprep.subr.mxu0 0.0
    %2187 = vmatpush1.msra.mxu0 0.0
    %2188 = vmatprep.subr.mxu0 0.0
    %2189 = vmatpush1.msra.mxu0 0.0
    %2190 = vmatprep.subr.mxu0 0.0
    %2191 = vmatpush1.msra.mxu0 0.0
    %2192 = vmatprep.subr.mxu0 0.0
    %2193 = vmatpush1.msra.mxu0 0.0
    %2194 = vmatprep.subr.mxu0 0.0
    %2195 = vmatpush1.msra.mxu0 0.0
    %2196 = vmatprep.subr.mxu0 0.0
    %2197 = vmatpush1.msra.mxu0 0.0
    %2198 = vmatprep.subr.mxu0 0.0
    %2199 = vmatpush1.msra.mxu0 0.0
    %2200 = vmatprep.subr.mxu0 0.0
    %2201 = vmatpush1.msra.mxu0 0.0
    %2202 = vmatprep.subr.mxu0 0.0
    %2203 = vmatpush1.msra.mxu0 0.0
    %2204 = vmatprep.subr.mxu0 0.0
    %2205 = vmatpush1.msra.mxu0 0.0
    %2206 = vmatprep.subr.mxu0 0.0
    %2207 = vmatpush1.msra.mxu0 0.0
    %2208 = vmatprep.subr.mxu0 0.0
    %2209 = vmatpush1.msra.mxu0 0.0
    %2210 = vmatprep.subr.mxu0 0.0
    %2211 = vmatpush1.msra.mxu0 0.0
    %2212 = vmatprep.subr.mxu0 0.0
    %2213 = vmatpush1.msra.mxu0 0.0
    %2214 = vmatprep.subr.mxu0 0.0
    %2215 = vmatpush1.msra.mxu0 0.0
    %2216 = vmatprep.subr.mxu0 0.0
    %2217 = vmatpush1.msra.mxu0 0.0
    %2218 = vmatprep.subr.mxu0 0.0
    %2219 = vmatpush1.msra.mxu0 0.0
    %2220 = vmatprep.subr.mxu0 0.0
    %2221 = vmatpush1.msra.mxu0 0.0
    %2222 = vmatprep.subr.mxu0 0.0
    %2223 = vmatpush1.msra.mxu0 0.0
    %2224 = vmatprep.mubr.f32.mxu0 0.0
    %2225 = vmatmul.mubr.f32.gmra.mrb[0].mxu0 %v2148
    %v2226 = vpop.f32.mrb[0].mxu0
    %v2227 = vadd.f32 0.0, %v2226
    %v2228 = vpop.f32.mrb[0].mxu0
    %v2229 = vadd.f32 0.0, %v2228
    %2230 = vdwg.mxu0
    %2231 = vmatprep.subr.mxu0 0.0
    %2232 = vmatpush1.msra.mxu0 %v2141
    %2233 = vmatprep.subr.mxu0 0.0
    %2234 = vmatpush1.msra.mxu0 %v2158
    %2235 = vmatprep.subr.mxu0 0.0
    %2236 = vmatpush1.msra.mxu0 0.0
    %2237 = vmatprep.subr.mxu0 0.0
    %2238 = vmatpush1.msra.mxu0 0.0
    %2239 = vmatprep.subr.mxu0 0.0
    %2240 = vmatpush1.msra.mxu0 0.0
    %2241 = vmatprep.subr.mxu0 0.0
    %2242 = vmatpush1.msra.mxu0 0.0
    %2243 = vmatprep.subr.mxu0 0.0
    %2244 = vmatpush1.msra.mxu0 0.0
    %2245 = vmatprep.subr.mxu0 0.0
    %2246 = vmatpush1.msra.mxu0 0.0
    %2247 = vmatprep.subr.mxu0 0.0
    %2248 = vmatpush1.msra.mxu0 0.0
    %2249 = vmatprep.subr.mxu0 0.0
    %2250 = vmatpush1.msra.mxu0 0.0
    %2251 = vmatprep.subr.mxu0 0.0
    %2252 = vmatpush1.msra.mxu0 0.0
    %2253 = vmatprep.subr.mxu0 0.0
    %2254 = vmatpush1.msra.mxu0 0.0
    %2255 = vmatprep.subr.mxu0 0.0
    %2256 = vmatpush1.msra.mxu0 0.0
    %2257 = vmatprep.subr.mxu0 0.0
    %2258 = vmatpush1.msra.mxu0 0.0
    %2259 = vmatprep.subr.mxu0 0.0
    %2260 = vmatpush1.msra.mxu0 0.0
    %2261 = vmatprep.subr.mxu0 0.0
    %2262 = vmatpush1.msra.mxu0 0.0
    %2263 = vmatprep.subr.mxu0 0.0
    %2264 = vmatpush1.msra.mxu0 0.0
    %2265 = vmatprep.subr.mxu0 0.0
    %2266 = vmatpush1.msra.mxu0 0.0
    %2267 = vmatprep.subr.mxu0 0.0
    %2268 = vmatpush1.msra.mxu0 0.0
    %2269 = vmatprep.subr.mxu0 0.0
    %2270 = vmatpush1.msra.mxu0 0.0
    %2271 = vmatprep.subr.mxu0 0.0
    %2272 = vmatpush1.msra.mxu0 0.0
    %2273 = vmatprep.subr.mxu0 0.0
    %2274 = vmatpush1.msra.mxu0 0.0
    %2275 = vmatprep.subr.mxu0 0.0
    %2276 = vmatpush1.msra.mxu0 0.0
    %2277 = vmatprep.subr.mxu0 0.0
    %2278 = vmatpush1.msra.mxu0 0.0
    %2279 = vmatprep.subr.mxu0 0.0
    %2280 = vmatpush1.msra.mxu0 0.0
    %2281 = vmatprep.subr.mxu0 0.0
    %2282 = vmatpush1.msra.mxu0 0.0
    %2283 = vmatprep.subr.mxu0 0.0
    %2284 = vmatpush1.msra.mxu0 0.0
    %2285 = vmatprep.subr.mxu0 0.0
    %2286 = vmatpush1.msra.mxu0 0.0
    %2287 = vmatprep.subr.mxu0 0.0
    %2288 = vmatpush1.msra.mxu0 0.0
    %2289 = vmatprep.subr.mxu0 0.0
    %2290 = vmatpush1.msra.mxu0 0.0
    %2291 = vmatprep.subr.mxu0 0.0
    %2292 = vmatpush1.msra.mxu0 0.0
    %2293 = vmatprep.subr.mxu0 0.0
    %2294 = vmatpush1.msra.mxu0 0.0
    %2295 = vmatprep.mubr.f32.mxu0 0.0
    %2296 = vmatmul.mubr.f32.gmra.mrb[0].mxu0 %v2148
    %v2297 = vpop.f32.mrb[0].mxu0
    %v2298 = vadd.f32 0.0, %v2297
    %v2299 = vpop.f32.mrb[0].mxu0
    %2300 = vdwg.mxu0
    %s2301 = scalar_lea.vmem %s4, 8
    %v2302 = vld [vmem:[%s2301] sm:$0x3f]
    %v2304 = vsel %vm2146, %v2302, 0
    %2306 = vmatprep.subr.mxu0 %v2140
    %2307 = vmatpush1.msra.mxu0 %v2139
    %2308 = vmatprep.subr.mxu0 %v2155
    %2309 = vmatpush1.msra.mxu0 %v2152
    %2310 = vmatprep.subr.mxu0 0.0
    %2311 = vmatpush1.msra.mxu0 0.0
    %2312 = vmatprep.subr.mxu0 0.0
    %2313 = vmatpush1.msra.mxu0 0.0
    %2314 = vmatprep.subr.mxu0 0.0
    %2315 = vmatpush1.msra.mxu0 0.0
    %2316 = vmatprep.subr.mxu0 0.0
    %2317 = vmatpush1.msra.mxu0 0.0
    %2318 = vmatprep.subr.mxu0 0.0
    %2319 = vmatpush1.msra.mxu0 0.0
    %2320 = vmatprep.subr.mxu0 0.0
    %2321 = vmatpush1.msra.mxu0 0.0
    %2322 = vmatprep.subr.mxu0 0.0
    %2323 = vmatpush1.msra.mxu0 0.0
    %2324 = vmatprep.subr.mxu0 0.0
    %2325 = vmatpush1.msra.mxu0 0.0
    %2326 = vmatprep.subr.mxu0 0.0
    %2327 = vmatpush1.msra.mxu0 0.0
    %2328 = vmatprep.subr.mxu0 0.0
    %2329 = vmatpush1.msra.mxu0 0.0
    %2330 = vmatprep.subr.mxu0 0.0
    %2331 = vmatpush1.msra.mxu0 0.0
    %2332 = vmatprep.subr.mxu0 0.0
    %2333 = vmatpush1.msra.mxu0 0.0
    %2334 = vmatprep.subr.mxu0 0.0
    %2335 = vmatpush1.msra.mxu0 0.0
    %2336 = vmatprep.subr.mxu0 0.0
    %2337 = vmatpush1.msra.mxu0 0.0
    %2338 = vmatprep.subr.mxu0 0.0
    %2339 = vmatpush1.msra.mxu0 0.0
    %2340 = vmatprep.subr.mxu0 0.0
    %2341 = vmatpush1.msra.mxu0 0.0
    %2342 = vmatprep.subr.mxu0 0.0
    %2343 = vmatpush1.msra.mxu0 0.0
    %2344 = vmatprep.subr.mxu0 0.0
    %2345 = vmatpush1.msra.mxu0 0.0
    %2346 = vmatprep.subr.mxu0 0.0
    %2347 = vmatpush1.msra.mxu0 0.0
    %2348 = vmatprep.subr.mxu0 0.0
    %2349 = vmatpush1.msra.mxu0 0.0
    %2350 = vmatprep.subr.mxu0 0.0
    %2351 = vmatpush1.msra.mxu0 0.0
    %2352 = vmatprep.subr.mxu0 0.0
    %2353 = vmatpush1.msra.mxu0 0.0
    %2354 = vmatprep.subr.mxu0 0.0
    %2355 = vmatpush1.msra.mxu0 0.0
    %2356 = vmatprep.subr.mxu0 0.0
    %2357 = vmatpush1.msra.mxu0 0.0
    %2358 = vmatprep.subr.mxu0 0.0
    %2359 = vmatpush1.msra.mxu0 0.0
    %2360 = vmatprep.subr.mxu0 0.0
    %2361 = vmatpush1.msra.mxu0 0.0
    %2362 = vmatprep.subr.mxu0 0.0
    %2363 = vmatpush1.msra.mxu0 0.0
    %2364 = vmatprep.subr.mxu0 0.0
    %2365 = vmatpush1.msra.mxu0 0.0
    %2366 = vmatprep.subr.mxu0 0.0
    %2367 = vmatpush1.msra.mxu0 0.0
    %2368 = vmatprep.subr.mxu0 0.0
    %2369 = vmatpush1.msra.mxu0 0.0
    %2370 = vmatprep.mubr.f32.mxu0 0.0
    %2371 = vmatmul.mubr.f32.gmra.mrb[0].mxu0 %v2304
    %v2372 = vpop.f32.mrb[0].mxu0
    %v2373 = vadd.f32 0.0, %v2372
    %v2374 = vpop.f32.mrb[0].mxu0
    %v2375 = vadd.f32 0.0, %v2374
    %2376 = vdwg.mxu0
    %2377 = vmatprep.subr.mxu0 0.0
    %2378 = vmatpush1.msra.mxu0 %v2141
    %2379 = vmatprep.subr.mxu0 0.0
    %2380 = vmatpush1.msra.mxu0 %v2158
    %2381 = vmatprep.subr.mxu0 0.0
    %2382 = vmatpush1.msra.mxu0 0.0
    %2383 = vmatprep.subr.mxu0 0.0
    %2384 = vmatpush1.msra.mxu0 0.0
    %2385 = vmatprep.subr.mxu0 0.0
    %2386 = vmatpush1.msra.mxu0 0.0
    %2387 = vmatprep.subr.mxu0 0.0
    %2388 = vmatpush1.msra.mxu0 0.0
    %2389 = vmatprep.subr.mxu0 0.0
    %2390 = vmatpush1.msra.mxu0 0.0
    %2391 = vmatprep.subr.mxu0 0.0
    %2392 = vmatpush1.msra.mxu0 0.0
    %2393 = vmatprep.subr.mxu0 0.0
    %2394 = vmatpush1.msra.mxu0 0.0
    %2395 = vmatprep.subr.mxu0 0.0
    %2396 = vmatpush1.msra.mxu0 0.0
    %2397 = vmatprep.subr.mxu0 0.0
    %2398 = vmatpush1.msra.mxu0 0.0
    %2399 = vmatprep.subr.mxu0 0.0
    %2400 = vmatpush1.msra.mxu0 0.0
    %2401 = vmatprep.subr.mxu0 0.0
    %2402 = vmatpush1.msra.mxu0 0.0
    %2403 = vmatprep.subr.mxu0 0.0
    %2404 = vmatpush1.msra.mxu0 0.0
    %2405 = vmatprep.subr.mxu0 0.0
    %2406 = vmatpush1.msra.mxu0 0.0
    %2407 = vmatprep.subr.mxu0 0.0
    %2408 = vmatpush1.msra.mxu0 0.0
    %2409 = vmatprep.subr.mxu0 0.0
    %2410 = vmatpush1.msra.mxu0 0.0
    %2411 = vmatprep.subr.mxu0 0.0
    %2412 = vmatpush1.msra.mxu0 0.0
    %2413 = vmatprep.subr.mxu0 0.0
    %2414 = vmatpush1.msra.mxu0 0.0
    %2415 = vmatprep.subr.mxu0 0.0
    %2416 = vmatpush1.msra.mxu0 0.0
    %2417 = vmatprep.subr.mxu0 0.0
    %2418 = vmatpush1.msra.mxu0 0.0
    %2419 = vmatprep.subr.mxu0 0.0
    %2420 = vmatpush1.msra.mxu0 0.0
    %2421 = vmatprep.subr.mxu0 0.0
    %2422 = vmatpush1.msra.mxu0 0.0
    %2423 = vmatprep.subr.mxu0 0.0
    %2424 = vmatpush1.msra.mxu0 0.0
    %2425 = vmatprep.subr.mxu0 0.0
    %2426 = vmatpush1.msra.mxu0 0.0
    %2427 = vmatprep.subr.mxu0 0.0
    %2428 = vmatpush1.msra.mxu0 0.0
    %2429 = vmatprep.subr.mxu0 0.0
    %2430 = vmatpush1.msra.mxu0 0.0
    %2431 = vmatprep.subr.mxu0 0.0
    %2432 = vmatpush1.msra.mxu0 0.0
    %2433 = vmatprep.subr.mxu0 0.0
    %2434 = vmatpush1.msra.mxu0 0.0
    %2435 = vmatprep.subr.mxu0 0.0
    %2436 = vmatpush1.msra.mxu0 0.0
    %2437 = vmatprep.subr.mxu0 0.0
    %2438 = vmatpush1.msra.mxu0 0.0
    %2439 = vmatprep.subr.mxu0 0.0
    %2440 = vmatpush1.msra.mxu0 0.0
    %2441 = vmatprep.mubr.f32.mxu0 0.0
    %2442 = vmatmul.mubr.f32.gmra.mrb[0].mxu0 %v2304
    %v2443 = vpop.f32.mrb[0].mxu0
    %v2444 = vadd.f32 0.0, %v2443
    %v2445 = vpop.f32.mrb[0].mxu0
    %2446 = vdwg.mxu0
    %v2447 = vmax.f32 %v2227, %v2373
    %v2448 = vmax.f32 %v2229, %v2375
    %v2449 = vmax.f32 %v2298, %v2444
    %v2450 = vld [vmem:[%s5] sm:$0xff]
    %v2451 = vld [vmem:[%s5 + $0x8] sm:$0xff]
    %v2452 = vld [vmem:[%s5 + $0x10] sm:$0xff]
    %v2453 = vld [vmem:[%s5 + $0x18] sm:$0xff]
    %v2454 = vld [vmem:[%s5 + $0x20] sm:$0xff]
    %v2455 = vld [vmem:[%s5 + $0x28] sm:$0xff]
    %v2456 = vld [vmem:[%s5 + $0x30] sm:$0xff]
    %v2457 = vld [vmem:[%s5 + $0x38] sm:$0xff]
    %v2458 = vld [vmem:[%s5 + $0x40] sm:$0xff]
    %v2459 = vld [vmem:[%s5 + $0x48] sm:$0xff]
    %v2460 = vld [vmem:[%s5 + $0x50] sm:$0xff]
    %v2461 = vld [vmem:[%s5 + $0x58] sm:$0xff]
    %v2462 = vld [vmem:[%s5 + $0x60] sm:$0xff]
    %v2463 = vld [vmem:[%s5 + $0x68] sm:$0xff]
    %v2464 = vld [vmem:[%s5 + $0x70] sm:$0xff]
    %v2465 = vld [vmem:[%s5 + $0x78] sm:$0xff]
    %v2466 = vld [vmem:[%s5 + $0x80] sm:$0xff]
    %v2467 = vld [vmem:[%s5 + $0x88] sm:$0xff]
    %v2468 = vld [vmem:[%s5 + $0x90] sm:$0xff]
    %v2469 = vld [vmem:[%s5 + $0x98] sm:$0xff]
    %v2470 = vld [vmem:[%s5 + $0xa0] sm:$0xff]
    %v2471 = vld [vmem:[%s5 + $0xa8] sm:$0xff]
    %v2472 = vld [vmem:[%s5 + $0xb0] sm:$0xff]
    %v2473 = vld [vmem:[%s5 + $0xb8] sm:$0xff]
    %v2474 = vld [vmem:[%s5 + $0xc0] sm:$0xff]
    %v2475 = vld [vmem:[%s5 + $0xc8] sm:$0xff]
    %v2476 = vld [vmem:[%s5 + $0xd0] sm:$0xff]
    %v2477 = vld [vmem:[%s5 + $0xd8] sm:$0xff]
    %v2478 = vld [vmem:[%s5 + $0xe0] sm:$0xff]
    %v2479 = vld [vmem:[%s5 + $0xe8] sm:$0xff]
    %v2480 = vld [vmem:[%s5 + $0xf0] sm:$0xff]
    %v2481 = vld [vmem:[%s5 + $0xf8] sm:$0xff]
    %v2482 = vld [vmem:[%s5 + $0x100] sm:$0xff]
    %v2483 = vld [vmem:[%s5 + $0x108] sm:$0xff]
    %v2484 = vld [vmem:[%s5 + $0x110] sm:$0xff]
    %v2485 = vld [vmem:[%s5 + $0x118] sm:$0xff]
    %v2486 = vld [vmem:[%s5 + $0x120] sm:$0xff]
    %v2487 = vld [vmem:[%s5 + $0x128] sm:$0xff]
    %v2488 = vld [vmem:[%s5 + $0x130] sm:$0xff]
    %v2489 = vld [vmem:[%s5 + $0x138] sm:$0xff]
    %v2490 = vld [vmem:[%s5 + $0x140] sm:$0xff]
    %v2491 = vld [vmem:[%s5 + $0x148] sm:$0xff]
    %v2492 = vld [vmem:[%s5 + $0x150] sm:$0xff]
    %v2493 = vld [vmem:[%s5 + $0x158] sm:$0xff]
    %v2494 = vld [vmem:[%s5 + $0x160] sm:$0xff]
    %v2495 = vld [vmem:[%s5 + $0x168] sm:$0xff]
    %v2496 = vld [vmem:[%s5 + $0x170] sm:$0xff]
    %v2497 = vld [vmem:[%s5 + $0x178] sm:$0xff]
    %v2498 = vld [vmem:[%s5 + $0x180] sm:$0xff]
    %v2499 = vld [vmem:[%s5 + $0x188] sm:$0xff]
    %v2500 = vld [vmem:[%s5 + $0x190] sm:$0xff]
    %v2501 = vld [vmem:[%s5 + $0x198] sm:$0xff]
    %v2502 = vld [vmem:[%s5 + $0x1a0] sm:$0xff]
    %v2503 = vld [vmem:[%s5 + $0x1a8] sm:$0xff]
    %v2504 = vld [vmem:[%s5 + $0x1b0] sm:$0xff]
    %v2505 = vld [vmem:[%s5 + $0x1b8] sm:$0xff]
    %v2506 = vld [vmem:[%s5 + $0x1c0] sm:$0xff]
    %v2507 = vld [vmem:[%s5 + $0x1c8] sm:$0xff]
    %v2508 = vld [vmem:[%s5 + $0x1d0] sm:$0xff]
    %v2509 = vld [vmem:[%s5 + $0x1d8] sm:$0xff]
    %v2510 = vld [vmem:[%s5 + $0x1e0] sm:$0xff]
    %v2511 = vld [vmem:[%s5 + $0x1e8] sm:$0xff]
    %v2512 = vld [vmem:[%s5 + $0x1f0] sm:$0xff]
    %v2513 = vld [vmem:[%s5 + $0x1f8] sm:$0xff]
    %v2514 = vld [vmem:[%s5 + $0x200] sm:$0xff]
    %v2515 = vld [vmem:[%s5 + $0x208] sm:$0xff]
    %v2516 = vld [vmem:[%s5 + $0x210] sm:$0xff]
    %v2517 = vld [vmem:[%s5 + $0x218] sm:$0xff]
    %v2518 = vld [vmem:[%s5 + $0x220] sm:$0xff]
    %v2519 = vld [vmem:[%s5 + $0x228] sm:$0xff]
    %v2520 = vld [vmem:[%s5 + $0x230] sm:$0xff]
    %v2521 = vld [vmem:[%s5 + $0x238] sm:$0xff]
    %v2522 = vld [vmem:[%s5 + $0x240] sm:$0xff]
    %v2523 = vld [vmem:[%s5 + $0x248] sm:$0xff]
    %v2524 = vld [vmem:[%s5 + $0x250] sm:$0xff]
    %v2525 = vld [vmem:[%s5 + $0x258] sm:$0xff]
    %v2526 = vld [vmem:[%s5 + $0x260] sm:$0xff]
    %v2527 = vld [vmem:[%s5 + $0x268] sm:$0xff]
    %v2528 = vld [vmem:[%s5 + $0x270] sm:$0xff]
    %v2529 = vld [vmem:[%s5 + $0x278] sm:$0xff]
    %v2530 = vld [vmem:[%s5 + $0x280] sm:$0xff]
    %v2531 = vld [vmem:[%s5 + $0x288] sm:$0xff]
    %v2532 = vld [vmem:[%s5 + $0x290] sm:$0xff]
    %v2533 = vld [vmem:[%s5 + $0x298] sm:$0xff]
    %v2534 = vld [vmem:[%s5 + $0x2a0] sm:$0xff]
    %v2535 = vld [vmem:[%s5 + $0x2a8] sm:$0xff]
    %v2536 = vld [vmem:[%s5 + $0x2b0] sm:$0xff]
    %v2537 = vld [vmem:[%s5 + $0x2b8] sm:$0xff]
    %v2538 = vld [vmem:[%s5 + $0x2c0] sm:$0xff]
    %v2539 = vld [vmem:[%s5 + $0x2c8] sm:$0xff]
    %v2540 = vld [vmem:[%s5 + $0x2d0] sm:$0xff]
    %v2541 = vld [vmem:[%s5 + $0x2d8] sm:$0xff]
    %v2542 = vld [vmem:[%s5 + $0x2e0] sm:$0xff]
    %v2543 = vld [vmem:[%s5 + $0x2e8] sm:$0xff]
    %v2544 = vld [vmem:[%s5 + $0x2f0] sm:$0xff]
    %v2545 = vld [vmem:[%s5 + $0x2f8] sm:$0xff]
    %2546 = vmatprep.subr.mxu0 %v2451
    %2547 = vmatpush1.msra.mxu0 %v2450
    %2548 = vmatprep.subr.mxu0 %v2453
    %2549 = vmatpush1.msra.mxu0 %v2452
    %2550 = vmatprep.subr.mxu0 %v2455
    %2551 = vmatpush1.msra.mxu0 %v2454
    %2552 = vmatprep.subr.mxu0 %v2457
    %2553 = vmatpush1.msra.mxu0 %v2456
    %2554 = vmatprep.subr.mxu0 %v2459
    %2555 = vmatpush1.msra.mxu0 %v2458
    %2556 = vmatprep.subr.mxu0 %v2461
    %2557 = vmatpush1.msra.mxu0 %v2460
    %2558 = vmatprep.subr.mxu0 %v2463
    %2559 = vmatpush1.msra.mxu0 %v2462
    %2560 = vmatprep.subr.mxu0 %v2465
    %2561 = vmatpush1.msra.mxu0 %v2464
    %2562 = vmatprep.subr.mxu0 %v2467
    %2563 = vmatpush1.msra.mxu0 %v2466
    %2564 = vmatprep.subr.mxu0 %v2469
    %2565 = vmatpush1.msra.mxu0 %v2468
    %2566 = vmatprep.subr.mxu0 %v2471
    %2567 = vmatpush1.msra.mxu0 %v2470
    %2568 = vmatprep.subr.mxu0 %v2473
    %2569 = vmatpush1.msra.mxu0 %v2472
    %2570 = vmatprep.subr.mxu0 %v2475
    %2571 = vmatpush1.msra.mxu0 %v2474
    %2572 = vmatprep.subr.mxu0 %v2477
    %2573 = vmatpush1.msra.mxu0 %v2476
    %2574 = vmatprep.subr.mxu0 %v2479
    %2575 = vmatpush1.msra.mxu0 %v2478
    %2576 = vmatprep.subr.mxu0 %v2481
    %2577 = vmatpush1.msra.mxu0 %v2480
    %2578 = vmatprep.subr.mxu0 %v2483
    %2579 = vmatpush1.msra.mxu0 %v2482
    %2580 = vmatprep.subr.mxu0 %v2485
    %2581 = vmatpush1.msra.mxu0 %v2484
    %2582 = vmatprep.subr.mxu0 %v2487
    %2583 = vmatpush1.msra.mxu0 %v2486
    %2584 = vmatprep.subr.mxu0 %v2489
    %2585 = vmatpush1.msra.mxu0 %v2488
    %2586 = vmatprep.subr.mxu0 %v2491
    %2587 = vmatpush1.msra.mxu0 %v2490
    %2588 = vmatprep.subr.mxu0 %v2493
    %2589 = vmatpush1.msra.mxu0 %v2492
    %2590 = vmatprep.subr.mxu0 %v2495
    %2591 = vmatpush1.msra.mxu0 %v2494
    %2592 = vmatprep.subr.mxu0 %v2497
    %2593 = vmatpush1.msra.mxu0 %v2496
    %2594 = vmatprep.subr.mxu0 %v2499
    %2595 = vmatpush1.msra.mxu0 %v2498
    %2596 = vmatprep.subr.mxu0 %v2501
    %2597 = vmatpush1.msra.mxu0 %v2500
    %2598 = vmatprep.subr.mxu0 %v2503
    %2599 = vmatpush1.msra.mxu0 %v2502
    %2600 = vmatprep.subr.mxu0 %v2505
    %2601 = vmatpush1.msra.mxu0 %v2504
    %2602 = vmatprep.subr.mxu0 %v2507
    %2603 = vmatpush1.msra.mxu0 %v2506
    %2604 = vmatprep.subr.mxu0 %v2509
    %2605 = vmatpush1.msra.mxu0 %v2508
    %2606 = vmatprep.subr.mxu0 %v2511
    %2607 = vmatpush1.msra.mxu0 %v2510
    %2608 = vmatprep.subr.mxu0 %v2513
    %2609 = vmatpush1.msra.mxu0 %v2512
    %2610 = vmatprep.mubr.f32.mxu0 %v2448
    %2611 = vmatmul.mubr.f32.gmra.mrb[0].mxu0 %v2447
    %v2612 = vpop.f32.mrb[0].mxu0
    %v2613 = vadd.f32 0.0, %v2612
    %v2614 = vpop.f32.mrb[0].mxu0
    %v2615 = vadd.f32 0.0, %v2614
    %2616 = vdwg.mxu0
    %2617 = vmatprep.subr.mxu0 %v2515
    %2618 = vmatpush1.msra.mxu0 %v2514
    %2619 = vmatprep.subr.mxu0 %v2517
    %2620 = vmatpush1.msra.mxu0 %v2516
    %2621 = vmatprep.subr.mxu0 %v2519
    %2622 = vmatpush1.msra.mxu0 %v2518
    %2623 = vmatprep.subr.mxu0 %v2521
    %2624 = vmatpush1.msra.mxu0 %v2520
    %2625 = vmatprep.subr.mxu0 %v2523
    %2626 = vmatpush1.msra.mxu0 %v2522
    %2627 = vmatprep.subr.mxu0 %v2525
    %2628 = vmatpush1.msra.mxu0 %v2524
    %2629 = vmatprep.subr.mxu0 %v2527
    %2630 = vmatpush1.msra.mxu0 %v2526
    %2631 = vmatprep.subr.mxu0 %v2529
    %2632 = vmatpush1.msra.mxu0 %v2528
    %2633 = vmatprep.subr.mxu0 %v2531
    %2634 = vmatpush1.msra.mxu0 %v2530
    %2635 = vmatprep.subr.mxu0 %v2533
    %2636 = vmatpush1.msra.mxu0 %v2532
    %2637 = vmatprep.subr.mxu0 %v2535
    %2638 = vmatpush1.msra.mxu0 %v2534
    %2639 = vmatprep.subr.mxu0 %v2537
    %2640 = vmatpush1.msra.mxu0 %v2536
    %2641 = vmatprep.subr.mxu0 %v2539
    %2642 = vmatpush1.msra.mxu0 %v2538
    %2643 = vmatprep.subr.mxu0 %v2541
    %2644 = vmatpush1.msra.mxu0 %v2540
    %2645 = vmatprep.subr.mxu0 %v2543
    %2646 = vmatpush1.msra.mxu0 %v2542
    %2647 = vmatprep.subr.mxu0 %v2545
    %2648 = vmatpush1.msra.mxu0 %v2544
    %2649 = vmatprep.subr.mxu0 0.0
    %2650 = vmatpush1.msra.mxu0 0.0
    %2651 = vmatprep.subr.mxu0 0.0
    %2652 = vmatpush1.msra.mxu0 0.0
    %2653 = vmatprep.subr.mxu0 0.0
    %2654 = vmatpush1.msra.mxu0 0.0
    %2655 = vmatprep.subr.mxu0 0.0
    %2656 = vmatpush1.msra.mxu0 0.0
    %2657 = vmatprep.subr.mxu0 0.0
    %2658 = vmatpush1.msra.mxu0 0.0
    %2659 = vmatprep.subr.mxu0 0.0
    %2660 = vmatpush1.msra.mxu0 0.0
    %2661 = vmatprep.subr.mxu0 0.0
    %2662 = vmatpush1.msra.mxu0 0.0
    %2663 = vmatprep.subr.mxu0 0.0
    %2664 = vmatpush1.msra.mxu0 0.0
    %2665 = vmatprep.subr.mxu0 0.0
    %2666 = vmatpush1.msra.mxu0 0.0
    %2667 = vmatprep.subr.mxu0 0.0
    %2668 = vmatpush1.msra.mxu0 0.0
    %2669 = vmatprep.subr.mxu0 0.0
    %2670 = vmatpush1.msra.mxu0 0.0
    %2671 = vmatprep.subr.mxu0 0.0
    %2672 = vmatpush1.msra.mxu0 0.0
    %2673 = vmatprep.subr.mxu0 0.0
    %2674 = vmatpush1.msra.mxu0 0.0
    %2675 = vmatprep.subr.mxu0 0.0
    %2676 = vmatpush1.msra.mxu0 0.0
    %2677 = vmatprep.subr.mxu0 0.0
    %2678 = vmatpush1.msra.mxu0 0.0
    %2679 = vmatprep.subr.mxu0 0.0
    %2680 = vmatpush1.msra.mxu0 0.0
    %2681 = vmatprep.mubr.f32.mxu0 0.0
    %2682 = vmatmul.mubr.f32.gmra.mrb[0].mxu0 %v2449
    %v2683 = vpop.f32.mrb[0].mxu0
    %v2684 = vadd.f32 %v2613, %v2683
    %v2685 = vpop.f32.mrb[0].mxu0
    %v2686 = vadd.f32 %v2615, %v2685
    %2687 = vdwg.mxu0
    %s2688 = scalar_lea.vmem %s5, 768
    %v2689 = vld [vmem:[%s2688] sm:$0xff]
    %v2690 = vld [vmem:[%s2688 + $0x8] sm:$0xff]
    %v2691 = vld [vmem:[%s2688 + $0x10] sm:$0xff]
    %v2692 = vld [vmem:[%s2688 + $0x18] sm:$0xff]
    %v2693 = vld [vmem:[%s2688 + $0x20] sm:$0xff]
    %v2694 = vld [vmem:[%s2688 + $0x28] sm:$0xff]
    %v2695 = vld [vmem:[%s2688 + $0x30] sm:$0xff]
    %v2696 = vld [vmem:[%s2688 + $0x38] sm:$0xff]
    %v2697 = vld [vmem:[%s2688 + $0x40] sm:$0xff]
    %v2698 = vld [vmem:[%s2688 + $0x48] sm:$0xff]
    %v2699 = vld [vmem:[%s2688 + $0x50] sm:$0xff]
    %v2700 = vld [vmem:[%s2688 + $0x58] sm:$0xff]
    %v2701 = vld [vmem:[%s2688 + $0x60] sm:$0xff]
    %v2702 = vld [vmem:[%s2688 + $0x68] sm:$0xff]
    %v2703 = vld [vmem:[%s2688 + $0x70] sm:$0xff]
    %v2704 = vld [vmem:[%s2688 + $0x78] sm:$0xff]
    %v2705 = vld [vmem:[%s2688 + $0x80] sm:$0xff]
    %v2706 = vld [vmem:[%s2688 + $0x88] sm:$0xff]
    %v2707 = vld [vmem:[%s2688 + $0x90] sm:$0xff]
    %v2708 = vld [vmem:[%s2688 + $0x98] sm:$0xff]
    %v2709 = vld [vmem:[%s2688 + $0xa0] sm:$0xff]
    %v2710 = vld [vmem:[%s2688 + $0xa8] sm:$0xff]
    %v2711 = vld [vmem:[%s2688 + $0xb0] sm:$0xff]
    %v2712 = vld [vmem:[%s2688 + $0xb8] sm:$0xff]
    %v2713 = vld [vmem:[%s2688 + $0xc0] sm:$0xff]
    %v2714 = vld [vmem:[%s2688 + $0xc8] sm:$0xff]
    %v2715 = vld [vmem:[%s2688 + $0xd0] sm:$0xff]
    %v2716 = vld [vmem:[%s2688 + $0xd8] sm:$0xff]
    %v2717 = vld [vmem:[%s2688 + $0xe0] sm:$0xff]
    %v2718 = vld [vmem:[%s2688 + $0xe8] sm:$0xff]
    %v2719 = vld [vmem:[%s2688 + $0xf0] sm:$0xff]
    %v2720 = vld [vmem:[%s2688 + $0xf8] sm:$0xff]
    %v2721 = vld [vmem:[%s2688 + $0x100] sm:$0xff]
    %v2722 = vld [vmem:[%s2688 + $0x108] sm:$0xff]
    %v2723 = vld [vmem:[%s2688 + $0x110] sm:$0xff]
    %v2724 = vld [vmem:[%s2688 + $0x118] sm:$0xff]
    %v2725 = vld [vmem:[%s2688 + $0x120] sm:$0xff]
    %v2726 = vld [vmem:[%s2688 + $0x128] sm:$0xff]
    %v2727 = vld [vmem:[%s2688 + $0x130] sm:$0xff]
    %v2728 = vld [vmem:[%s2688 + $0x138] sm:$0xff]
    %v2729 = vld [vmem:[%s2688 + $0x140] sm:$0xff]
    %v2730 = vld [vmem:[%s2688 + $0x148] sm:$0xff]
    %v2731 = vld [vmem:[%s2688 + $0x150] sm:$0xff]
    %v2732 = vld [vmem:[%s2688 + $0x158] sm:$0xff]
    %v2733 = vld [vmem:[%s2688 + $0x160] sm:$0xff]
    %v2734 = vld [vmem:[%s2688 + $0x168] sm:$0xff]
    %v2735 = vld [vmem:[%s2688 + $0x170] sm:$0xff]
    %v2736 = vld [vmem:[%s2688 + $0x178] sm:$0xff]
    %v2737 = vld [vmem:[%s2688 + $0x180] sm:$0xff]
    %v2738 = vld [vmem:[%s2688 + $0x188] sm:$0xff]
    %v2739 = vld [vmem:[%s2688 + $0x190] sm:$0xff]
    %v2740 = vld [vmem:[%s2688 + $0x198] sm:$0xff]
    %v2741 = vld [vmem:[%s2688 + $0x1a0] sm:$0xff]
    %v2742 = vld [vmem:[%s2688 + $0x1a8] sm:$0xff]
    %v2743 = vld [vmem:[%s2688 + $0x1b0] sm:$0xff]
    %v2744 = vld [vmem:[%s2688 + $0x1b8] sm:$0xff]
    %v2745 = vld [vmem:[%s2688 + $0x1c0] sm:$0xff]
    %v2746 = vld [vmem:[%s2688 + $0x1c8] sm:$0xff]
    %v2747 = vld [vmem:[%s2688 + $0x1d0] sm:$0xff]
    %v2748 = vld [vmem:[%s2688 + $0x1d8] sm:$0xff]
    %v2749 = vld [vmem:[%s2688 + $0x1e0] sm:$0xff]
    %v2750 = vld [vmem:[%s2688 + $0x1e8] sm:$0xff]
    %v2751 = vld [vmem:[%s2688 + $0x1f0] sm:$0xff]
    %v2752 = vld [vmem:[%s2688 + $0x1f8] sm:$0xff]
    %v2753 = vld [vmem:[%s2688 + $0x200] sm:$0xff]
    %v2754 = vld [vmem:[%s2688 + $0x208] sm:$0xff]
    %v2755 = vld [vmem:[%s2688 + $0x210] sm:$0xff]
    %v2756 = vld [vmem:[%s2688 + $0x218] sm:$0xff]
    %v2757 = vld [vmem:[%s2688 + $0x220] sm:$0xff]
    %v2758 = vld [vmem:[%s2688 + $0x228] sm:$0xff]
    %v2759 = vld [vmem:[%s2688 + $0x230] sm:$0xff]
    %v2760 = vld [vmem:[%s2688 + $0x238] sm:$0xff]
    %v2761 = vld [vmem:[%s2688 + $0x240] sm:$0xff]
    %v2762 = vld [vmem:[%s2688 + $0x248] sm:$0xff]
    %v2763 = vld [vmem:[%s2688 + $0x250] sm:$0xff]
    %v2764 = vld [vmem:[%s2688 + $0x258] sm:$0xff]
    %v2765 = vld [vmem:[%s2688 + $0x260] sm:$0xff]
    %v2766 = vld [vmem:[%s2688 + $0x268] sm:$0xff]
    %v2767 = vld [vmem:[%s2688 + $0x270] sm:$0xff]
    %v2768 = vld [vmem:[%s2688 + $0x278] sm:$0xff]
    %v2769 = vld [vmem:[%s2688 + $0x280] sm:$0xff]
    %v2770 = vld [vmem:[%s2688 + $0x288] sm:$0xff]
    %v2771 = vld [vmem:[%s2688 + $0x290] sm:$0xff]
    %v2772 = vld [vmem:[%s2688 + $0x298] sm:$0xff]
    %v2773 = vld [vmem:[%s2688 + $0x2a0] sm:$0xff]
    %v2774 = vld [vmem:[%s2688 + $0x2a8] sm:$0xff]
    %v2775 = vld [vmem:[%s2688 + $0x2b0] sm:$0xff]
    %v2776 = vld [vmem:[%s2688 + $0x2b8] sm:$0xff]
    %v2777 = vld [vmem:[%s2688 + $0x2c0] sm:$0xff]
    %v2778 = vld [vmem:[%s2688 + $0x2c8] sm:$0xff]
    %v2779 = vld [vmem:[%s2688 + $0x2d0] sm:$0xff]
    %v2780 = vld [vmem:[%s2688 + $0x2d8] sm:$0xff]
    %v2781 = vld [vmem:[%s2688 + $0x2e0] sm:$0xff]
    %v2782 = vld [vmem:[%s2688 + $0x2e8] sm:$0xff]
    %v2783 = vld [vmem:[%s2688 + $0x2f0] sm:$0xff]
    %v2784 = vld [vmem:[%s2688 + $0x2f8] sm:$0xff]
    %2785 = vmatprep.subr.mxu0 %v2690
    %2786 = vmatpush1.msra.mxu0 %v2689
    %2787 = vmatprep.subr.mxu0 %v2692
    %2788 = vmatpush1.msra.mxu0 %v2691
    %2789 = vmatprep.subr.mxu0 %v2694
    %2790 = vmatpush1.msra.mxu0 %v2693
    %2791 = vmatprep.subr.mxu0 %v2696
    %2792 = vmatpush1.msra.mxu0 %v2695
    %2793 = vmatprep.subr.mxu0 %v2698
    %2794 = vmatpush1.msra.mxu0 %v2697
    %2795 = vmatprep.subr.mxu0 %v2700
    %2796 = vmatpush1.msra.mxu0 %v2699
    %2797 = vmatprep.subr.mxu0 %v2702
    %2798 = vmatpush1.msra.mxu0 %v2701
    %2799 = vmatprep.subr.mxu0 %v2704
    %2800 = vmatpush1.msra.mxu0 %v2703
    %2801 = vmatprep.subr.mxu0 %v2706
    %2802 = vmatpush1.msra.mxu0 %v2705
    %2803 = vmatprep.subr.mxu0 %v2708
    %2804 = vmatpush1.msra.mxu0 %v2707
    %2805 = vmatprep.subr.mxu0 %v2710
    %2806 = vmatpush1.msra.mxu0 %v2709
    %2807 = vmatprep.subr.mxu0 %v2712
    %2808 = vmatpush1.msra.mxu0 %v2711
    %2809 = vmatprep.subr.mxu0 %v2714
    %2810 = vmatpush1.msra.mxu0 %v2713
    %2811 = vmatprep.subr.mxu0 %v2716
    %2812 = vmatpush1.msra.mxu0 %v2715
    %2813 = vmatprep.subr.mxu0 %v2718
    %2814 = vmatpush1.msra.mxu0 %v2717
    %2815 = vmatprep.subr.mxu0 %v2720
    %2816 = vmatpush1.msra.mxu0 %v2719
    %2817 = vmatprep.subr.mxu0 %v2722
    %2818 = vmatpush1.msra.mxu0 %v2721
    %2819 = vmatprep.subr.mxu0 %v2724
    %2820 = vmatpush1.msra.mxu0 %v2723
    %2821 = vmatprep.subr.mxu0 %v2726
    %2822 = vmatpush1.msra.mxu0 %v2725
    %2823 = vmatprep.subr.mxu0 %v2728
    %2824 = vmatpush1.msra.mxu0 %v2727
    %2825 = vmatprep.subr.mxu0 %v2730
    %2826 = vmatpush1.msra.mxu0 %v2729
    %2827 = vmatprep.subr.mxu0 %v2732
    %2828 = vmatpush1.msra.mxu0 %v2731
    %2829 = vmatprep.subr.mxu0 %v2734
    %2830 = vmatpush1.msra.mxu0 %v2733
    %2831 = vmatprep.subr.mxu0 %v2736
    %2832 = vmatpush1.msra.mxu0 %v2735
    %2833 = vmatprep.subr.mxu0 %v2738
    %2834 = vmatpush1.msra.mxu0 %v2737
    %2835 = vmatprep.subr.mxu0 %v2740
    %2836 = vmatpush1.msra.mxu0 %v2739
    %2837 = vmatprep.subr.mxu0 %v2742
    %2838 = vmatpush1.msra.mxu0 %v2741
    %2839 = vmatprep.subr.mxu0 %v2744
    %2840 = vmatpush1.msra.mxu0 %v2743
    %2841 = vmatprep.subr.mxu0 %v2746
    %2842 = vmatpush1.msra.mxu0 %v2745
    %2843 = vmatprep.subr.mxu0 %v2748
    %2844 = vmatpush1.msra.mxu0 %v2747
    %2845 = vmatprep.subr.mxu0 %v2750
    %2846 = vmatpush1.msra.mxu0 %v2749
    %2847 = vmatprep.subr.mxu0 %v2752
    %2848 = vmatpush1.msra.mxu0 %v2751
    %2849 = vmatprep.mubr.f32.mxu0 %v2448
    %2850 = vmatmul.mubr.f32.gmra.mrb[0].mxu0 %v2447
    %v2851 = vpop.f32.mrb[0].mxu0
    %v2852 = vadd.f32 0.0, %v2851
    %v2853 = vpop.f32.mrb[0].mxu0
    %v2854 = vadd.f32 0.0, %v2853
    %2855 = vdwg.mxu0
    %2856 = vmatprep.subr.mxu0 %v2754
    %2857 = vmatpush1.msra.mxu0 %v2753
    %2858 = vmatprep.subr.mxu0 %v2756
    %2859 = vmatpush1.msra.mxu0 %v2755
    %2860 = vmatprep.subr.mxu0 %v2758
    %2861 = vmatpush1.msra.mxu0 %v2757
    %2862 = vmatprep.subr.mxu0 %v2760
    %2863 = vmatpush1.msra.mxu0 %v2759
    %2864 = vmatprep.subr.mxu0 %v2762
    %2865 = vmatpush1.msra.mxu0 %v2761
    %2866 = vmatprep.subr.mxu0 %v2764
    %2867 = vmatpush1.msra.mxu0 %v2763
    %2868 = vmatprep.subr.mxu0 %v2766
    %2869 = vmatpush1.msra.mxu0 %v2765
    %2870 = vmatprep.subr.mxu0 %v2768
    %2871 = vmatpush1.msra.mxu0 %v2767
    %2872 = vmatprep.subr.mxu0 %v2770
    %2873 = vmatpush1.msra.mxu0 %v2769
    %2874 = vmatprep.subr.mxu0 %v2772
    %2875 = vmatpush1.msra.mxu0 %v2771
    %2876 = vmatprep.subr.mxu0 %v2774
    %2877 = vmatpush1.msra.mxu0 %v2773
    %2878 = vmatprep.subr.mxu0 %v2776
    %2879 = vmatpush1.msra.mxu0 %v2775
    %2880 = vmatprep.subr.mxu0 %v2778
    %2881 = vmatpush1.msra.mxu0 %v2777
    %2882 = vmatprep.subr.mxu0 %v2780
    %2883 = vmatpush1.msra.mxu0 %v2779
    %2884 = vmatprep.subr.mxu0 %v2782
    %2885 = vmatpush1.msra.mxu0 %v2781
    %2886 = vmatprep.subr.mxu0 %v2784
    %2887 = vmatpush1.msra.mxu0 %v2783
    %2888 = vmatprep.subr.mxu0 0.0
    %2889 = vmatpush1.msra.mxu0 0.0
    %2890 = vmatprep.subr.mxu0 0.0
    %2891 = vmatpush1.msra.mxu0 0.0
    %2892 = vmatprep.subr.mxu0 0.0
    %2893 = vmatpush1.msra.mxu0 0.0
    %2894 = vmatprep.subr.mxu0 0.0
    %2895 = vmatpush1.msra.mxu0 0.0
    %2896 = vmatprep.subr.mxu0 0.0
    %2897 = vmatpush1.msra.mxu0 0.0
    %2898 = vmatprep.subr.mxu0 0.0
    %2899 = vmatpush1.msra.mxu0 0.0
    %2900 = vmatprep.subr.mxu0 0.0
    %2901 = vmatpush1.msra.mxu0 0.0
    %2902 = vmatprep.subr.mxu0 0.0
    %2903 = vmatpush1.msra.mxu0 0.0
    %2904 = vmatprep.subr.mxu0 0.0
    %2905 = vmatpush1.msra.mxu0 0.0
    %2906 = vmatprep.subr.mxu0 0.0
    %2907 = vmatpush1.msra.mxu0 0.0
    %2908 = vmatprep.subr.mxu0 0.0
    %2909 = vmatpush1.msra.mxu0 0.0
    %2910 = vmatprep.subr.mxu0 0.0
    %2911 = vmatpush1.msra.mxu0 0.0
    %2912 = vmatprep.subr.mxu0 0.0
    %2913 = vmatpush1.msra.mxu0 0.0
    %2914 = vmatprep.subr.mxu0 0.0
    %2915 = vmatpush1.msra.mxu0 0.0
    %2916 = vmatprep.subr.mxu0 0.0
    %2917 = vmatpush1.msra.mxu0 0.0
    %2918 = vmatprep.subr.mxu0 0.0
    %2919 = vmatpush1.msra.mxu0 0.0
    %2920 = vmatprep.mubr.f32.mxu0 0.0
    %2921 = vmatmul.mubr.f32.gmra.mrb[0].mxu0 %v2449
    %v2922 = vpop.f32.mrb[0].mxu0
    %v2923 = vadd.f32 %v2852, %v2922
    %v2924 = vpop.f32.mrb[0].mxu0
    %v2925 = vadd.f32 %v2854, %v2924
    %2926 = vdwg.mxu0
    %v2927 = vmax.f32 %v2684, %v2923
    %v2928 = vmax.f32 %v2686, %v2925
    %v2931 = vrot.slane %v2927, 1
    %v2932 = vrot.slane %v2928, 1
    %2933 = vrot.lane.b32.xlu0 %v2931, 64
    %v2934 = vpop.permute.xlu0 %2933
    %2935 = vrot.lane.b32.xlu0 %v2932, 64
    %v2936 = vpop.permute.xlu0 %2935
    %v2937 = vsel %vm665, %v2934, %v2936
    %v2940 = vrot.slane %v2927, 2
    %v2941 = vrot.slane %v2928, 2
    %v2944 = vsel %vm665, %v2928, %v2934
    %v2945 = vsel %vm665, %v2941, 1.0
    %v2946 = vld [vmem:[%s6] sm:$0xff]
    %v2947 = vld [vmem:[%s6 + $0x8] sm:$0xff]
    %v2948 = vld [vmem:[%s6 + $0x10] sm:$0xff]
    %v2949 = vld [vmem:[%s6 + $0x18] sm:$0xff]
    %v2950 = vld [vmem:[%s6 + $0x20] sm:$0xff]
    %v2951 = vld [vmem:[%s6 + $0x28] sm:$0xff]
    %v2952 = vld [vmem:[%s6 + $0x30] sm:$0xff]
    %v2953 = vld [vmem:[%s6 + $0x38] sm:$0xff]
    %v2954 = vld [vmem:[%s6 + $0x40] sm:$0xff]
    %v2955 = vld [vmem:[%s6 + $0x48] sm:$0xff]
    %v2956 = vld [vmem:[%s6 + $0x50] sm:$0xff]
    %v2957 = vld [vmem:[%s6 + $0x58] sm:$0xff]
    %v2958 = vld [vmem:[%s6 + $0x60] sm:$0xff]
    %v2959 = vld [vmem:[%s6 + $0x68] sm:$0xff]
    %v2960 = vld [vmem:[%s6 + $0x70] sm:$0xff]
    %v2961 = vld [vmem:[%s6 + $0x78] sm:$0xff]
    %v2962 = vld [vmem:[%s6 + $0x80] sm:$0xff]
    %v2963 = vld [vmem:[%s6 + $0x88] sm:$0xff]
    %v2964 = vld [vmem:[%s6 + $0x90] sm:$0xff]
    %v2965 = vld [vmem:[%s6 + $0x98] sm:$0xff]
    %v2966 = vld [vmem:[%s6 + $0xa0] sm:$0xff]
    %v2967 = vld [vmem:[%s6 + $0xa8] sm:$0xff]
    %v2968 = vld [vmem:[%s6 + $0xb0] sm:$0xff]
    %v2969 = vld [vmem:[%s6 + $0xb8] sm:$0xff]
    %v2970 = vld [vmem:[%s6 + $0xc0] sm:$0xff]
    %v2971 = vld [vmem:[%s6 + $0xc8] sm:$0xff]
    %v2972 = vld [vmem:[%s6 + $0xd0] sm:$0xff]
    %v2973 = vld [vmem:[%s6 + $0xd8] sm:$0xff]
    %v2974 = vld [vmem:[%s6 + $0xe0] sm:$0xff]
    %v2975 = vld [vmem:[%s6 + $0xe8] sm:$0xff]
    %v2976 = vld [vmem:[%s6 + $0xf0] sm:$0xff]
    %v2977 = vld [vmem:[%s6 + $0xf8] sm:$0xff]
    %v2978 = vld [vmem:[%s6 + $0x100] sm:$0xff]
    %v2979 = vld [vmem:[%s6 + $0x108] sm:$0xff]
    %v2980 = vld [vmem:[%s6 + $0x110] sm:$0xff]
    %v2981 = vld [vmem:[%s6 + $0x118] sm:$0xff]
    %v2982 = vld [vmem:[%s6 + $0x120] sm:$0xff]
    %v2983 = vld [vmem:[%s6 + $0x128] sm:$0xff]
    %v2984 = vld [vmem:[%s6 + $0x130] sm:$0xff]
    %v2985 = vld [vmem:[%s6 + $0x138] sm:$0xff]
    %v2986 = vld [vmem:[%s6 + $0x140] sm:$0xff]
    %v2987 = vld [vmem:[%s6 + $0x148] sm:$0xff]
    %v2988 = vld [vmem:[%s6 + $0x150] sm:$0xff]
    %v2989 = vld [vmem:[%s6 + $0x158] sm:$0xff]
    %v2990 = vld [vmem:[%s6 + $0x160] sm:$0xff]
    %v2991 = vld [vmem:[%s6 + $0x168] sm:$0xff]
    %v2992 = vld [vmem:[%s6 + $0x170] sm:$0xff]
    %v2993 = vld [vmem:[%s6 + $0x178] sm:$0xff]
    %v2994 = vld [vmem:[%s6 + $0x180] sm:$0xff]
    %v2995 = vld [vmem:[%s6 + $0x188] sm:$0xff]
    %v2996 = vld [vmem:[%s6 + $0x190] sm:$0xff]
    %v2997 = vld [vmem:[%s6 + $0x198] sm:$0xff]
    %v2998 = vld [vmem:[%s6 + $0x1a0] sm:$0xff]
    %v2999 = vld [vmem:[%s6 + $0x1a8] sm:$0xff]
    %v3000 = vld [vmem:[%s6 + $0x1b0] sm:$0xff]
    %v3001 = vld [vmem:[%s6 + $0x1b8] sm:$0xff]
    %v3002 = vld [vmem:[%s6 + $0x1c0] sm:$0xff]
    %v3003 = vld [vmem:[%s6 + $0x1c8] sm:$0xff]
    %v3004 = vld [vmem:[%s6 + $0x1d0] sm:$0xff]
    %v3005 = vld [vmem:[%s6 + $0x1d8] sm:$0xff]
    %v3006 = vld [vmem:[%s6 + $0x1e0] sm:$0xff]
    %v3007 = vld [vmem:[%s6 + $0x1e8] sm:$0xff]
    %v3008 = vld [vmem:[%s6 + $0x1f0] sm:$0xff]
    %v3009 = vld [vmem:[%s6 + $0x1f8] sm:$0xff]
    %v3010 = vld [vmem:[%s6 + $0x200] sm:$0xff]
    %v3011 = vld [vmem:[%s6 + $0x208] sm:$0xff]
    %v3012 = vld [vmem:[%s6 + $0x210] sm:$0xff]
    %v3013 = vld [vmem:[%s6 + $0x218] sm:$0xff]
    %v3014 = vld [vmem:[%s6 + $0x220] sm:$0xff]
    %v3015 = vld [vmem:[%s6 + $0x228] sm:$0xff]
    %v3016 = vld [vmem:[%s6 + $0x230] sm:$0xff]
    %v3017 = vld [vmem:[%s6 + $0x238] sm:$0xff]
    %v3018 = vld [vmem:[%s6 + $0x240] sm:$0xff]
    %v3019 = vld [vmem:[%s6 + $0x248] sm:$0xff]
    %v3020 = vld [vmem:[%s6 + $0x250] sm:$0xff]
    %v3021 = vld [vmem:[%s6 + $0x258] sm:$0xff]
    %v3022 = vld [vmem:[%s6 + $0x260] sm:$0xff]
    %v3023 = vld [vmem:[%s6 + $0x268] sm:$0xff]
    %v3024 = vld [vmem:[%s6 + $0x270] sm:$0xff]
    %v3025 = vld [vmem:[%s6 + $0x278] sm:$0xff]
    %v3026 = vld [vmem:[%s6 + $0x280] sm:$0xff]
    %v3027 = vld [vmem:[%s6 + $0x288] sm:$0xff]
    %v3028 = vld [vmem:[%s6 + $0x290] sm:$0xff]
    %v3029 = vld [vmem:[%s6 + $0x298] sm:$0xff]
    %v3030 = vld [vmem:[%s6 + $0x2a0] sm:$0xff]
    %v3031 = vld [vmem:[%s6 + $0x2a8] sm:$0xff]
    %v3032 = vld [vmem:[%s6 + $0x2b0] sm:$0xff]
    %v3033 = vld [vmem:[%s6 + $0x2b8] sm:$0xff]
    %v3034 = vld [vmem:[%s6 + $0x2c0] sm:$0xff]
    %v3035 = vld [vmem:[%s6 + $0x2c8] sm:$0xff]
    %v3036 = vld [vmem:[%s6 + $0x2d0] sm:$0xff]
    %v3037 = vld [vmem:[%s6 + $0x2d8] sm:$0xff]
    %v3038 = vld [vmem:[%s6 + $0x2e0] sm:$0xff]
    %v3039 = vld [vmem:[%s6 + $0x2e8] sm:$0xff]
    %v3040 = vld [vmem:[%s6 + $0x2f0] sm:$0xff]
    %v3041 = vld [vmem:[%s6 + $0x2f8] sm:$0xff]
    %v3042 = vld [vmem:[%s6 + $0x300] sm:$0xff]
    %v3043 = vld [vmem:[%s6 + $0x308] sm:$0xff]
    %v3044 = vld [vmem:[%s6 + $0x310] sm:$0xff]
    %v3045 = vld [vmem:[%s6 + $0x318] sm:$0xff]
    %v3046 = vld [vmem:[%s6 + $0x320] sm:$0xff]
    %v3047 = vld [vmem:[%s6 + $0x328] sm:$0xff]
    %v3048 = vld [vmem:[%s6 + $0x330] sm:$0xff]
    %v3049 = vld [vmem:[%s6 + $0x338] sm:$0xff]
    %v3050 = vld [vmem:[%s6 + $0x340] sm:$0xff]
    %v3051 = vld [vmem:[%s6 + $0x348] sm:$0xff]
    %v3052 = vld [vmem:[%s6 + $0x350] sm:$0xff]
    %v3053 = vld [vmem:[%s6 + $0x358] sm:$0xff]
    %v3054 = vld [vmem:[%s6 + $0x360] sm:$0xff]
    %v3055 = vld [vmem:[%s6 + $0x368] sm:$0xff]
    %v3056 = vld [vmem:[%s6 + $0x370] sm:$0xff]
    %v3057 = vld [vmem:[%s6 + $0x378] sm:$0xff]
    %v3058 = vld [vmem:[%s6 + $0x380] sm:$0xff]
    %v3059 = vld [vmem:[%s6 + $0x388] sm:$0xff]
    %v3060 = vld [vmem:[%s6 + $0x390] sm:$0xff]
    %v3061 = vld [vmem:[%s6 + $0x398] sm:$0xff]
    %v3062 = vld [vmem:[%s6 + $0x3a0] sm:$0xff]
    %v3063 = vld [vmem:[%s6 + $0x3a8] sm:$0xff]
    %v3064 = vld [vmem:[%s6 + $0x3b0] sm:$0xff]
    %v3065 = vld [vmem:[%s6 + $0x3b8] sm:$0xff]
    %v3066 = vld [vmem:[%s6 + $0x3c0] sm:$0xff]
    %v3067 = vld [vmem:[%s6 + $0x3c8] sm:$0xff]
    %v3068 = vld [vmem:[%s6 + $0x3d0] sm:$0xff]
    %v3069 = vld [vmem:[%s6 + $0x3d8] sm:$0xff]
    %v3070 = vld [vmem:[%s6 + $0x3e0] sm:$0xff]
    %v3071 = vld [vmem:[%s6 + $0x3e8] sm:$0xff]
    %v3072 = vld [vmem:[%s6 + $0x3f0] sm:$0xff]
    %v3073 = vld [vmem:[%s6 + $0x3f8] sm:$0xff]
    %v3074 = vld [vmem:[%s6 + $0x400] sm:$0xff]
    %v3075 = vld [vmem:[%s6 + $0x408] sm:$0xff]
    %v3076 = vld [vmem:[%s6 + $0x410] sm:$0xff]
    %v3077 = vld [vmem:[%s6 + $0x418] sm:$0xff]
    %v3078 = vld [vmem:[%s6 + $0x420] sm:$0xff]
    %v3079 = vld [vmem:[%s6 + $0x428] sm:$0xff]
    %v3080 = vld [vmem:[%s6 + $0x430] sm:$0xff]
    %v3081 = vld [vmem:[%s6 + $0x438] sm:$0xff]
    %v3082 = vld [vmem:[%s6 + $0x440] sm:$0xff]
    %v3083 = vld [vmem:[%s6 + $0x448] sm:$0xff]
    %v3084 = vld [vmem:[%s6 + $0x450] sm:$0xff]
    %v3085 = vld [vmem:[%s6 + $0x458] sm:$0xff]
    %v3086 = vld [vmem:[%s6 + $0x460] sm:$0xff]
    %v3087 = vld [vmem:[%s6 + $0x468] sm:$0xff]
    %v3088 = vld [vmem:[%s6 + $0x470] sm:$0xff]
    %v3089 = vld [vmem:[%s6 + $0x478] sm:$0xff]
    %v3090 = vld [vmem:[%s6 + $0x480] sm:$0x1]
    %v3091 = vld [vmem:[%s6 + $0x488] sm:$0x1]
    %v3093 = vsel %vm1211, %v2945, 0
    %v3096 = vsel %vm300, %v3090, 0
    %v3099 = vsel %vm300, %v3091, 0
    %3101 = vmatprep.subr.mxu0 %v2947
    %3102 = vmatpush1.msra.mxu0 %v2946
    %3103 = vmatprep.subr.mxu0 %v2949
    %3104 = vmatpush1.msra.mxu0 %v2948
    %3105 = vmatprep.subr.mxu0 %v2951
    %3106 = vmatpush1.msra.mxu0 %v2950
    %3107 = vmatprep.subr.mxu0 %v2953
    %3108 = vmatpush1.msra.mxu0 %v2952
    %3109 = vmatprep.subr.mxu0 %v2955
    %3110 = vmatpush1.msra.mxu0 %v2954
    %3111 = vmatprep.subr.mxu0 %v2957
    %3112 = vmatpush1.msra.mxu0 %v2956
    %3113 = vmatprep.subr.mxu0 %v2959
    %3114 = vmatpush1.msra.mxu0 %v2958
    %3115 = vmatprep.subr.mxu0 %v2961
    %3116 = vmatpush1.msra.mxu0 %v2960
    %3117 = vmatprep.subr.mxu0 %v2963
    %3118 = vmatpush1.msra.mxu0 %v2962
    %3119 = vmatprep.subr.mxu0 %v2965
    %3120 = vmatpush1.msra.mxu0 %v2964
    %3121 = vmatprep.subr.mxu0 %v2967
    %3122 = vmatpush1.msra.mxu0 %v2966
    %3123 = vmatprep.subr.mxu0 %v2969
    %3124 = vmatpush1.msra.mxu0 %v2968
    %3125 = vmatprep.subr.mxu0 %v2971
    %3126 = vmatpush1.msra.mxu0 %v2970
    %3127 = vmatprep.subr.mxu0 %v2973
    %3128 = vmatpush1.msra.mxu0 %v2972
    %3129 = vmatprep.subr.mxu0 %v2975
    %3130 = vmatpush1.msra.mxu0 %v2974
    %3131 = vmatprep.subr.mxu0 %v2977
    %3132 = vmatpush1.msra.mxu0 %v2976
    %3133 = vmatprep.subr.mxu0 %v2979
    %3134 = vmatpush1.msra.mxu0 %v2978
    %3135 = vmatprep.subr.mxu0 %v2981
    %3136 = vmatpush1.msra.mxu0 %v2980
    %3137 = vmatprep.subr.mxu0 %v2983
    %3138 = vmatpush1.msra.mxu0 %v2982
    %3139 = vmatprep.subr.mxu0 %v2985
    %3140 = vmatpush1.msra.mxu0 %v2984
    %3141 = vmatprep.subr.mxu0 %v2987
    %3142 = vmatpush1.msra.mxu0 %v2986
    %3143 = vmatprep.subr.mxu0 %v2989
    %3144 = vmatpush1.msra.mxu0 %v2988
    %3145 = vmatprep.subr.mxu0 %v2991
    %3146 = vmatpush1.msra.mxu0 %v2990
    %3147 = vmatprep.subr.mxu0 %v2993
    %3148 = vmatpush1.msra.mxu0 %v2992
    %3149 = vmatprep.subr.mxu0 %v2995
    %3150 = vmatpush1.msra.mxu0 %v2994
    %3151 = vmatprep.subr.mxu0 %v2997
    %3152 = vmatpush1.msra.mxu0 %v2996
    %3153 = vmatprep.subr.mxu0 %v2999
    %3154 = vmatpush1.msra.mxu0 %v2998
    %3155 = vmatprep.subr.mxu0 %v3001
    %3156 = vmatpush1.msra.mxu0 %v3000
    %3157 = vmatprep.subr.mxu0 %v3003
    %3158 = vmatpush1.msra.mxu0 %v3002
    %3159 = vmatprep.subr.mxu0 %v3005
    %3160 = vmatpush1.msra.mxu0 %v3004
    %3161 = vmatprep.subr.mxu0 %v3007
    %3162 = vmatpush1.msra.mxu0 %v3006
    %3163 = vmatprep.subr.mxu0 %v3009
    %3164 = vmatpush1.msra.mxu0 %v3008
    %3165 = vmatprep.mubr.f32.mxu0 %v2944
    %3166 = vmatmul.mubr.f32.gmra.mrb[0].mxu0 %v2927
    %v3167 = vpop.f32.mrb[0].mxu0
    %v3168 = vadd.f32 0.0, %v3167
    %v3169 = vpop.f32.mrb[0].mxu0
    %v3170 = vadd.f32 0.0, %v3169
    %3171 = vdwg.mxu0
    %3172 = vmatprep.subr.mxu0 %v3011
    %3173 = vmatpush1.msra.mxu0 %v3010
    %3174 = vmatprep.subr.mxu0 %v3013
    %3175 = vmatpush1.msra.mxu0 %v3012
    %3176 = vmatprep.subr.mxu0 %v3015
    %3177 = vmatpush1.msra.mxu0 %v3014
    %3178 = vmatprep.subr.mxu0 %v3017
    %3179 = vmatpush1.msra.mxu0 %v3016
    %3180 = vmatprep.subr.mxu0 %v3019
    %3181 = vmatpush1.msra.mxu0 %v3018
    %3182 = vmatprep.subr.mxu0 %v3021
    %3183 = vmatpush1.msra.mxu0 %v3020
    %3184 = vmatprep.subr.mxu0 %v3023
    %3185 = vmatpush1.msra.mxu0 %v3022
    %3186 = vmatprep.subr.mxu0 %v3025
    %3187 = vmatpush1.msra.mxu0 %v3024
    %3188 = vmatprep.subr.mxu0 %v3027
    %3189 = vmatpush1.msra.mxu0 %v3026
    %3190 = vmatprep.subr.mxu0 %v3029
    %3191 = vmatpush1.msra.mxu0 %v3028
    %3192 = vmatprep.subr.mxu0 %v3031
    %3193 = vmatpush1.msra.mxu0 %v3030
    %3194 = vmatprep.subr.mxu0 %v3033
    %3195 = vmatpush1.msra.mxu0 %v3032
    %3196 = vmatprep.subr.mxu0 %v3035
    %3197 = vmatpush1.msra.mxu0 %v3034
    %3198 = vmatprep.subr.mxu0 %v3037
    %3199 = vmatpush1.msra.mxu0 %v3036
    %3200 = vmatprep.subr.mxu0 %v3039
    %3201 = vmatpush1.msra.mxu0 %v3038
    %3202 = vmatprep.subr.mxu0 %v3041
    %3203 = vmatpush1.msra.mxu0 %v3040
    %3204 = vmatprep.subr.mxu0 %v3043
    %3205 = vmatpush1.msra.mxu0 %v3042
    %3206 = vmatprep.subr.mxu0 %v3045
    %3207 = vmatpush1.msra.mxu0 %v3044
    %3208 = vmatprep.subr.mxu0 %v3047
    %3209 = vmatpush1.msra.mxu0 %v3046
    %3210 = vmatprep.subr.mxu0 %v3049
    %3211 = vmatpush1.msra.mxu0 %v3048
    %3212 = vmatprep.subr.mxu0 %v3051
    %3213 = vmatpush1.msra.mxu0 %v3050
    %3214 = vmatprep.subr.mxu0 %v3053
    %3215 = vmatpush1.msra.mxu0 %v3052
    %3216 = vmatprep.subr.mxu0 %v3055
    %3217 = vmatpush1.msra.mxu0 %v3054
    %3218 = vmatprep.subr.mxu0 %v3057
    %3219 = vmatpush1.msra.mxu0 %v3056
    %3220 = vmatprep.subr.mxu0 %v3059
    %3221 = vmatpush1.msra.mxu0 %v3058
    %3222 = vmatprep.subr.mxu0 %v3061
    %3223 = vmatpush1.msra.mxu0 %v3060
    %3224 = vmatprep.subr.mxu0 %v3063
    %3225 = vmatpush1.msra.mxu0 %v3062
    %3226 = vmatprep.subr.mxu0 %v3065
    %3227 = vmatpush1.msra.mxu0 %v3064
    %3228 = vmatprep.subr.mxu0 %v3067
    %3229 = vmatpush1.msra.mxu0 %v3066
    %3230 = vmatprep.subr.mxu0 %v3069
    %3231 = vmatpush1.msra.mxu0 %v3068
    %3232 = vmatprep.subr.mxu0 %v3071
    %3233 = vmatpush1.msra.mxu0 %v3070
    %3234 = vmatprep.subr.mxu0 %v3073
    %3235 = vmatpush1.msra.mxu0 %v3072
    %3236 = vmatprep.mubr.f32.mxu0 %v2940
    %3237 = vmatmul.mubr.f32.gmra.mrb[0].mxu0 %v2937
    %v3238 = vpop.f32.mrb[0].mxu0
    %v3239 = vadd.f32 %v3168, %v3238
    %v3240 = vpop.f32.mrb[0].mxu0
    %v3241 = vadd.f32 %v3170, %v3240
    %3242 = vdwg.mxu0
    %3243 = vmatprep.subr.mxu0 %v3075
    %3244 = vmatpush1.msra.mxu0 %v3074
    %3245 = vmatprep.subr.mxu0 %v3077
    %3246 = vmatpush1.msra.mxu0 %v3076
    %3247 = vmatprep.subr.mxu0 %v3079
    %3248 = vmatpush1.msra.mxu0 %v3078
    %3249 = vmatprep.subr.mxu0 %v3081
    %3250 = vmatpush1.msra.mxu0 %v3080
    %3251 = vmatprep.subr.mxu0 %v3083
    %3252 = vmatpush1.msra.mxu0 %v3082
    %3253 = vmatprep.subr.mxu0 %v3085
    %3254 = vmatpush1.msra.mxu0 %v3084
    %3255 = vmatprep.subr.mxu0 %v3087
    %3256 = vmatpush1.msra.mxu0 %v3086
    %3257 = vmatprep.subr.mxu0 %v3089
    %3258 = vmatpush1.msra.mxu0 %v3088
    %3259 = vmatprep.subr.mxu0 %v3099
    %3260 = vmatpush1.msra.mxu0 %v3096
    %3261 = vmatprep.subr.mxu0 0.0
    %3262 = vmatpush1.msra.mxu0 0.0
    %3263 = vmatprep.subr.mxu0 0.0
    %3264 = vmatpush1.msra.mxu0 0.0
    %3265 = vmatprep.subr.mxu0 0.0
    %3266 = vmatpush1.msra.mxu0 0.0
    %3267 = vmatprep.subr.mxu0 0.0
    %3268 = vmatpush1.msra.mxu0 0.0
    %3269 = vmatprep.subr.mxu0 0.0
    %3270 = vmatpush1.msra.mxu0 0.0
    %3271 = vmatprep.subr.mxu0 0.0
    %3272 = vmatpush1.msra.mxu0 0.0
    %3273 = vmatprep.subr.mxu0 0.0
    %3274 = vmatpush1.msra.mxu0 0.0
    %3275 = vmatprep.subr.mxu0 0.0
    %3276 = vmatpush1.msra.mxu0 0.0
    %3277 = vmatprep.subr.mxu0 0.0
    %3278 = vmatpush1.msra.mxu0 0.0
    %3279 = vmatprep.subr.mxu0 0.0
    %3280 = vmatpush1.msra.mxu0 0.0
    %3281 = vmatprep.subr.mxu0 0.0
    %3282 = vmatpush1.msra.mxu0 0.0
    %3283 = vmatprep.subr.mxu0 0.0
    %3284 = vmatpush1.msra.mxu0 0.0
    %3285 = vmatprep.subr.mxu0 0.0
    %3286 = vmatpush1.msra.mxu0 0.0
    %3287 = vmatprep.subr.mxu0 0.0
    %3288 = vmatpush1.msra.mxu0 0.0
    %3289 = vmatprep.subr.mxu0 0.0
    %3290 = vmatpush1.msra.mxu0 0.0
    %3291 = vmatprep.subr.mxu0 0.0
    %3292 = vmatpush1.msra.mxu0 0.0
    %3293 = vmatprep.subr.mxu0 0.0
    %3294 = vmatpush1.msra.mxu0 0.0
    %3295 = vmatprep.subr.mxu0 0.0
    %3296 = vmatpush1.msra.mxu0 0.0
    %3297 = vmatprep.subr.mxu0 0.0
    %3298 = vmatpush1.msra.mxu0 0.0
    %3299 = vmatprep.subr.mxu0 0.0
    %3300 = vmatpush1.msra.mxu0 0.0
    %3301 = vmatprep.subr.mxu0 0.0
    %3302 = vmatpush1.msra.mxu0 0.0
    %3303 = vmatprep.subr.mxu0 0.0
    %3304 = vmatpush1.msra.mxu0 0.0
    %3305 = vmatprep.subr.mxu0 0.0
    %3306 = vmatpush1.msra.mxu0 0.0
    %3307 = vmatprep.mubr.f32.mxu0 0.0
    %3308 = vmatmul.mubr.f32.gmra.mrb[0].mxu0 %v3093
    %v3309 = vpop.f32.mrb[0].mxu0
    %v3310 = vadd.f32 %v3239, %v3309
    %v3311 = vpop.f32.mrb[0].mxu0
    %v3312 = vadd.f32 %v3241, %v3311
    %3313 = vdwg.mxu0
    %v3314 = vmax.f32 %v3310, 0.0
    %v3315 = vmax.f32 %v3312, 0.0
    %v3318 = vrot.slane %v3314, 1
    %v3319 = vrot.slane %v3315, 1
    %v3322 = vrot.slane %v3314, 2
    %v3323 = vrot.slane %v3315, 2
    %v3326 = vld [vmem:[%s7] sm:$0xff]
    %v3327 = vld [vmem:[%s7 + $0x8] sm:$0xff]
    %v3328 = vld [vmem:[%s7 + $0x10] sm:$0xff]
    %v3329 = vld [vmem:[%s7 + $0x18] sm:$0xff]
    %v3330 = vld [vmem:[%s7 + $0x20] sm:$0xff]
    %v3331 = vld [vmem:[%s7 + $0x28] sm:$0xff]
    %v3332 = vld [vmem:[%s7 + $0x30] sm:$0xff]
    %v3333 = vld [vmem:[%s7 + $0x38] sm:$0xff]
    %v3334 = vld [vmem:[%s7 + $0x40] sm:$0xff]
    %v3335 = vld [vmem:[%s7 + $0x48] sm:$0xff]
    %v3336 = vld [vmem:[%s7 + $0x50] sm:$0xff]
    %v3337 = vld [vmem:[%s7 + $0x58] sm:$0xff]
    %v3338 = vld [vmem:[%s7 + $0x60] sm:$0xff]
    %v3339 = vld [vmem:[%s7 + $0x68] sm:$0xff]
    %v3340 = vld [vmem:[%s7 + $0x70] sm:$0xff]
    %v3341 = vld [vmem:[%s7 + $0x78] sm:$0xff]
    %v3342 = vld [vmem:[%s7 + $0x80] sm:$0xff]
    %v3343 = vld [vmem:[%s7 + $0x88] sm:$0xff]
    %v3344 = vld [vmem:[%s7 + $0x90] sm:$0xff]
    %v3345 = vld [vmem:[%s7 + $0x98] sm:$0xff]
    %v3346 = vld [vmem:[%s7 + $0xa0] sm:$0xff]
    %v3347 = vld [vmem:[%s7 + $0xa8] sm:$0xff]
    %v3348 = vld [vmem:[%s7 + $0xb0] sm:$0xff]
    %v3349 = vld [vmem:[%s7 + $0xb8] sm:$0xff]
    %v3350 = vld [vmem:[%s7 + $0xc0] sm:$0xff]
    %v3351 = vld [vmem:[%s7 + $0xc8] sm:$0xff]
    %v3352 = vld [vmem:[%s7 + $0xd0] sm:$0xff]
    %v3353 = vld [vmem:[%s7 + $0xd8] sm:$0xff]
    %v3354 = vld [vmem:[%s7 + $0xe0] sm:$0xff]
    %v3355 = vld [vmem:[%s7 + $0xe8] sm:$0xff]
    %v3356 = vld [vmem:[%s7 + $0xf0] sm:$0xff]
    %v3357 = vld [vmem:[%s7 + $0xf8] sm:$0xff]
    %v3358 = vld [vmem:[%s7 + $0x100] sm:$0xff]
    %v3359 = vld [vmem:[%s7 + $0x108] sm:$0xff]
    %v3360 = vld [vmem:[%s7 + $0x110] sm:$0xff]
    %v3361 = vld [vmem:[%s7 + $0x118] sm:$0xff]
    %v3362 = vld [vmem:[%s7 + $0x120] sm:$0xff]
    %v3363 = vld [vmem:[%s7 + $0x128] sm:$0xff]
    %v3364 = vld [vmem:[%s7 + $0x130] sm:$0xff]
    %v3365 = vld [vmem:[%s7 + $0x138] sm:$0xff]
    %v3366 = vld [vmem:[%s7 + $0x140] sm:$0xff]
    %v3367 = vld [vmem:[%s7 + $0x148] sm:$0xff]
    %v3368 = vld [vmem:[%s7 + $0x150] sm:$0xff]
    %v3369 = vld [vmem:[%s7 + $0x158] sm:$0xff]
    %v3370 = vld [vmem:[%s7 + $0x160] sm:$0xff]
    %v3371 = vld [vmem:[%s7 + $0x168] sm:$0xff]
    %v3372 = vld [vmem:[%s7 + $0x170] sm:$0xff]
    %v3373 = vld [vmem:[%s7 + $0x178] sm:$0xff]
    %v3374 = vld [vmem:[%s7 + $0x180] sm:$0xff]
    %v3375 = vld [vmem:[%s7 + $0x188] sm:$0xff]
    %v3376 = vld [vmem:[%s7 + $0x190] sm:$0xff]
    %v3377 = vld [vmem:[%s7 + $0x198] sm:$0xff]
    %v3378 = vld [vmem:[%s7 + $0x1a0] sm:$0xff]
    %v3379 = vld [vmem:[%s7 + $0x1a8] sm:$0xff]
    %v3380 = vld [vmem:[%s7 + $0x1b0] sm:$0xff]
    %v3381 = vld [vmem:[%s7 + $0x1b8] sm:$0xff]
    %v3382 = vld [vmem:[%s7 + $0x1c0] sm:$0xff]
    %v3383 = vld [vmem:[%s7 + $0x1c8] sm:$0xff]
    %v3384 = vld [vmem:[%s7 + $0x1d0] sm:$0xff]
    %v3385 = vld [vmem:[%s7 + $0x1d8] sm:$0xff]
    %v3386 = vld [vmem:[%s7 + $0x1e0] sm:$0xff]
    %v3387 = vld [vmem:[%s7 + $0x1e8] sm:$0xff]
    %v3388 = vld [vmem:[%s7 + $0x1f0] sm:$0xff]
    %v3389 = vld [vmem:[%s7 + $0x1f8] sm:$0xff]
    %v3390 = vld [vmem:[%s7 + $0x200] sm:$0xff]
    %v3391 = vld [vmem:[%s7 + $0x208] sm:$0xff]
    %v3392 = vld [vmem:[%s7 + $0x210] sm:$0xff]
    %v3393 = vld [vmem:[%s7 + $0x218] sm:$0xff]
    %v3394 = vld [vmem:[%s7 + $0x220] sm:$0xff]
    %v3395 = vld [vmem:[%s7 + $0x228] sm:$0xff]
    %v3396 = vld [vmem:[%s7 + $0x230] sm:$0xff]
    %v3397 = vld [vmem:[%s7 + $0x238] sm:$0xff]
    %v3398 = vld [vmem:[%s7 + $0x240] sm:$0xff]
    %v3399 = vld [vmem:[%s7 + $0x248] sm:$0xff]
    %v3400 = vld [vmem:[%s7 + $0x250] sm:$0xff]
    %v3401 = vld [vmem:[%s7 + $0x258] sm:$0xff]
    %v3402 = vld [vmem:[%s7 + $0x260] sm:$0xff]
    %v3403 = vld [vmem:[%s7 + $0x268] sm:$0xff]
    %v3404 = vld [vmem:[%s7 + $0x270] sm:$0xff]
    %v3405 = vld [vmem:[%s7 + $0x278] sm:$0xff]
    %v3406 = vld [vmem:[%s7 + $0x280] sm:$0xff]
    %v3407 = vld [vmem:[%s7 + $0x288] sm:$0xff]
    %v3408 = vld [vmem:[%s7 + $0x290] sm:$0xff]
    %v3409 = vld [vmem:[%s7 + $0x298] sm:$0xff]
    %v3410 = vld [vmem:[%s7 + $0x2a0] sm:$0xff]
    %v3411 = vld [vmem:[%s7 + $0x2a8] sm:$0xff]
    %v3412 = vld [vmem:[%s7 + $0x2b0] sm:$0xff]
    %v3413 = vld [vmem:[%s7 + $0x2b8] sm:$0xff]
    %v3414 = vld [vmem:[%s7 + $0x2c0] sm:$0xff]
    %v3415 = vld [vmem:[%s7 + $0x2c8] sm:$0xff]
    %v3416 = vld [vmem:[%s7 + $0x2d0] sm:$0xff]
    %v3417 = vld [vmem:[%s7 + $0x2d8] sm:$0xff]
    %v3418 = vld [vmem:[%s7 + $0x2e0] sm:$0xff]
    %v3419 = vld [vmem:[%s7 + $0x2e8] sm:$0xff]
    %v3420 = vld [vmem:[%s7 + $0x2f0] sm:$0xff]
    %v3421 = vld [vmem:[%s7 + $0x2f8] sm:$0xff]
    %v3422 = vld [vmem:[%s7 + $0x300] sm:$0x1]
    %v3424 = vsel %vm300, %v3422, 0
    %3426 = vmatprep.subr.mxu0 0.0
    %3427 = vmatpush1.msra.mxu0 %v3326
    %3428 = vmatprep.subr.mxu0 0.0
    %3429 = vmatpush1.msra.mxu0 %v3327
    %3430 = vmatprep.subr.mxu0 0.0
    %3431 = vmatpush1.msra.mxu0 %v3328
    %3432 = vmatprep.subr.mxu0 0.0
    %3433 = vmatpush1.msra.mxu0 %v3329
    %3434 = vmatprep.subr.mxu0 0.0
    %3435 = vmatpush1.msra.mxu0 %v3330
    %3436 = vmatprep.subr.mxu0 0.0
    %3437 = vmatpush1.msra.mxu0 %v3331
    %3438 = vmatprep.subr.mxu0 0.0
    %3439 = vmatpush1.msra.mxu0 %v3332
    %3440 = vmatprep.subr.mxu0 0.0
    %3441 = vmatpush1.msra.mxu0 %v3333
    %3442 = vmatprep.subr.mxu0 0.0
    %3443 = vmatpush1.msra.mxu0 %v3334
    %3444 = vmatprep.subr.mxu0 0.0
    %3445 = vmatpush1.msra.mxu0 %v3335
    %3446 = vmatprep.subr.mxu0 0.0
    %3447 = vmatpush1.msra.mxu0 %v3336
    %3448 = vmatprep.subr.mxu0 0.0
    %3449 = vmatpush1.msra.mxu0 %v3337
    %3450 = vmatprep.subr.mxu0 0.0
    %3451 = vmatpush1.msra.mxu0 %v3338
    %3452 = vmatprep.subr.mxu0 0.0
    %3453 = vmatpush1.msra.mxu0 %v3339
    %3454 = vmatprep.subr.mxu0 0.0
    %3455 = vmatpush1.msra.mxu0 %v3340
    %3456 = vmatprep.subr.mxu0 0.0
    %3457 = vmatpush1.msra.mxu0 %v3341
    %3458 = vmatprep.subr.mxu0 0.0
    %3459 = vmatpush1.msra.mxu0 %v3342
    %3460 = vmatprep.subr.mxu0 0.0
    %3461 = vmatpush1.msra.mxu0 %v3343
    %3462 = vmatprep.subr.mxu0 0.0
    %3463 = vmatpush1.msra.mxu0 %v3344
    %3464 = vmatprep.subr.mxu0 0.0
    %3465 = vmatpush1.msra.mxu0 %v3345
    %3466 = vmatprep.subr.mxu0 0.0
    %3467 = vmatpush1.msra.mxu0 %v3346
    %3468 = vmatprep.subr.mxu0 0.0
    %3469 = vmatpush1.msra.mxu0 %v3347
    %3470 = vmatprep.subr.mxu0 0.0
    %3471 = vmatpush1.msra.mxu0 %v3348
    %3472 = vmatprep.subr.mxu0 0.0
    %3473 = vmatpush1.msra.mxu0 %v3349
    %3474 = vmatprep.subr.mxu0 0.0
    %3475 = vmatpush1.msra.mxu0 %v3350
    %3476 = vmatprep.subr.mxu0 0.0
    %3477 = vmatpush1.msra.mxu0 %v3351
    %3478 = vmatprep.subr.mxu0 0.0
    %3479 = vmatpush1.msra.mxu0 %v3352
    %3480 = vmatprep.subr.mxu0 0.0
    %3481 = vmatpush1.msra.mxu0 %v3353
    %3482 = vmatprep.subr.mxu0 0.0
    %3483 = vmatpush1.msra.mxu0 %v3354
    %3484 = vmatprep.subr.mxu0 0.0
    %3485 = vmatpush1.msra.mxu0 %v3355
    %3486 = vmatprep.subr.mxu0 0.0
    %3487 = vmatpush1.msra.mxu0 %v3356
    %3488 = vmatprep.subr.mxu0 0.0
    %3489 = vmatpush1.msra.mxu0 %v3357
    %3490 = vmatprep.mubr.f32.mxu0 %v3315
    %3491 = vmatmul.mubr.f32.gmra.mrb[0].mxu0 %v3314
    %v3492 = vpop.f32.mrb[0].mxu0
    %v3493 = vadd.f32 0.0, %v3492
    %v3494 = vpop.f32.mrb[0].mxu0
    %3495 = vdwg.mxu0
    %3496 = vmatprep.subr.mxu0 0.0
    %3497 = vmatpush1.msra.mxu0 %v3358
    %3498 = vmatprep.subr.mxu0 0.0
    %3499 = vmatpush1.msra.mxu0 %v3359
    %3500 = vmatprep.subr.mxu0 0.0
    %3501 = vmatpush1.msra.mxu0 %v3360
    %3502 = vmatprep.subr.mxu0 0.0
    %3503 = vmatpush1.msra.mxu0 %v3361
    %3504 = vmatprep.subr.mxu0 0.0
    %3505 = vmatpush1.msra.mxu0 %v3362
    %3506 = vmatprep.subr.mxu0 0.0
    %3507 = vmatpush1.msra.mxu0 %v3363
    %3508 = vmatprep.subr.mxu0 0.0
    %3509 = vmatpush1.msra.mxu0 %v3364
    %3510 = vmatprep.subr.mxu0 0.0
    %3511 = vmatpush1.msra.mxu0 %v3365
    %3512 = vmatprep.subr.mxu0 0.0
    %3513 = vmatpush1.msra.mxu0 %v3366
    %3514 = vmatprep.subr.mxu0 0.0
    %3515 = vmatpush1.msra.mxu0 %v3367
    %3516 = vmatprep.subr.mxu0 0.0
    %3517 = vmatpush1.msra.mxu0 %v3368
    %3518 = vmatprep.subr.mxu0 0.0
    %3519 = vmatpush1.msra.mxu0 %v3369
    %3520 = vmatprep.subr.mxu0 0.0
    %3521 = vmatpush1.msra.mxu0 %v3370
    %3522 = vmatprep.subr.mxu0 0.0
    %3523 = vmatpush1.msra.mxu0 %v3371
    %3524 = vmatprep.subr.mxu0 0.0
    %3525 = vmatpush1.msra.mxu0 %v3372
    %3526 = vmatprep.subr.mxu0 0.0
    %3527 = vmatpush1.msra.mxu0 %v3373
    %3528 = vmatprep.subr.mxu0 0.0
    %3529 = vmatpush1.msra.mxu0 %v3374
    %3530 = vmatprep.subr.mxu0 0.0
    %3531 = vmatpush1.msra.mxu0 %v3375
    %3532 = vmatprep.subr.mxu0 0.0
    %3533 = vmatpush1.msra.mxu0 %v3376
    %3534 = vmatprep.subr.mxu0 0.0
    %3535 = vmatpush1.msra.mxu0 %v3377
    %3536 = vmatprep.subr.mxu0 0.0
    %3537 = vmatpush1.msra.mxu0 %v3378
    %3538 = vmatprep.subr.mxu0 0.0
    %3539 = vmatpush1.msra.mxu0 %v3379
    %3540 = vmatprep.subr.mxu0 0.0
    %3541 = vmatpush1.msra.mxu0 %v3380
    %3542 = vmatprep.subr.mxu0 0.0
    %3543 = vmatpush1.msra.mxu0 %v3381
    %3544 = vmatprep.subr.mxu0 0.0
    %3545 = vmatpush1.msra.mxu0 %v3382
    %3546 = vmatprep.subr.mxu0 0.0
    %3547 = vmatpush1.msra.mxu0 %v3383
    %3548 = vmatprep.subr.mxu0 0.0
    %3549 = vmatpush1.msra.mxu0 %v3384
    %3550 = vmatprep.subr.mxu0 0.0
    %3551 = vmatpush1.msra.mxu0 %v3385
    %3552 = vmatprep.subr.mxu0 0.0
    %3553 = vmatpush1.msra.mxu0 %v3386
    %3554 = vmatprep.subr.mxu0 0.0
    %3555 = vmatpush1.msra.mxu0 %v3387
    %3556 = vmatprep.subr.mxu0 0.0
    %3557 = vmatpush1.msra.mxu0 %v3388
    %3558 = vmatprep.subr.mxu0 0.0
    %3559 = vmatpush1.msra.mxu0 %v3389
    %3560 = vmatprep.mubr.f32.mxu0 %v3319
    %3561 = vmatmul.mubr.f32.gmra.mrb[0].mxu0 %v3318
    %v3562 = vpop.f32.mrb[0].mxu0
    %v3563 = vadd.f32 %v3493, %v3562
    %v3564 = vpop.f32.mrb[0].mxu0
    %3565 = vdwg.mxu0
    %3566 = vmatprep.subr.mxu0 0.0
    %3567 = vmatpush1.msra.mxu0 %v3390
    %3568 = vmatprep.subr.mxu0 0.0
    %3569 = vmatpush1.msra.mxu0 %v3391
    %3570 = vmatprep.subr.mxu0 0.0
    %3571 = vmatpush1.msra.mxu0 %v3392
    %3572 = vmatprep.subr.mxu0 0.0
    %3573 = vmatpush1.msra.mxu0 %v3393
    %3574 = vmatprep.subr.mxu0 0.0
    %3575 = vmatpush1.msra.mxu0 %v3394
    %3576 = vmatprep.subr.mxu0 0.0
    %3577 = vmatpush1.msra.mxu0 %v3395
    %3578 = vmatprep.subr.mxu0 0.0
    %3579 = vmatpush1.msra.mxu0 %v3396
    %3580 = vmatprep.subr.mxu0 0.0
    %3581 = vmatpush1.msra.mxu0 %v3397
    %3582 = vmatprep.subr.mxu0 0.0
    %3583 = vmatpush1.msra.mxu0 %v3398
    %3584 = vmatprep.subr.mxu0 0.0
    %3585 = vmatpush1.msra.mxu0 %v3399
    %3586 = vmatprep.subr.mxu0 0.0
    %3587 = vmatpush1.msra.mxu0 %v3400
    %3588 = vmatprep.subr.mxu0 0.0
    %3589 = vmatpush1.msra.mxu0 %v3401
    %3590 = vmatprep.subr.mxu0 0.0
    %3591 = vmatpush1.msra.mxu0 %v3402
    %3592 = vmatprep.subr.mxu0 0.0
    %3593 = vmatpush1.msra.mxu0 %v3403
    %3594 = vmatprep.subr.mxu0 0.0
    %3595 = vmatpush1.msra.mxu0 %v3404
    %3596 = vmatprep.subr.mxu0 0.0
    %3597 = vmatpush1.msra.mxu0 %v3405
    %3598 = vmatprep.subr.mxu0 0.0
    %3599 = vmatpush1.msra.mxu0 %v3406
    %3600 = vmatprep.subr.mxu0 0.0
    %3601 = vmatpush1.msra.mxu0 %v3407
    %3602 = vmatprep.subr.mxu0 0.0
    %3603 = vmatpush1.msra.mxu0 %v3408
    %3604 = vmatprep.subr.mxu0 0.0
    %3605 = vmatpush1.msra.mxu0 %v3409
    %3606 = vmatprep.subr.mxu0 0.0
    %3607 = vmatpush1.msra.mxu0 %v3410
    %3608 = vmatprep.subr.mxu0 0.0
    %3609 = vmatpush1.msra.mxu0 %v3411
    %3610 = vmatprep.subr.mxu0 0.0
    %3611 = vmatpush1.msra.mxu0 %v3412
    %3612 = vmatprep.subr.mxu0 0.0
    %3613 = vmatpush1.msra.mxu0 %v3413
    %3614 = vmatprep.subr.mxu0 0.0
    %3615 = vmatpush1.msra.mxu0 %v3414
    %3616 = vmatprep.subr.mxu0 0.0
    %3617 = vmatpush1.msra.mxu0 %v3415
    %3618 = vmatprep.subr.mxu0 0.0
    %3619 = vmatpush1.msra.mxu0 %v3416
    %3620 = vmatprep.subr.mxu0 0.0
    %3621 = vmatpush1.msra.mxu0 %v3417
    %3622 = vmatprep.subr.mxu0 0.0
    %3623 = vmatpush1.msra.mxu0 %v3418
    %3624 = vmatprep.subr.mxu0 0.0
    %3625 = vmatpush1.msra.mxu0 %v3419
    %3626 = vmatprep.subr.mxu0 0.0
    %3627 = vmatpush1.msra.mxu0 %v3420
    %3628 = vmatprep.subr.mxu0 0.0
    %3629 = vmatpush1.msra.mxu0 %v3421
    %3630 = vmatprep.mubr.f32.mxu0 %v3323
    %3631 = vmatmul.mubr.f32.gmra.mrb[0].mxu0 %v3322
    %v3632 = vpop.f32.mrb[0].mxu0
    %v3633 = vadd.f32 %v3563, %v3632
    %v3634 = vpop.f32.mrb[0].mxu0
    %3635 = vdwg.mxu0
    %3636 = vmatprep.subr.mxu0 0.0
    %3637 = vmatpush1.msra.mxu0 %v3424
    %3638 = vmatprep.subr.mxu0 0.0
    %3639 = vmatpush1.msra.mxu0 0.0
    %3640 = vmatprep.subr.mxu0 0.0
    %3641 = vmatpush1.msra.mxu0 0.0
    %3642 = vmatprep.subr.mxu0 0.0
    %3643 = vmatpush1.msra.mxu0 0.0
    %3644 = vmatprep.subr.mxu0 0.0
    %3645 = vmatpush1.msra.mxu0 0.0
    %3646 = vmatprep.subr.mxu0 0.0
    %3647 = vmatpush1.msra.mxu0 0.0
    %3648 = vmatprep.subr.mxu0 0.0
    %3649 = vmatpush1.msra.mxu0 0.0
    %3650 = vmatprep.subr.mxu0 0.0
    %3651 = vmatpush1.msra.mxu0 0.0
    %3652 = vmatprep.subr.mxu0 0.0
    %3653 = vmatpush1.msra.mxu0 0.0
    %3654 = vmatprep.subr.mxu0 0.0
    %3655 = vmatpush1.msra.mxu0 0.0
    %3656 = vmatprep.subr.mxu0 0.0
    %3657 = vmatpush1.msra.mxu0 0.0
    %3658 = vmatprep.subr.mxu0 0.0
    %3659 = vmatpush1.msra.mxu0 0.0
    %3660 = vmatprep.subr.mxu0 0.0
    %3661 = vmatpush1.msra.mxu0 0.0
    %3662 = vmatprep.subr.mxu0 0.0
    %3663 = vmatpush1.msra.mxu0 0.0
    %3664 = vmatprep.subr.mxu0 0.0
    %3665 = vmatpush1.msra.mxu0 0.0
    %3666 = vmatprep.subr.mxu0 0.0
    %3667 = vmatpush1.msra.mxu0 0.0
    %3668 = vmatprep.subr.mxu0 0.0
    %3669 = vmatpush1.msra.mxu0 0.0
    %3670 = vmatprep.subr.mxu0 0.0
    %3671 = vmatpush1.msra.mxu0 0.0
    %3672 = vmatprep.subr.mxu0 0.0
    %3673 = vmatpush1.msra.mxu0 0.0
    %3674 = vmatprep.subr.mxu0 0.0
    %3675 = vmatpush1.msra.mxu0 0.0
    %3676 = vmatprep.subr.mxu0 0.0
    %3677 = vmatpush1.msra.mxu0 0.0
    %3678 = vmatprep.subr.mxu0 0.0
    %3679 = vmatpush1.msra.mxu0 0.0
    %3680 = vmatprep.subr.mxu0 0.0
    %3681 = vmatpush1.msra.mxu0 0.0
    %3682 = vmatprep.subr.mxu0 0.0
    %3683 = vmatpush1.msra.mxu0 0.0
    %3684 = vmatprep.subr.mxu0 0.0
    %3685 = vmatpush1.msra.mxu0 0.0
    %3686 = vmatprep.subr.mxu0 0.0
    %3687 = vmatpush1.msra.mxu0 0.0
    %3688 = vmatprep.subr.mxu0 0.0
    %3689 = vmatpush1.msra.mxu0 0.0
    %3690 = vmatprep.subr.mxu0 0.0
    %3691 = vmatpush1.msra.mxu0 0.0
    %3692 = vmatprep.subr.mxu0 0.0
    %3693 = vmatpush1.msra.mxu0 0.0
    %3694 = vmatprep.subr.mxu0 0.0
    %3695 = vmatpush1.msra.mxu0 0.0
    %3696 = vmatprep.subr.mxu0 0.0
    %3697 = vmatpush1.msra.mxu0 0.0
    %3698 = vmatprep.subr.mxu0 0.0
    %3699 = vmatpush1.msra.mxu0 0.0
    %3700 = vmatprep.mubr.f32.mxu0 0.0
    %3701 = vmatmul.mubr.f32.gmra.mrb[0].mxu0 %v298
    %v3702 = vpop.f32.mrb[0].mxu0
    %v3703 = vadd.f32 %v3633, %v3702
    %v3704 = vpop.f32.mrb[0].mxu0
    %3705 = vdwg.mxu0
    %v3706 = vmax.f32 %v3703, 0.0
    %v3708 = vrot.slane %v3706, 1
    %v3710 = vmax.f32 %v3706, %v3708
    %v3711 = vld [vmem:[%s8] sm:$0xff]
    %v3712 = vld [vmem:[%s8 + $0x8] sm:$0xff]
    %v3713 = vld [vmem:[%s8 + $0x10] sm:$0xff]
    %v3714 = vld [vmem:[%s8 + $0x18] sm:$0xff]
    %v3715 = vld [vmem:[%s8 + $0x20] sm:$0xff]
    %v3716 = vld [vmem:[%s8 + $0x28] sm:$0xff]
    %v3717 = vld [vmem:[%s8 + $0x30] sm:$0xff]
    %v3718 = vld [vmem:[%s8 + $0x38] sm:$0xff]
    %v3719 = vld [vmem:[%s8 + $0x40] sm:$0xff]
    %v3720 = vld [vmem:[%s8 + $0x48] sm:$0xff]
    %v3721 = vld [vmem:[%s8 + $0x50] sm:$0xff]
    %v3722 = vld [vmem:[%s8 + $0x58] sm:$0xff]
    %v3723 = vld [vmem:[%s8 + $0x60] sm:$0xff]
    %v3724 = vld [vmem:[%s8 + $0x68] sm:$0xff]
    %v3725 = vld [vmem:[%s8 + $0x70] sm:$0xff]
    %v3726 = vld [vmem:[%s8 + $0x78] sm:$0xff]
    %3727 = vmatprep.subr.mxu0 0.0
    %3728 = vmatpush1.msra.mxu0 %v3711
    %3729 = vmatprep.subr.mxu0 0.0
    %3730 = vmatpush1.msra.mxu0 %v3712
    %3731 = vmatprep.subr.mxu0 0.0
    %3732 = vmatpush1.msra.mxu0 %v3713
    %3733 = vmatprep.subr.mxu0 0.0
    %3734 = vmatpush1.msra.mxu0 %v3714
    %3735 = vmatprep.subr.mxu0 0.0
    %3736 = vmatpush1.msra.mxu0 %v3715
    %3737 = vmatprep.subr.mxu0 0.0
    %3738 = vmatpush1.msra.mxu0 %v3716
    %3739 = vmatprep.subr.mxu0 0.0
    %3740 = vmatpush1.msra.mxu0 %v3717
    %3741 = vmatprep.subr.mxu0 0.0
    %3742 = vmatpush1.msra.mxu0 %v3718
    %3743 = vmatprep.subr.mxu0 0.0
    %3744 = vmatpush1.msra.mxu0 %v3719
    %3745 = vmatprep.subr.mxu0 0.0
    %3746 = vmatpush1.msra.mxu0 %v3720
    %3747 = vmatprep.subr.mxu0 0.0
    %3748 = vmatpush1.msra.mxu0 %v3721
    %3749 = vmatprep.subr.mxu0 0.0
    %3750 = vmatpush1.msra.mxu0 %v3722
    %3751 = vmatprep.subr.mxu0 0.0
    %3752 = vmatpush1.msra.mxu0 %v3723
    %3753 = vmatprep.subr.mxu0 0.0
    %3754 = vmatpush1.msra.mxu0 %v3724
    %3755 = vmatprep.subr.mxu0 0.0
    %3756 = vmatpush1.msra.mxu0 %v3725
    %3757 = vmatprep.subr.mxu0 0.0
    %3758 = vmatpush1.msra.mxu0 %v3726
    %3759 = vmatprep.subr.mxu0 0.0
    %3760 = vmatpush1.msra.mxu0 0.0
    %3761 = vmatprep.subr.mxu0 0.0
    %3762 = vmatpush1.msra.mxu0 0.0
    %3763 = vmatprep.subr.mxu0 0.0
    %3764 = vmatpush1.msra.mxu0 0.0
    %3765 = vmatprep.subr.mxu0 0.0
    %3766 = vmatpush1.msra.mxu0 0.0
    %3767 = vmatprep.subr.mxu0 0.0
    %3768 = vmatpush1.msra.mxu0 0.0
    %3769 = vmatprep.subr.mxu0 0.0
    %3770 = vmatpush1.msra.mxu0 0.0
    %3771 = vmatprep.subr.mxu0 0.0
    %3772 = vmatpush1.msra.mxu0 0.0
    %3773 = vmatprep.subr.mxu0 0.0
    %3774 = vmatpush1.msra.mxu0 0.0
    %3775 = vmatprep.subr.mxu0 0.0
    %3776 = vmatpush1.msra.mxu0 0.0
    %3777 = vmatprep.subr.mxu0 0.0
    %3778 = vmatpush1.msra.mxu0 0.0
    %3779 = vmatprep.subr.mxu0 0.0
    %3780 = vmatpush1.msra.mxu0 0.0
    %3781 = vmatprep.subr.mxu0 0.0
    %3782 = vmatpush1.msra.mxu0 0.0
    %3783 = vmatprep.subr.mxu0 0.0
    %3784 = vmatpush1.msra.mxu0 0.0
    %3785 = vmatprep.subr.mxu0 0.0
    %3786 = vmatpush1.msra.mxu0 0.0
    %3787 = vmatprep.subr.mxu0 0.0
    %3788 = vmatpush1.msra.mxu0 0.0
    %3789 = vmatprep.subr.mxu0 0.0
    %3790 = vmatpush1.msra.mxu0 0.0
    %3791 = vmatprep.mubr.f32.mxu0 0.0
    %3792 = vmatmul.mubr.f32.gmra.mrb[0].mxu0 %v3710
    %v3793 = vpop.f32.mrb[0].mxu0
    %v3794 = vadd.f32 0.0, %v3793
    %v3795 = vpop.f32.mrb[0].mxu0
    %3796 = vdwg.mxu0
    %s3797 = scalar_lea.vmem %s8, 128
    %v3798 = vld [vmem:[%s3797] sm:$0xff]
    %v3799 = vld [vmem:[%s3797 + $0x8] sm:$0xff]
    %v3800 = vld [vmem:[%s3797 + $0x10] sm:$0xff]
    %v3801 = vld [vmem:[%s3797 + $0x18] sm:$0xff]
    %v3802 = vld [vmem:[%s3797 + $0x20] sm:$0xff]
    %v3803 = vld [vmem:[%s3797 + $0x28] sm:$0xff]
    %v3804 = vld [vmem:[%s3797 + $0x30] sm:$0xff]
    %v3805 = vld [vmem:[%s3797 + $0x38] sm:$0xff]
    %v3806 = vld [vmem:[%s3797 + $0x40] sm:$0xff]
    %v3807 = vld [vmem:[%s3797 + $0x48] sm:$0xff]
    %v3808 = vld [vmem:[%s3797 + $0x50] sm:$0xff]
    %v3809 = vld [vmem:[%s3797 + $0x58] sm:$0xff]
    %v3810 = vld [vmem:[%s3797 + $0x60] sm:$0xff]
    %v3811 = vld [vmem:[%s3797 + $0x68] sm:$0xff]
    %v3812 = vld [vmem:[%s3797 + $0x70] sm:$0xff]
    %v3813 = vld [vmem:[%s3797 + $0x78] sm:$0xff]
    %3814 = vmatprep.subr.mxu0 0.0
    %3815 = vmatpush1.msra.mxu0 %v3798
    %3816 = vmatprep.subr.mxu0 0.0
    %3817 = vmatpush1.msra.mxu0 %v3799
    %3818 = vmatprep.subr.mxu0 0.0
    %3819 = vmatpush1.msra.mxu0 %v3800
    %3820 = vmatprep.subr.mxu0 0.0
    %3821 = vmatpush1.msra.mxu0 %v3801
    %3822 = vmatprep.subr.mxu0 0.0
    %3823 = vmatpush1.msra.mxu0 %v3802
    %3824 = vmatprep.subr.mxu0 0.0
    %3825 = vmatpush1.msra.mxu0 %v3803
    %3826 = vmatprep.subr.mxu0 0.0
    %3827 = vmatpush1.msra.mxu0 %v3804
    %3828 = vmatprep.subr.mxu0 0.0
    %3829 = vmatpush1.msra.mxu0 %v3805
    %3830 = vmatprep.subr.mxu0 0.0
    %3831 = vmatpush1.msra.mxu0 %v3806
    %3832 = vmatprep.subr.mxu0 0.0
    %3833 = vmatpush1.msra.mxu0 %v3807
    %3834 = vmatprep.subr.mxu0 0.0
    %3835 = vmatpush1.msra.mxu0 %v3808
    %3836 = vmatprep.subr.mxu0 0.0
    %3837 = vmatpush1.msra.mxu0 %v3809
    %3838 = vmatprep.subr.mxu0 0.0
    %3839 = vmatpush1.msra.mxu0 %v3810
    %3840 = vmatprep.subr.mxu0 0.0
    %3841 = vmatpush1.msra.mxu0 %v3811
    %3842 = vmatprep.subr.mxu0 0.0
    %3843 = vmatpush1.msra.mxu0 %v3812
    %3844 = vmatprep.subr.mxu0 0.0
    %3845 = vmatpush1.msra.mxu0 %v3813
    %3846 = vmatprep.subr.mxu0 0.0
    %3847 = vmatpush1.msra.mxu0 0.0
    %3848 = vmatprep.subr.mxu0 0.0
    %3849 = vmatpush1.msra.mxu0 0.0
    %3850 = vmatprep.subr.mxu0 0.0
    %3851 = vmatpush1.msra.mxu0 0.0
    %3852 = vmatprep.subr.mxu0 0.0
    %3853 = vmatpush1.msra.mxu0 0.0
    %3854 = vmatprep.subr.mxu0 0.0
    %3855 = vmatpush1.msra.mxu0 0.0
    %3856 = vmatprep.subr.mxu0 0.0
    %3857 = vmatpush1.msra.mxu0 0.0
    %3858 = vmatprep.subr.mxu0 0.0
    %3859 = vmatpush1.msra.mxu0 0.0
    %3860 = vmatprep.subr.mxu0 0.0
    %3861 = vmatpush1.msra.mxu0 0.0
    %3862 = vmatprep.subr.mxu0 0.0
    %3863 = vmatpush1.msra.mxu0 0.0
    %3864 = vmatprep.subr.mxu0 0.0
    %3865 = vmatpush1.msra.mxu0 0.0
    %3866 = vmatprep.subr.mxu0 0.0
    %3867 = vmatpush1.msra.mxu0 0.0
    %3868 = vmatprep.subr.mxu0 0.0
    %3869 = vmatpush1.msra.mxu0 0.0
    %3870 = vmatprep.subr.mxu0 0.0
    %3871 = vmatpush1.msra.mxu0 0.0
    %3872 = vmatprep.subr.mxu0 0.0
    %3873 = vmatpush1.msra.mxu0 0.0
    %3874 = vmatprep.subr.mxu0 0.0
    %3875 = vmatpush1.msra.mxu0 0.0
    %3876 = vmatprep.subr.mxu0 0.0
    %3877 = vmatpush1.msra.mxu0 0.0
    %3878 = vmatprep.mubr.f32.mxu0 0.0
    %3879 = vmatmul.mubr.f32.gmra.mrb[0].mxu0 %v3710
    %v3880 = vpop.f32.mrb[0].mxu0
    %v3881 = vadd.f32 0.0, %v3880
    %v3882 = vpop.f32.mrb[0].mxu0
    %3883 = vdwg.mxu0
    %v3884 = vmax.f32 %v3794, %v3881
    %v3885 = vld [vmem:[#allocation5] sm:$0x1]
    %v3887 = vlaneseq
    %v3888 = vshrl.u32 %v3887, 7
    %v3889 = vsub.s32 0, %v3888
    %v3890 = vrot.slane %v3885, %v3889
    %3891 = vrot.lane.b32.xlu0 %v3890, 64
    %v3892 = vpop.permute.xlu0 %3891
    %v3894 = vsel %vm665, %v3884, %v3892
    %v3895 = vld [vmem:[%s9] sm:$0xff]
    %v3896 = vld [vmem:[%s9 + $0x8] sm:$0xff]
    %v3897 = vld [vmem:[%s9 + $0x10] sm:$0xff]
    %v3898 = vld [vmem:[%s9 + $0x18] sm:$0xff]
    %v3899 = vld [vmem:[%s9 + $0x20] sm:$0xff]
    %v3900 = vld [vmem:[%s9 + $0x28] sm:$0xff]
    %v3901 = vld [vmem:[%s9 + $0x30] sm:$0xff]
    %v3902 = vld [vmem:[%s9 + $0x38] sm:$0xff]
    %v3903 = vld [vmem:[%s9 + $0x40] sm:$0xff]
    %v3904 = vld [vmem:[%s9 + $0x48] sm:$0xff]
    %v3905 = vld [vmem:[%s9 + $0x50] sm:$0xff]
    %v3906 = vld [vmem:[%s9 + $0x58] sm:$0xff]
    %v3907 = vld [vmem:[%s9 + $0x60] sm:$0xff]
    %v3908 = vld [vmem:[%s9 + $0x68] sm:$0xff]
    %v3909 = vld [vmem:[%s9 + $0x70] sm:$0xff]
    %v3910 = vld [vmem:[%s9 + $0x78] sm:$0xff]
    %v3911 = vld [vmem:[%s9 + $0x80] sm:$0x1]
    %v3913 = vsel %vm300, %v3911, 0
    %3915 = vmatprep.subr.mxu0 0.0
    %3916 = vmatpush1.msra.mxu0 %v3895
    %3917 = vmatprep.subr.mxu0 0.0
    %3918 = vmatpush1.msra.mxu0 %v3896
    %3919 = vmatprep.subr.mxu0 0.0
    %3920 = vmatpush1.msra.mxu0 %v3897
    %3921 = vmatprep.subr.mxu0 0.0
    %3922 = vmatpush1.msra.mxu0 %v3898
    %3923 = vmatprep.subr.mxu0 0.0
    %3924 = vmatpush1.msra.mxu0 %v3899
    %3925 = vmatprep.subr.mxu0 0.0
    %3926 = vmatpush1.msra.mxu0 %v3900
    %3927 = vmatprep.subr.mxu0 0.0
    %3928 = vmatpush1.msra.mxu0 %v3901
    %3929 = vmatprep.subr.mxu0 0.0
    %3930 = vmatpush1.msra.mxu0 %v3902
    %3931 = vmatprep.subr.mxu0 0.0
    %3932 = vmatpush1.msra.mxu0 %v3903
    %3933 = vmatprep.subr.mxu0 0.0
    %3934 = vmatpush1.msra.mxu0 %v3904
    %3935 = vmatprep.subr.mxu0 0.0
    %3936 = vmatpush1.msra.mxu0 %v3905
    %3937 = vmatprep.subr.mxu0 0.0
    %3938 = vmatpush1.msra.mxu0 %v3906
    %3939 = vmatprep.subr.mxu0 0.0
    %3940 = vmatpush1.msra.mxu0 %v3907
    %3941 = vmatprep.subr.mxu0 0.0
    %3942 = vmatpush1.msra.mxu0 %v3908
    %3943 = vmatprep.subr.mxu0 0.0
    %3944 = vmatpush1.msra.mxu0 %v3909
    %3945 = vmatprep.subr.mxu0 0.0
    %3946 = vmatpush1.msra.mxu0 %v3910
    %3947 = vmatprep.subr.mxu0 0.0
    %3948 = vmatpush1.msra.mxu0 %v3913
    %3949 = vmatprep.subr.mxu0 0.0
    %3950 = vmatpush1.msra.mxu0 0.0
    %3951 = vmatprep.subr.mxu0 0.0
    %3952 = vmatpush1.msra.mxu0 0.0
    %3953 = vmatprep.subr.mxu0 0.0
    %3954 = vmatpush1.msra.mxu0 0.0
    %3955 = vmatprep.subr.mxu0 0.0
    %3956 = vmatpush1.msra.mxu0 0.0
    %3957 = vmatprep.subr.mxu0 0.0
    %3958 = vmatpush1.msra.mxu0 0.0
    %3959 = vmatprep.subr.mxu0 0.0
    %3960 = vmatpush1.msra.mxu0 0.0
    %3961 = vmatprep.subr.mxu0 0.0
    %3962 = vmatpush1.msra.mxu0 0.0
    %3963 = vmatprep.subr.mxu0 0.0
    %3964 = vmatpush1.msra.mxu0 0.0
    %3965 = vmatprep.subr.mxu0 0.0
    %3966 = vmatpush1.msra.mxu0 0.0
    %3967 = vmatprep.subr.mxu0 0.0
    %3968 = vmatpush1.msra.mxu0 0.0
    %3969 = vmatprep.subr.mxu0 0.0
    %3970 = vmatpush1.msra.mxu0 0.0
    %3971 = vmatprep.subr.mxu0 0.0
    %3972 = vmatpush1.msra.mxu0 0.0
    %3973 = vmatprep.subr.mxu0 0.0
    %3974 = vmatpush1.msra.mxu0 0.0
    %3975 = vmatprep.subr.mxu0 0.0
    %3976 = vmatpush1.msra.mxu0 0.0
    %3977 = vmatprep.subr.mxu0 0.0
    %3978 = vmatpush1.msra.mxu0 0.0
    %3979 = vmatprep.mubr.f32.mxu0 %v298
    %3980 = vmatmul.mubr.f32.gmra.mrb[0].mxu0 %v3894
    %v3981 = vpop.f32.mrb[0].mxu0
    %v3982 = vadd.f32 0.0, %v3981
    %v3983 = vpop.f32.mrb[0].mxu0
    %3984 = vdwg.mxu0
    %v3985 = vmax.f32 %v3982, 0.0
    %v3986 = vsel %vm665, %v3985, 1.0
    %v3987 = vld [vmem:[%s10] sm:$0xff]
    %v3988 = vld [vmem:[%s10 + $0x8] sm:$0xff]
    %v3989 = vld [vmem:[%s10 + $0x10] sm:$0xff]
    %v3990 = vld [vmem:[%s10 + $0x18] sm:$0xff]
    %v3991 = vld [vmem:[%s10 + $0x20] sm:$0xff]
    %v3992 = vld [vmem:[%s10 + $0x28] sm:$0xff]
    %v3993 = vld [vmem:[%s10 + $0x30] sm:$0xff]
    %v3994 = vld [vmem:[%s10 + $0x38] sm:$0xff]
    %v3995 = vld [vmem:[%s10 + $0x40] sm:$0x1]
    %v3997 = vsel %vm1211, %v3986, 0
    %v4000 = vsel %vm300, %v3995, 0
    %4002 = vmatprep.subr.mxu0 0.0
    %4003 = vmatpush1.msra.mxu0 %v3987
    %4004 = vmatprep.subr.mxu0 0.0
    %4005 = vmatpush1.msra.mxu0 %v3988
    %4006 = vmatprep.subr.mxu0 0.0
    %4007 = vmatpush1.msra.mxu0 %v3989
    %4008 = vmatprep.subr.mxu0 0.0
    %4009 = vmatpush1.msra.mxu0 %v3990
    %4010 = vmatprep.subr.mxu0 0.0
    %4011 = vmatpush1.msra.mxu0 %v3991
    %4012 = vmatprep.subr.mxu0 0.0
    %4013 = vmatpush1.msra.mxu0 %v3992
    %4014 = vmatprep.subr.mxu0 0.0
    %4015 = vmatpush1.msra.mxu0 %v3993
    %4016 = vmatprep.subr.mxu0 0.0
    %4017 = vmatpush1.msra.mxu0 %v3994
    %4018 = vmatprep.subr.mxu0 0.0
    %4019 = vmatpush1.msra.mxu0 %v4000
    %4020 = vmatprep.subr.mxu0 0.0
    %4021 = vmatpush1.msra.mxu0 0.0
    %4022 = vmatprep.subr.mxu0 0.0
    %4023 = vmatpush1.msra.mxu0 0.0
    %4024 = vmatprep.subr.mxu0 0.0
    %4025 = vmatpush1.msra.mxu0 0.0
    %4026 = vmatprep.subr.mxu0 0.0
    %4027 = vmatpush1.msra.mxu0 0.0
    %4028 = vmatprep.subr.mxu0 0.0
    %4029 = vmatpush1.msra.mxu0 0.0
    %4030 = vmatprep.subr.mxu0 0.0
    %4031 = vmatpush1.msra.mxu0 0.0
    %4032 = vmatprep.subr.mxu0 0.0
    %4033 = vmatpush1.msra.mxu0 0.0
    %4034 = vmatprep.subr.mxu0 0.0
    %4035 = vmatpush1.msra.mxu0 0.0
    %4036 = vmatprep.subr.mxu0 0.0
    %4037 = vmatpush1.msra.mxu0 0.0
    %4038 = vmatprep.subr.mxu0 0.0
    %4039 = vmatpush1.msra.mxu0 0.0
    %4040 = vmatprep.subr.mxu0 0.0
    %4041 = vmatpush1.msra.mxu0 0.0
    %4042 = vmatprep.subr.mxu0 0.0
    %4043 = vmatpush1.msra.mxu0 0.0
    %4044 = vmatprep.subr.mxu0 0.0
    %4045 = vmatpush1.msra.mxu0 0.0
    %4046 = vmatprep.subr.mxu0 0.0
    %4047 = vmatpush1.msra.mxu0 0.0
    %4048 = vmatprep.subr.mxu0 0.0
    %4049 = vmatpush1.msra.mxu0 0.0
    %4050 = vmatprep.subr.mxu0 0.0
    %4051 = vmatpush1.msra.mxu0 0.0
    %4052 = vmatprep.subr.mxu0 0.0
    %4053 = vmatpush1.msra.mxu0 0.0
    %4054 = vmatprep.subr.mxu0 0.0
    %4055 = vmatpush1.msra.mxu0 0.0
    %4056 = vmatprep.subr.mxu0 0.0
    %4057 = vmatpush1.msra.mxu0 0.0
    %4058 = vmatprep.subr.mxu0 0.0
    %4059 = vmatpush1.msra.mxu0 0.0
    %4060 = vmatprep.subr.mxu0 0.0
    %4061 = vmatpush1.msra.mxu0 0.0
    %4062 = vmatprep.subr.mxu0 0.0
    %4063 = vmatpush1.msra.mxu0 0.0
    %4064 = vmatprep.subr.mxu0 0.0
    %4065 = vmatpush1.msra.mxu0 0.0
    %4066 = vmatprep.mubr.f32.mxu0 0.0
    %4067 = vmatmul.mubr.f32.gmra.mrb[0].mxu0 %v3997
    %v4068 = vpop.f32.mrb[0].mxu0
    %v4069 = vadd.f32 0.0, %v4068
    %v4070 = vpop.f32.mrb[0].mxu0
    %4071 = vdwg.mxu0
    %v4072 = vmax.f32 %v4069, 0.0
    %vm4073 = vcmask 261120
    %v4074 = vsel %vm4073, %v4072, 1.0
    %v4075 = vld [vmem:[%s11] sm:$0xff]
    %v4076 = vld [vmem:[%s11 + $0x8] sm:$0xff]
    %v4077 = vld [vmem:[%s11 + $0x10] sm:$0xff]
    %v4078 = vld [vmem:[%s11 + $0x18] sm:$0xff]
    %v4079 = vld [vmem:[%s11 + $0x20] sm:$0x1]
    %vm4080 = vcmask 269312
    %v4082 = vsel %vm4080, %v4074, 0
    %v4085 = vsel %vm300, %v4079, 0
    %4087 = vmatprep.subr.mxu0 0.0
    %4088 = vmatpush1.msra.mxu0 %v4075
    %4089 = vmatprep.subr.mxu0 0.0
    %4090 = vmatpush1.msra.mxu0 %v4076
    %4091 = vmatprep.subr.mxu0 0.0
    %4092 = vmatpush1.msra.mxu0 %v4077
    %4093 = vmatprep.subr.mxu0 0.0
    %4094 = vmatpush1.msra.mxu0 %v4078
    %4095 = vmatprep.subr.mxu0 0.0
    %4096 = vmatpush1.msra.mxu0 %v4085
    %4097 = vmatprep.subr.mxu0 0.0
    %4098 = vmatpush1.msra.mxu0 0.0
    %4099 = vmatprep.subr.mxu0 0.0
    %4100 = vmatpush1.msra.mxu0 0.0
    %4101 = vmatprep.subr.mxu0 0.0
    %4102 = vmatpush1.msra.mxu0 0.0
    %4103 = vmatprep.subr.mxu0 0.0
    %4104 = vmatpush1.msra.mxu0 0.0
    %4105 = vmatprep.subr.mxu0 0.0
    %4106 = vmatpush1.msra.mxu0 0.0
    %4107 = vmatprep.subr.mxu0 0.0
    %4108 = vmatpush1.msra.mxu0 0.0
    %4109 = vmatprep.subr.mxu0 0.0
    %4110 = vmatpush1.msra.mxu0 0.0
    %4111 = vmatprep.subr.mxu0 0.0
    %4112 = vmatpush1.msra.mxu0 0.0
    %4113 = vmatprep.subr.mxu0 0.0
    %4114 = vmatpush1.msra.mxu0 0.0
    %4115 = vmatprep.subr.mxu0 0.0
    %4116 = vmatpush1.msra.mxu0 0.0
    %4117 = vmatprep.subr.mxu0 0.0
    %4118 = vmatpush1.msra.mxu0 0.0
    %4119 = vmatprep.subr.mxu0 0.0
    %4120 = vmatpush1.msra.mxu0 0.0
    %4121 = vmatprep.subr.mxu0 0.0
    %4122 = vmatpush1.msra.mxu0 0.0
    %4123 = vmatprep.subr.mxu0 0.0
    %4124 = vmatpush1.msra.mxu0 0.0
    %4125 = vmatprep.subr.mxu0 0.0
    %4126 = vmatpush1.msra.mxu0 0.0
    %4127 = vmatprep.subr.mxu0 0.0
    %4128 = vmatpush1.msra.mxu0 0.0
    %4129 = vmatprep.subr.mxu0 0.0
    %4130 = vmatpush1.msra.mxu0 0.0
    %4131 = vmatprep.subr.mxu0 0.0
    %4132 = vmatpush1.msra.mxu0 0.0
    %4133 = vmatprep.subr.mxu0 0.0
    %4134 = vmatpush1.msra.mxu0 0.0
    %4135 = vmatprep.subr.mxu0 0.0
    %4136 = vmatpush1.msra.mxu0 0.0
    %4137 = vmatprep.subr.mxu0 0.0
    %4138 = vmatpush1.msra.mxu0 0.0
    %4139 = vmatprep.subr.mxu0 0.0
    %4140 = vmatpush1.msra.mxu0 0.0
    %4141 = vmatprep.subr.mxu0 0.0
    %4142 = vmatpush1.msra.mxu0 0.0
    %4143 = vmatprep.subr.mxu0 0.0
    %4144 = vmatpush1.msra.mxu0 0.0
    %4145 = vmatprep.subr.mxu0 0.0
    %4146 = vmatpush1.msra.mxu0 0.0
    %4147 = vmatprep.subr.mxu0 0.0
    %4148 = vmatpush1.msra.mxu0 0.0
    %4149 = vmatprep.subr.mxu0 0.0
    %4150 = vmatpush1.msra.mxu0 0.0
    %4151 = vmatprep.mubr.f32.mxu0 0.0
    %4152 = vmatmul.mubr.f32.gmra.mrb[0].mxu0 %v4082
    %v4153 = vpop.f32.mrb[0].mxu0
    %v4154 = vadd.f32 0.0, %v4153
    %v4155 = vpop.f32.mrb[0].mxu0
    %4156 = vdwg.mxu0
    %v4157 = vmax.f32 %v4154, 0.0
    %vm4158 = vcmask 130048
    %v4159 = vsel %vm4158, %v4157, 1.0
    %v4160 = vld [vmem:[%s12] sm:$0xff]
    %v4161 = vld [vmem:[%s12 + $0x8] sm:$0xff]
    %v4162 = vld [vmem:[%s12 + $0x10] sm:$0x1]
    %vm4163 = vcmask 138240
    %v4165 = vsel %vm4163, %v4159, 0
    %v4168 = vsel %vm300, %v4162, 0
    %4170 = vmatprep.subr.mxu0 0.0
    %4171 = vmatpush1.msra.mxu0 %v4160
    %4172 = vmatprep.subr.mxu0 0.0
    %4173 = vmatpush1.msra.mxu0 %v4161
    %4174 = vmatprep.subr.mxu0 0.0
    %4175 = vmatpush1.msra.mxu0 %v4168
    %4176 = vmatprep.subr.mxu0 0.0
    %4177 = vmatpush1.msra.mxu0 0.0
    %4178 = vmatprep.subr.mxu0 0.0
    %4179 = vmatpush1.msra.mxu0 0.0
    %4180 = vmatprep.subr.mxu0 0.0
    %4181 = vmatpush1.msra.mxu0 0.0
    %4182 = vmatprep.subr.mxu0 0.0
    %4183 = vmatpush1.msra.mxu0 0.0
    %4184 = vmatprep.subr.mxu0 0.0
    %4185 = vmatpush1.msra.mxu0 0.0
    %4186 = vmatprep.subr.mxu0 0.0
    %4187 = vmatpush1.msra.mxu0 0.0
    %4188 = vmatprep.subr.mxu0 0.0
    %4189 = vmatpush1.msra.mxu0 0.0
    %4190 = vmatprep.subr.mxu0 0.0
    %4191 = vmatpush1.msra.mxu0 0.0
    %4192 = vmatprep.subr.mxu0 0.0
    %4193 = vmatpush1.msra.mxu0 0.0
    %4194 = vmatprep.subr.mxu0 0.0
    %4195 = vmatpush1.msra.mxu0 0.0
    %4196 = vmatprep.subr.mxu0 0.0
    %4197 = vmatpush1.msra.mxu0 0.0
    %4198 = vmatprep.subr.mxu0 0.0
    %4199 = vmatpush1.msra.mxu0 0.0
    %4200 = vmatprep.subr.mxu0 0.0
    %4201 = vmatpush1.msra.mxu0 0.0
    %4202 = vmatprep.subr.mxu0 0.0
    %4203 = vmatpush1.msra.mxu0 0.0
    %4204 = vmatprep.subr.mxu0 0.0
    %4205 = vmatpush1.msra.mxu0 0.0
    %4206 = vmatprep.subr.mxu0 0.0
    %4207 = vmatpush1.msra.mxu0 0.0
    %4208 = vmatprep.subr.mxu0 0.0
    %4209 = vmatpush1.msra.mxu0 0.0
    %4210 = vmatprep.subr.mxu0 0.0
    %4211 = vmatpush1.msra.mxu0 0.0
    %4212 = vmatprep.subr.mxu0 0.0
    %4213 = vmatpush1.msra.mxu0 0.0
    %4214 = vmatprep.subr.mxu0 0.0
    %4215 = vmatpush1.msra.mxu0 0.0
    %4216 = vmatprep.subr.mxu0 0.0
    %4217 = vmatpush1.msra.mxu0 0.0
    %4218 = vmatprep.subr.mxu0 0.0
    %4219 = vmatpush1.msra.mxu0 0.0
    %4220 = vmatprep.subr.mxu0 0.0
    %4221 = vmatpush1.msra.mxu0 0.0
    %4222 = vmatprep.subr.mxu0 0.0
    %4223 = vmatpush1.msra.mxu0 0.0
    %4224 = vmatprep.subr.mxu0 0.0
    %4225 = vmatpush1.msra.mxu0 0.0
    %4226 = vmatprep.subr.mxu0 0.0
    %4227 = vmatpush1.msra.mxu0 0.0
    %4228 = vmatprep.subr.mxu0 0.0
    %4229 = vmatpush1.msra.mxu0 0.0
    %4230 = vmatprep.subr.mxu0 0.0
    %4231 = vmatpush1.msra.mxu0 0.0
    %4232 = vmatprep.subr.mxu0 0.0
    %4233 = vmatpush1.msra.mxu0 0.0
    %4234 = vmatprep.mubr.f32.mxu0 0.0
    %4235 = vmatmul.mubr.f32.gmra.mrb[0].mxu0 %v4165
    %v4236 = vpop.f32.mrb[0].mxu0
    %v4237 = vadd.f32 0.0, %v4236
    %v4238 = vpop.f32.mrb[0].mxu0
    %4239 = vdwg.mxu0
    %vm4240 = vcmask 57344
    %4241 = vst.msk [vmem:[#allocation8] sm:$0x1] %vm4240, %v4237
    // Predicated region
    $region66: #{tpu_custom_call.1} parent=1 // pred_check
      _
    $region67: #{tpu_custom_call.1} parent=1 // pred_check_branch
      %4243 = sbr.rel (0) target = $region69
    $region68: #{tpu_custom_call.1} parent=1 // pred_region
      %s4245 = ssub.s32 16, 16
      %4246 = vsyncadd [#allocation4], %s4245
      %s4248 = sshll.u32 [#allocation8], 4
      %s4249 = int_to_ptr.vmem [resolvable:$true] %s4248
      %4251 = dma.vmem_to_hbm [thread:$0]  %s4249, 16, %s13, [#allocation4]
    $region69: #{tpu_custom_call.1} parent=1 // pred_fallthru
      _
    // Predicated region
    $region70: #{tpu_custom_call.1} parent=1 // pred_check
      _
    $region71: #{tpu_custom_call.1} parent=1 // pred_check_branch
      %4253 = sbr.rel (0) target = $region73
    $region72: #{tpu_custom_call.1} parent=1 // pred_region
      %4254 = dma.done [#allocation4], 16
    $region73: #{tpu_custom_call.1} parent=1 // pred_fallthru
      _
    %4255 = vsyncpa [#allocation3], 1
    %4256 = vsyncpa [#allocation6], 1
    %4257 = vsyncpa [#allocation4], 1

</llo_original>
